<compile_context>
chip_gen: v7x
topology: tpu7x:2x2x1
jax: 0.10.0
libtpu: 0.0.40
codegen_flags: <defaults>
</compile_context>

<pallas_src>
import math

import numpy as np
import jax
import jax.numpy as jnp
from jax import lax
from jax.experimental import pallas as pl
from jax.experimental.pallas import tpu as pltpu

# ----------------------- miniature ConvNeXt configuration -----------------------
DIMS = (16, 32)           # per-stage channel dims (convnext_base: (128,256,512,1024))
DEPTHS = (1, 1)           # blocks per stage (fused kernel assumes 1 per stage)
HIDDEN_DIM = DIMS[-1]     # encoder.classifier[2].in_features stand-in
OUTPUT_DIM = 16           # projection head output dim (module default 128)
QUEUE_SIZE = 64           # module default 65536 (queue is unused by forward())
MOMENTUM = 0.999
TEMPERATURE = 0.07        # unused in forward()
LN_EPS = 1e-6
LAYER_SCALE_INIT = 1e-6
CP = 128                  # padded lane width for every channel-like dim
BF = jnp.bfloat16

_GELU_C = math.sqrt(2.0 / math.pi)


# ------------------------------ in-kernel helpers ------------------------------
def _gelu_tanh(x):
    # TODO(synk): torchvision's nn.GELU is exact-erf; the tanh approximation
    # (single EUP tanh) deviates by ~1e-3 abs but avoids the erf polynomial.
    return 0.5 * x * (1.0 + jnp.tanh(_GELU_C * (x + 0.044715 * x * x * x)))


def _ln(x, g, b, c_real):
    """LayerNorm over the last dim with `c_real` valid channels (rest zero-pad).

    Uses E[x^2] - mean^2 so the zero-padded lanes contribute nothing; the
    zero-padded gamma/beta keep padded lanes at exactly 0 on the output.
    """
    inv_c = 1.0 / c_real
    mean = jnp.sum(x, axis=-1, keepdims=True) * inv_c
    ex2 = jnp.sum(x * x, axis=-1, keepdims=True) * inv_c
    var = ex2 - mean * mean
    return (x - mean) * lax.rsqrt(var + LN_EPS) * g + b


def _dot(a, b):
    # bf16 operands (weights are already bf16 -> no-op cast), f32 accumulate.
    return jnp.dot(a.astype(BF), b.astype(BF), preferred_element_type=jnp.float32)


def _cnblock(x, sel_ref, dw_ref, dw_b, ln_g, ln_b,
             fc1_w, fc1_b, fc2_w, fc2_b, ls, c_real):
    """Fused ConvNeXt CNBlock on a VMEM-resident (T, CP) token slab.

    depthwise 7x7 (49 shift-select matmuls, rolled fori_loop) -> LN ->
    Linear -> GELU -> Linear -> layer_scale -> residual.
    """
    T = x.shape[0]
    x_bf = x.astype(BF)                                   # hoisted, loop-invariant

    def tap_body(k, acc):
        tap = _dot(sel_ref[k], x_bf)                      # (T, CP) shifted copy of x
        return acc + tap * dw_ref[0, k]                   # per-tap per-channel weight

    xdw = lax.fori_loop(0, 49, tap_body, jnp.zeros((T, CP), jnp.float32)) + dw_b
    xn = _ln(xdw, ln_g, ln_b, c_real)
    h = _gelu_tanh(_dot(xn, fc1_w) + fc1_b)
    y = _dot(h, fc2_w) + fc2_b
    # TODO(synk): stochastic depth treated as identity (eval-mode behaviour).
    return x + ls * y


# --------------------------------- the kernel ---------------------------------
def _moco_kernel(sel0_ref, sel1_ref, dsel_ref, pool_ref,
                 patches_ref, stem_w_ref, stem_b_ref, stem_g_ref, stem_bt_ref,
                 dw_w0_ref, dw_b0_ref, ln_g0_ref, ln_b0_ref,
                 fc1_w0_ref, fc1_b0_ref, fc2_w0_ref, fc2_b0_ref, ls0_ref,
                 ds_g_ref, ds_bt_ref, ds_w_ref, ds_b_ref,
                 dw_w1_ref, dw_b1_ref, ln_g1_ref, ln_b1_ref,
                 fc1_w1_ref, fc1_b1_ref, fc2_w1_ref, fc2_b1_ref, ls1_ref,
                 cls_g_ref, cls_bt_ref,
                 p1_w_ref, p1_b_ref, p2_w_ref, p2_b_ref,
                 o_ref):
    """One whole encoder branch per grid step (step 0 = query, step 1 = key)."""
    # ---- stem: 4x4/s4 conv (patch matmul) + bias + LayerNorm2d ----
    x0 = _dot(patches_ref[0], stem_w_ref[0]) + stem_b_ref[0]
    x0 = _ln(x0, stem_g_ref[0], stem_bt_ref[0], DIMS[0])

    # ---- stage-0 CNBlock ----
    x0 = _cnblock(x0, sel0_ref, dw_w0_ref, dw_b0_ref[0], ln_g0_ref[0], ln_b0_ref[0],
                  fc1_w0_ref[0], fc1_b0_ref[0], fc2_w0_ref[0], fc2_b0_ref[0],
                  ls0_ref[0], DIMS[0])

    # ---- downsample: LayerNorm2d + 2x2/s2 conv (gathers + one fused-K matmul) ----
    xn = _ln(x0, ds_g_ref[0], ds_bt_ref[0], DIMS[0]).astype(BF)
    gathered = jnp.concatenate([_dot(dsel_ref[k], xn) for k in range(4)], axis=-1)
    x1 = _dot(gathered, ds_w_ref[0]) + ds_b_ref[0]        # (T1, 4*CP) @ (4*CP, CP)

    # ---- stage-1 CNBlock ----
    x1 = _cnblock(x1, sel1_ref, dw_w1_ref, dw_b1_ref[0], ln_g1_ref[0], ln_b1_ref[0],
                  fc1_w1_ref[0], fc1_b1_ref[0], fc2_w1_ref[0], fc2_b1_ref[0],
                  ls1_ref[0], DIMS[1])

    # ---- head: avgpool (matmul) + LayerNorm2d + projector + F.normalize ----
    pooled = _dot(pool_ref[...], x1)                      # (N, CP)
    f = _ln(pooled, cls_g_ref[0], cls_bt_ref[0], HIDDEN_DIM)
    h = jnp.maximum(_dot(f, p1_w_ref[0]) + p1_b_ref[0], 0.0)
    z = _dot(h, p2_w_ref[0]) + p2_b_ref[0]
    nrm = jnp.sqrt(jnp.sum(z * z, axis=-1, keepdims=True))
    o_ref[0] = z / jnp.maximum(nrm, 1e-12)                # F.normalize(dim=1)


# ------------------------------ spec construction ------------------------------
def _const_spec(shape):
    nd = len(shape)
    return pl.BlockSpec(tuple(shape), lambda b, _nd=nd: (0,) * _nd)


def _branch_spec(shape):
    nd = len(shape)
    return pl.BlockSpec((1,) + tuple(shape[1:]),
                        lambda b, _nd=nd: (b,) + (0,) * (_nd - 1))


def _fused_moco_call(const_args, stacked_args, n_batch):
    in_specs = ([_const_spec(a.shape) for a in const_args]
                + [_branch_spec(a.shape) for a in stacked_args])
    return pl.pallas_call(
        _moco_kernel,
        out_shape=jax.ShapeDtypeStruct((2, n_batch, CP), jnp.float32),
        grid=(2,),                                        # one step per branch (q, k)
        in_specs=in_specs,
        out_specs=pl.BlockSpec((1, n_batch, CP), lambda b: (b, 0, 0)),
        compiler_params=pltpu.CompilerParams(
            dimension_semantics=("parallel",),            # v7x: one TC per branch
            vmem_limit_bytes=32 * 1024 * 1024),
    )(*const_args, *stacked_args)


# ----------------------- gather / shift matmul constants -----------------------
def _shift_select(n, h, w):
    """(49, T, T) 0/1 tap-gather matrices for a 7x7 depthwise conv, padding=3."""
    t = n * h * w
    sel = np.zeros((49, t, t), np.float32)
    for kh in range(7):
        for kw in range(7):
            k = kh * 7 + kw
            for ni in range(n):
                for hi in range(h):
                    hs = hi + kh - 3
                    if not 0 <= hs < h:
                        continue
                    for wi in range(w):
                        ws = wi + kw - 3
                        if 0 <= ws < w:
                            sel[k, (ni * h + hi) * w + wi, (ni * h + hs) * w + ws] = 1.0
    return sel


def _down_select(n, h, w):
    """(4, T_out, T_in) gather matrices for the 2x2/s2 downsample conv."""
    ho, wo = h // 2, w // 2
    sel = np.zeros((4, n * ho * wo, n * h * w), np.float32)
    for dh in range(2):
        for dw in range(2):
            k = dh * 2 + dw
            for ni in range(n):
                for hi in range(ho):
                    for wi in range(wo):
                        sel[k, (ni * ho + hi) * wo + wi,
                            (ni * h + 2 * hi + dh) * w + 2 * wi + dw] = 1.0
    return sel


def _pool_mat(n, tokens_per_image):
    m = np.zeros((n, n * tokens_per_image), np.float32)
    for ni in range(n):
        m[ni, ni * tokens_per_image:(ni + 1) * tokens_per_image] = 1.0 / tokens_per_image
    return m


def make_gather_constants(n, h, w):
    """Shift/select/pool matmul constants for batch n, input spatial (h, w)."""
    h0, w0 = h // 4, w // 4          # after stem 4x4/s4
    h1, w1 = h0 // 2, w0 // 2        # after 2x2/s2 downsample
    return dict(
        sel0=jnp.asarray(_shift_select(n, h0, w0), BF),
        sel1=jnp.asarray(_shift_select(n, h1, w1), BF),
        dsel=jnp.asarray(_down_select(n, h0, w0), BF),
        pool=jnp.asarray(_pool_mat(n, h1 * w1), BF),
    )


# --------------------------- parameter initialization ---------------------------
def _init_encoder_params(key):
    assert all(d == 1 for d in DEPTHS), "fused kernel assumes one CNBlock per stage"

    def normal(k, shape, scale=0.05):
        return scale * jax.random.normal(k, shape, jnp.float32)

    keys = iter(jax.random.split(key, 32))
    p = {}
    # stem: Conv2d(3, dims[0], k=4, s=4) + LayerNorm2d
    p['stem_w'] = normal(next(keys), (DIMS[0], 3, 4, 4))
    p['stem_b'] = normal(next(keys), (DIMS[0],))
    p['stem_ln_g'] = jnp.ones((DIMS[0],), jnp.float32)
    p['stem_ln_b'] = jnp.zeros((DIMS[0],), jnp.float32)
    # stages of CNBlocks
    p['stages'] = []
    for si, dim in enumerate(DIMS):
        blocks = []
        for _ in range(DEPTHS[si]):
            blocks.append({
                'dw_w': normal(next(keys), (dim, 1, 7, 7)),
                'dw_b': normal(next(keys), (dim,)),
                'ln_g': jnp.ones((dim,), jnp.float32),
                'ln_b': jnp.zeros((dim,), jnp.float32),
                'fc1_w': normal(next(keys), (4 * dim, dim)),   # torch Linear (out, in)
                'fc1_b': normal(next(keys), (4 * dim,)),
                'fc2_w': normal(next(keys), (dim, 4 * dim)),
                'fc2_b': normal(next(keys), (dim,)),
                'ls': jnp.full((dim,), LAYER_SCALE_INIT, jnp.float32),
            })
        p['stages'].append(blocks)
    # downsample layers: LayerNorm2d + Conv2d(k=2, s=2)
    p['downsample'] = []
    for si in range(len(DIMS) - 1):
        cin, cout = DIMS[si], DIMS[si + 1]
        p['downsample'].append({
            'ln_g': jnp.ones((cin,), jnp.float32),
            'ln_b': jnp.zeros((cin,), jnp.float32),
            'conv_w': normal(next(keys), (cout, cin, 2, 2)),
            'conv_b': normal(next(keys), (cout,)),
        })
    # classifier[0] LayerNorm2d, classifier[2] = Identity
    p['cls_ln_g'] = jnp.ones((HIDDEN_DIM,), jnp.float32)
    p['cls_ln_b'] = jnp.zeros((HIDDEN_DIM,), jnp.float32)
    # projector: Linear(h, h) -> ReLU -> Linear(h, output_dim)
    p['proj1_w'] = normal(next(keys), (HIDDEN_DIM, HIDDEN_DIM))
    p['proj1_b'] = normal(next(keys), (HIDDEN_DIM,))
    p['proj2_w'] = normal(next(keys), (OUTPUT_DIM, HIDDEN_DIM))
    p['proj2_b'] = normal(next(keys), (OUTPUT_DIM,))
    return p


# --------------------------- per-branch argument packing ---------------------------
def _pad_rows_cols(a, rows, cols):
    return jnp.pad(a, ((0, rows - a.shape[0]), (0, cols - a.shape[1])))


def _vec(a):
    """(C,) -> (1, CP) float32, zero-padded (keeps padded lanes exactly 0)."""
    a = jnp.asarray(a, jnp.float32).reshape(1, -1)
    return jnp.pad(a, ((0, 0), (0, CP - a.shape[1])))


def _mat(a_kn):
    """(K, N) matmul-oriented weight -> (CP, CP) bf16, zero-padded."""
    return _pad_rows_cols(a_kn, CP, CP).astype(BF)


def _dwmat(a):
    """torch depthwise weight (C, 1, 7, 7) -> (49, 1, CP) float32 (VPU operand)."""
    c = a.shape[0]
    w = a.reshape(c, 49).T.reshape(49, 1, c)               # k = kh*7 + kw
    return jnp.pad(w, ((0, 0), (0, 0), (0, CP - c))).astype(jnp.float32)


def _branch_args(p, x_nchw):
    """Pack one encoder branch's input + weights into kernel-ready padded arrays."""
    n, cin, h, w = x_nchw.shape
    h0, w0 = h // 4, w // 4
    t0 = n * h0 * w0
    # stem 4x4/s4 conv as a patch matmul; (cin, kh, kw) flattening matches the
    # torch weight reshape below.  (Tiny one-off XLA relayout of the raw input.)
    patches = (x_nchw.reshape(n, cin, h0, 4, w0, 4)
               .transpose(0, 2, 4, 1, 3, 5)
               .reshape(t0, cin * 16))
    patches = jnp.pad(patches, ((0, 0), (0, CP - cin * 16))).astype(jnp.float32)
    stem_w = _mat(p['stem_w'].reshape(DIMS[0], cin * 16).T)

    b0 = p['stages'][0][0]
    b1 = p['stages'][1][0]
    ds = p['downsample'][0]
    # downsample conv: (cout, cin, 2, 2) -> (4, cin, cout) -> padded -> (4*CP, CP)
    ds_w = jnp.pad(ds['conv_w'].transpose(2, 3, 1, 0).reshape(4, DIMS[0], DIMS[1]),
                   ((0, 0), (0, CP - DIMS[0]), (0, CP - DIMS[1])))
    ds_w = ds_w.reshape(4 * CP, CP).astype(BF)

    def block_args(bp):
        return [_dwmat(bp['dw_w']), _vec(bp['dw_b']), _vec(bp['ln_g']), _vec(bp['ln_b']),
                _mat(bp['fc1_w'].T), _vec(bp['fc1_b']),
                _mat(bp['fc2_w'].T), _vec(bp['fc2_b']), _vec(bp['ls'])]

    return ([patches, stem_w, _vec(p['stem_b']), _vec(p['stem_ln_g']), _vec(p['stem_ln_b'])]
            + block_args(b0)
            + [_vec(ds['ln_g']), _vec(ds['ln_b']), ds_w, _vec(ds['conv_b'])]
            + block_args(b1)
            + [_vec(p['cls_ln_g']), _vec(p['cls_ln_b']),
               _mat(p['proj1_w'].T), _vec(p['proj1_b']),
               _mat(p['proj2_w'].T), _vec(p['proj2_b'])])


# ------------------------------- forward pass -------------------------------
@jax.jit
def moco_forward(params_q, params_k, x_q, x_k, consts):
    """Mirrors MoCoV2ConvNeXt.forward: q branch, momentum update, k branch.

    The momentum update is f32 XLA glue; both encoder branches then run inside
    ONE fused Pallas call (grid=(2,), parallel across branches).
    """
    params_k_new = jax.tree_util.tree_map(
        lambda pk, pq: MOMENTUM * pk + (1.0 - MOMENTUM) * pq, params_k, params_q)
    args_q = _branch_args(params_q, x_q)
    args_k = _branch_args(params_k_new, x_k)
    stacked = [jnp.stack([aq, ak], axis=0) for aq, ak in zip(args_q, args_k)]
    const_args = [consts['sel0'], consts['sel1'], consts['dsel'], consts['pool']]
    out = _fused_moco_call(const_args, stacked, x_q.shape[0])
    q = out[0, :, :OUTPUT_DIM]
    k = out[1, :, :OUTPUT_DIM]
    return q, k, params_k_new


# ----------------------------------- main -----------------------------------
if __name__ == "__main__":
    key = jax.random.PRNGKey(0)
    k_param, k_q, k_k, k_queue = jax.random.split(key, 4)

    params_q = _init_encoder_params(k_param)
    # encoder_k initialized as a copy of encoder_q
    params_k = jax.tree_util.tree_map(lambda a: a, params_q)

    # queue buffer (registered + normalized in __init__, not used by forward)
    # TODO(synk): queue dequeue/enqueue is a stateful side buffer, not part of forward().
    queue = jax.random.normal(k_queue, (QUEUE_SIZE, OUTPUT_DIM), jnp.float32)
    queue = queue / jnp.maximum(jnp.linalg.norm(queue, axis=1, keepdims=True), 1e-12)

    # small inputs: batch=2, RGB, 32x32 (NCHW, as PyTorch)
    x_q = jax.random.normal(k_q, (2, 3, 32, 32), jnp.float32)
    x_k = jax.random.normal(k_k, (2, 3, 32, 32), jnp.float32)

    consts = make_gather_constants(x_q.shape[0], x_q.shape[2], x_q.shape[3])

    q, k, params_k = moco_forward(params_q, params_k, x_q, x_k, consts)
    jax.block_until_ready((q, k))

    assert q.shape == (2, OUTPUT_DIM) and k.shape == (2, OUTPUT_DIM)
    assert q.dtype == jnp.float32 and k.dtype == jnp.float32
    assert bool(jnp.all(jnp.isfinite(q))) and bool(jnp.all(jnp.isfinite(k)))
    # q and k are L2-normalized feature vectors
    assert bool(jnp.all(jnp.abs(jnp.linalg.norm(q, axis=1) - 1.0) < 1e-2))
    assert bool(jnp.all(jnp.abs(jnp.linalg.norm(k, axis=1) - 1.0) < 1e-2))
    print("KERNEL_OK")
</pallas_src>

<mosaic_0001>
module attributes {stable_mosaic.version = 11 : i64} {
  func.func @_moco_kernel(%arg0: i32, %arg1: memref<49x128x128xbf16, #tpu.memory_space<vmem>>, %arg2: memref<49x32x32xbf16, #tpu.memory_space<vmem>>, %arg3: memref<4x32x128xbf16, #tpu.memory_space<vmem>>, %arg4: memref<2x32xbf16, #tpu.memory_space<vmem>>, %arg5: memref<1x128x128xf32, #tpu.memory_space<vmem>>, %arg6: memref<1x128x128xbf16, #tpu.memory_space<vmem>>, %arg7: memref<1x1x128xf32, #tpu.memory_space<vmem>>, %arg8: memref<1x1x128xf32, #tpu.memory_space<vmem>>, %arg9: memref<1x1x128xf32, #tpu.memory_space<vmem>>, %arg10: memref<1x49x1x128xf32, #tpu.memory_space<vmem>>, %arg11: memref<1x1x128xf32, #tpu.memory_space<vmem>>, %arg12: memref<1x1x128xf32, #tpu.memory_space<vmem>>, %arg13: memref<1x1x128xf32, #tpu.memory_space<vmem>>, %arg14: memref<1x128x128xbf16, #tpu.memory_space<vmem>>, %arg15: memref<1x1x128xf32, #tpu.memory_space<vmem>>, %arg16: memref<1x128x128xbf16, #tpu.memory_space<vmem>>, %arg17: memref<1x1x128xf32, #tpu.memory_space<vmem>>, %arg18: memref<1x1x128xf32, #tpu.memory_space<vmem>>, %arg19: memref<1x1x128xf32, #tpu.memory_space<vmem>>, %arg20: memref<1x1x128xf32, #tpu.memory_space<vmem>>, %arg21: memref<1x512x128xbf16, #tpu.memory_space<vmem>>, %arg22: memref<1x1x128xf32, #tpu.memory_space<vmem>>, %arg23: memref<1x49x1x128xf32, #tpu.memory_space<vmem>>, %arg24: memref<1x1x128xf32, #tpu.memory_space<vmem>>, %arg25: memref<1x1x128xf32, #tpu.memory_space<vmem>>, %arg26: memref<1x1x128xf32, #tpu.memory_space<vmem>>, %arg27: memref<1x128x128xbf16, #tpu.memory_space<vmem>>, %arg28: memref<1x1x128xf32, #tpu.memory_space<vmem>>, %arg29: memref<1x128x128xbf16, #tpu.memory_space<vmem>>, %arg30: memref<1x1x128xf32, #tpu.memory_space<vmem>>, %arg31: memref<1x1x128xf32, #tpu.memory_space<vmem>>, %arg32: memref<1x1x128xf32, #tpu.memory_space<vmem>>, %arg33: memref<1x1x128xf32, #tpu.memory_space<vmem>>, %arg34: memref<1x128x128xbf16, #tpu.memory_space<vmem>>, %arg35: memref<1x1x128xf32, #tpu.memory_space<vmem>>, %arg36: memref<1x128x128xbf16, #tpu.memory_space<vmem>>, %arg37: memref<1x1x128xf32, #tpu.memory_space<vmem>>, %arg38: memref<1x2x128xf32, #tpu.memory_space<vmem>>) attributes {dimension_semantics = [#tpu.dimension_semantics<parallel>], iteration_bounds = array<i64: 2>, scalar_prefetch = 0 : i64, scratch_operands = 0 : i64, tpu.core_type = #tpu.core_type<tc>, window_params = [{pipeline_mode = #tpu.pipeline_mode<synchronous>, transform_indices = @transform_0, window_bounds = array<i64: 49, 128, 128>}, {pipeline_mode = #tpu.pipeline_mode<synchronous>, transform_indices = @transform_1, window_bounds = array<i64: 49, 32, 32>}, {pipeline_mode = #tpu.pipeline_mode<synchronous>, transform_indices = @transform_2, window_bounds = array<i64: 4, 32, 128>}, {pipeline_mode = #tpu.pipeline_mode<synchronous>, transform_indices = @transform_3, window_bounds = array<i64: 2, 32>}, {transform_indices = @transform_4, window_bounds = array<i64: 1, 128, 128>}, {transform_indices = @transform_5, window_bounds = array<i64: 1, 128, 128>}, {transform_indices = @transform_6, window_bounds = array<i64: 1, 1, 128>}, {transform_indices = @transform_7, window_bounds = array<i64: 1, 1, 128>}, {transform_indices = @transform_8, window_bounds = array<i64: 1, 1, 128>}, {transform_indices = @transform_9, window_bounds = array<i64: 1, 49, 1, 128>}, {transform_indices = @transform_10, window_bounds = array<i64: 1, 1, 128>}, {transform_indices = @transform_11, window_bounds = array<i64: 1, 1, 128>}, {transform_indices = @transform_12, window_bounds = array<i64: 1, 1, 128>}, {transform_indices = @transform_13, window_bounds = array<i64: 1, 128, 128>}, {transform_indices = @transform_14, window_bounds = array<i64: 1, 1, 128>}, {transform_indices = @transform_15, window_bounds = array<i64: 1, 128, 128>}, {transform_indices = @transform_16, window_bounds = array<i64: 1, 1, 128>}, {transform_indices = @transform_17, window_bounds = array<i64: 1, 1, 128>}, {transform_indices = @transform_18, window_bounds = array<i64: 1, 1, 128>}, {transform_indices = @transform_19, window_bounds = array<i64: 1, 1, 128>}, {transform_indices = @transform_20, window_bounds = array<i64: 1, 512, 128>}, {transform_indices = @transform_21, window_bounds = array<i64: 1, 1, 128>}, {transform_indices = @transform_22, window_bounds = array<i64: 1, 49, 1, 128>}, {transform_indices = @transform_23, window_bounds = array<i64: 1, 1, 128>}, {transform_indices = @transform_24, window_bounds = array<i64: 1, 1, 128>}, {transform_indices = @transform_25, window_bounds = array<i64: 1, 1, 128>}, {transform_indices = @transform_26, window_bounds = array<i64: 1, 128, 128>}, {transform_indices = @transform_27, window_bounds = array<i64: 1, 1, 128>}, {transform_indices = @transform_28, window_bounds = array<i64: 1, 128, 128>}, {transform_indices = @transform_29, window_bounds = array<i64: 1, 1, 128>}, {transform_indices = @transform_30, window_bounds = array<i64: 1, 1, 128>}, {transform_indices = @transform_31, window_bounds = array<i64: 1, 1, 128>}, {transform_indices = @transform_32, window_bounds = array<i64: 1, 1, 128>}, {transform_indices = @transform_33, window_bounds = array<i64: 1, 128, 128>}, {transform_indices = @transform_34, window_bounds = array<i64: 1, 1, 128>}, {transform_indices = @transform_35, window_bounds = array<i64: 1, 128, 128>}, {transform_indices = @transform_36, window_bounds = array<i64: 1, 1, 128>}, {transform_indices = @transform_37, window_bounds = array<i64: 1, 2, 128>}]} {
    %c0 = arith.constant 0 : index
    %c0_0 = arith.constant 0 : index
    %c0_1 = arith.constant 0 : index
    %0 = vector.load %arg5[%c0, %c0_0, %c0_1] : memref<1x128x128xf32, #tpu.memory_space<vmem>>, vector<1x128x128xf32>
    %1 = vector.shape_cast %0 : vector<1x128x128xf32> to vector<128x128xf32>
    %c0_2 = arith.constant 0 : index
    %c0_3 = arith.constant 0 : index
    %c0_4 = arith.constant 0 : index
    %2 = vector.load %arg6[%c0_2, %c0_3, %c0_4] : memref<1x128x128xbf16, #tpu.memory_space<vmem>>, vector<1x128x128xbf16>
    %3 = vector.shape_cast %2 : vector<1x128x128xbf16> to vector<128x128xbf16>
    %4 = arith.truncf %1 : vector<128x128xf32> to vector<128x128xbf16>
    %cst = arith.constant dense<0.000000e+00> : vector<128x128xf32>
    %5 = tpu.matmul %4, %3, %cst {dimension_numbers = #tpu.dot_dimension_numbers<[1], [0], [0], [1], [0, 0, 1, 1], [], []>} : vector<128x128xbf16>, vector<128x128xbf16>, vector<128x128xf32> -> vector<128x128xf32>
    %c0_5 = arith.constant 0 : index
    %c0_6 = arith.constant 0 : index
    %c0_7 = arith.constant 0 : index
    %6 = vector.load %arg7[%c0_5, %c0_6, %c0_7] : memref<1x1x128xf32, #tpu.memory_space<vmem>>, vector<1x1x128xf32>
    %7 = vector.shape_cast %6 : vector<1x1x128xf32> to vector<1x128xf32>
    %8 = vector.broadcast %7 : vector<1x128xf32> to vector<128x128xf32>
    %9 = arith.addf %5, %8 : vector<128x128xf32>
    %c0_8 = arith.constant 0 : index
    %c0_9 = arith.constant 0 : index
    %c0_10 = arith.constant 0 : index
    %10 = vector.load %arg8[%c0_8, %c0_9, %c0_10] : memref<1x1x128xf32, #tpu.memory_space<vmem>>, vector<1x1x128xf32>
    %11 = vector.shape_cast %10 : vector<1x1x128xf32> to vector<1x128xf32>
    %c0_11 = arith.constant 0 : index
    %c0_12 = arith.constant 0 : index
    %c0_13 = arith.constant 0 : index
    %12 = vector.load %arg9[%c0_11, %c0_12, %c0_13] : memref<1x1x128xf32, #tpu.memory_space<vmem>>, vector<1x1x128xf32>
    %13 = vector.shape_cast %12 : vector<1x1x128xf32> to vector<1x128xf32>
    %cst_14 = arith.constant dense<0.000000e+00> : vector<128xf32>
    %14 = vector.multi_reduction <add>, %9, %cst_14 [1] : vector<128x128xf32> to vector<128xf32>
    %15 = vector.shape_cast %14 : vector<128xf32> to vector<128x1xf32>
    %cst_15 = arith.constant 6.250000e-02 : f32
    %16 = vector.broadcast %cst_15 : f32 to vector<128x1xf32>
    %17 = arith.mulf %15, %16 : vector<128x1xf32>
    %18 = arith.mulf %9, %9 : vector<128x128xf32>
    %cst_16 = arith.constant dense<0.000000e+00> : vector<128xf32>
    %19 = vector.multi_reduction <add>, %18, %cst_16 [1] : vector<128x128xf32> to vector<128xf32>
    %20 = vector.shape_cast %19 : vector<128xf32> to vector<128x1xf32>
    %cst_17 = arith.constant 6.250000e-02 : f32
    %21 = vector.broadcast %cst_17 : f32 to vector<128x1xf32>
    %22 = arith.mulf %20, %21 : vector<128x1xf32>
    %23 = arith.mulf %17, %17 : vector<128x1xf32>
    %24 = arith.subf %22, %23 : vector<128x1xf32>
    %25 = vector.broadcast %17 : vector<128x1xf32> to vector<128x128xf32>
    %26 = arith.subf %9, %25 : vector<128x128xf32>
    %cst_18 = arith.constant 9.99999997E-7 : f32
    %27 = vector.broadcast %cst_18 : f32 to vector<128x1xf32>
    %28 = arith.addf %24, %27 : vector<128x1xf32>
    %29 = math.rsqrt %28 : vector<128x1xf32>
    %30 = vector.broadcast %29 : vector<128x1xf32> to vector<128x128xf32>
    %31 = arith.mulf %26, %30 : vector<128x128xf32>
    %32 = vector.broadcast %11 : vector<1x128xf32> to vector<128x128xf32>
    %33 = arith.mulf %31, %32 : vector<128x128xf32>
    %34 = vector.broadcast %13 : vector<1x128xf32> to vector<128x128xf32>
    %35 = arith.addf %33, %34 : vector<128x128xf32>
    %c0_19 = arith.constant 0 : index
    %c0_20 = arith.constant 0 : index
    %c0_21 = arith.constant 0 : index
    %36 = vector.load %arg11[%c0_19, %c0_20, %c0_21] : memref<1x1x128xf32, #tpu.memory_space<vmem>>, vector<1x1x128xf32>
    %37 = vector.shape_cast %36 : vector<1x1x128xf32> to vector<1x128xf32>
    %c0_22 = arith.constant 0 : index
    %c0_23 = arith.constant 0 : index
    %c0_24 = arith.constant 0 : index
    %38 = vector.load %arg12[%c0_22, %c0_23, %c0_24] : memref<1x1x128xf32, #tpu.memory_space<vmem>>, vector<1x1x128xf32>
    %39 = vector.shape_cast %38 : vector<1x1x128xf32> to vector<1x128xf32>
    %c0_25 = arith.constant 0 : index
    %c0_26 = arith.constant 0 : index
    %c0_27 = arith.constant 0 : index
    %40 = vector.load %arg13[%c0_25, %c0_26, %c0_27] : memref<1x1x128xf32, #tpu.memory_space<vmem>>, vector<1x1x128xf32>
    %41 = vector.shape_cast %40 : vector<1x1x128xf32> to vector<1x128xf32>
    %c0_28 = arith.constant 0 : index
    %c0_29 = arith.constant 0 : index
    %c0_30 = arith.constant 0 : index
    %42 = vector.load %arg14[%c0_28, %c0_29, %c0_30] : memref<1x128x128xbf16, #tpu.memory_space<vmem>>, vector<1x128x128xbf16>
    %43 = vector.shape_cast %42 : vector<1x128x128xbf16> to vector<128x128xbf16>
    %c0_31 = arith.constant 0 : index
    %c0_32 = arith.constant 0 : index
    %c0_33 = arith.constant 0 : index
    %44 = vector.load %arg15[%c0_31, %c0_32, %c0_33] : memref<1x1x128xf32, #tpu.memory_space<vmem>>, vector<1x1x128xf32>
    %45 = vector.shape_cast %44 : vector<1x1x128xf32> to vector<1x128xf32>
    %c0_34 = arith.constant 0 : index
    %c0_35 = arith.constant 0 : index
    %c0_36 = arith.constant 0 : index
    %46 = vector.load %arg16[%c0_34, %c0_35, %c0_36] : memref<1x128x128xbf16, #tpu.memory_space<vmem>>, vector<1x128x128xbf16>
    %47 = vector.shape_cast %46 : vector<1x128x128xbf16> to vector<128x128xbf16>
    %c0_37 = arith.constant 0 : index
    %c0_38 = arith.constant 0 : index
    %c0_39 = arith.constant 0 : index
    %48 = vector.load %arg17[%c0_37, %c0_38, %c0_39] : memref<1x1x128xf32, #tpu.memory_space<vmem>>, vector<1x1x128xf32>
    %49 = vector.shape_cast %48 : vector<1x1x128xf32> to vector<1x128xf32>
    %c0_40 = arith.constant 0 : index
    %c0_41 = arith.constant 0 : index
    %c0_42 = arith.constant 0 : index
    %50 = vector.load %arg18[%c0_40, %c0_41, %c0_42] : memref<1x1x128xf32, #tpu.memory_space<vmem>>, vector<1x1x128xf32>
    %51 = vector.shape_cast %50 : vector<1x1x128xf32> to vector<1x128xf32>
    %52 = arith.truncf %35 : vector<128x128xf32> to vector<128x128xbf16>
    %cst_43 = arith.constant 0.000000e+00 : f32
    %53 = vector.broadcast %cst_43 : f32 to vector<128x128xf32>
    %c0_i32 = arith.constant 0 : i32
    %c49_i32 = arith.constant 49 : i32
    %54 = arith.addi %c0_i32, %c49_i32 : i32
    %c1_i32 = arith.constant 1 : i32
    %55 = scf.for %arg39 = %c0_i32 to %54 step %c1_i32 iter_args(%arg40 = %53) -> (vector<128x128xf32>)  : i32 {
      %278 = arith.index_cast %arg39 : i32 to index
      %c0_161 = arith.constant 0 : index
      %c0_162 = arith.constant 0 : index
      %279 = vector.load %arg1[%278, %c0_161, %c0_162] : memref<49x128x128xbf16, #tpu.memory_space<vmem>>, vector<1x128x128xbf16>
      %280 = vector.shape_cast %279 : vector<1x128x128xbf16> to vector<128x128xbf16>
      %cst_163 = arith.constant dense<0.000000e+00> : vector<128x128xf32>
      %281 = tpu.matmul %280, %52, %cst_163 {dimension_numbers = #tpu.dot_dimension_numbers<[1], [0], [0], [1], [0, 0, 1, 1], [], []>} : vector<128x128xbf16>, vector<128x128xbf16>, vector<128x128xf32> -> vector<128x128xf32>
      %c0_164 = arith.constant 0 : index
      %282 = arith.index_cast %arg39 : i32 to index
      %c0_165 = arith.constant 0 : index
      %c0_166 = arith.constant 0 : index
      %283 = vector.load %arg10[%c0_164, %282, %c0_165, %c0_166] : memref<1x49x1x128xf32, #tpu.memory_space<vmem>>, vector<1x1x1x128xf32>
      %284 = vector.shape_cast %283 : vector<1x1x1x128xf32> to vector<1x128xf32>
      %285 = vector.broadcast %284 : vector<1x128xf32> to vector<128x128xf32>
      %286 = arith.mulf %281, %285 : vector<128x128xf32>
      %287 = arith.addf %arg40, %286 : vector<128x128xf32>
      scf.yield %287 : vector<128x128xf32>
    }
    %c49_i32_44 = arith.constant 49 : i32
    %56 = vector.broadcast %37 : vector<1x128xf32> to vector<128x128xf32>
    %57 = arith.addf %55, %56 : vector<128x128xf32>
    %cst_45 = arith.constant dense<0.000000e+00> : vector<128xf32>
    %58 = vector.multi_reduction <add>, %57, %cst_45 [1] : vector<128x128xf32> to vector<128xf32>
    %59 = vector.shape_cast %58 : vector<128xf32> to vector<128x1xf32>
    %cst_46 = arith.constant 6.250000e-02 : f32
    %60 = vector.broadcast %cst_46 : f32 to vector<128x1xf32>
    %61 = arith.mulf %59, %60 : vector<128x1xf32>
    %62 = arith.mulf %57, %57 : vector<128x128xf32>
    %cst_47 = arith.constant dense<0.000000e+00> : vector<128xf32>
    %63 = vector.multi_reduction <add>, %62, %cst_47 [1] : vector<128x128xf32> to vector<128xf32>
    %64 = vector.shape_cast %63 : vector<128xf32> to vector<128x1xf32>
    %cst_48 = arith.constant 6.250000e-02 : f32
    %65 = vector.broadcast %cst_48 : f32 to vector<128x1xf32>
    %66 = arith.mulf %64, %65 : vector<128x1xf32>
    %67 = arith.mulf %61, %61 : vector<128x1xf32>
    %68 = arith.subf %66, %67 : vector<128x1xf32>
    %69 = vector.broadcast %61 : vector<128x1xf32> to vector<128x128xf32>
    %70 = arith.subf %57, %69 : vector<128x128xf32>
    %cst_49 = arith.constant 9.99999997E-7 : f32
    %71 = vector.broadcast %cst_49 : f32 to vector<128x1xf32>
    %72 = arith.addf %68, %71 : vector<128x1xf32>
    %73 = math.rsqrt %72 : vector<128x1xf32>
    %74 = vector.broadcast %73 : vector<128x1xf32> to vector<128x128xf32>
    %75 = arith.mulf %70, %74 : vector<128x128xf32>
    %76 = vector.broadcast %39 : vector<1x128xf32> to vector<128x128xf32>
    %77 = arith.mulf %75, %76 : vector<128x128xf32>
    %78 = vector.broadcast %41 : vector<1x128xf32> to vector<128x128xf32>
    %79 = arith.addf %77, %78 : vector<128x128xf32>
    %80 = arith.truncf %79 : vector<128x128xf32> to vector<128x128xbf16>
    %cst_50 = arith.constant dense<0.000000e+00> : vector<128x128xf32>
    %81 = tpu.matmul %80, %43, %cst_50 {dimension_numbers = #tpu.dot_dimension_numbers<[1], [0], [0], [1], [0, 0, 1, 1], [], []>} : vector<128x128xbf16>, vector<128x128xbf16>, vector<128x128xf32> -> vector<128x128xf32>
    %82 = vector.broadcast %45 : vector<1x128xf32> to vector<128x128xf32>
    %83 = arith.addf %81, %82 : vector<128x128xf32>
    %cst_51 = arith.constant 5.000000e-01 : f32
    %84 = vector.broadcast %cst_51 : f32 to vector<128x128xf32>
    %85 = arith.mulf %84, %83 : vector<128x128xf32>
    %cst_52 = arith.constant 4.471500e-02 : f32
    %86 = vector.broadcast %cst_52 : f32 to vector<128x128xf32>
    %87 = arith.mulf %86, %83 : vector<128x128xf32>
    %88 = arith.mulf %87, %83 : vector<128x128xf32>
    %89 = arith.mulf %88, %83 : vector<128x128xf32>
    %90 = arith.addf %83, %89 : vector<128x128xf32>
    %cst_53 = arith.constant 0.797884583 : f32
    %91 = vector.broadcast %cst_53 : f32 to vector<128x128xf32>
    %92 = arith.mulf %91, %90 : vector<128x128xf32>
    %93 = math.tanh %92 : vector<128x128xf32>
    %cst_54 = arith.constant 1.000000e+00 : f32
    %94 = vector.broadcast %cst_54 : f32 to vector<128x128xf32>
    %95 = arith.addf %94, %93 : vector<128x128xf32>
    %96 = arith.mulf %85, %95 : vector<128x128xf32>
    %97 = arith.truncf %96 : vector<128x128xf32> to vector<128x128xbf16>
    %cst_55 = arith.constant dense<0.000000e+00> : vector<128x128xf32>
    %98 = tpu.matmul %97, %47, %cst_55 {dimension_numbers = #tpu.dot_dimension_numbers<[1], [0], [0], [1], [0, 0, 1, 1], [], []>} : vector<128x128xbf16>, vector<128x128xbf16>, vector<128x128xf32> -> vector<128x128xf32>
    %99 = vector.broadcast %49 : vector<1x128xf32> to vector<128x128xf32>
    %100 = arith.addf %98, %99 : vector<128x128xf32>
    %101 = vector.broadcast %51 : vector<1x128xf32> to vector<128x128xf32>
    %102 = arith.mulf %101, %100 : vector<128x128xf32>
    %103 = arith.addf %35, %102 : vector<128x128xf32>
    %c0_56 = arith.constant 0 : index
    %c0_57 = arith.constant 0 : index
    %c0_58 = arith.constant 0 : index
    %104 = vector.load %arg19[%c0_56, %c0_57, %c0_58] : memref<1x1x128xf32, #tpu.memory_space<vmem>>, vector<1x1x128xf32>
    %105 = vector.shape_cast %104 : vector<1x1x128xf32> to vector<1x128xf32>
    %c0_59 = arith.constant 0 : index
    %c0_60 = arith.constant 0 : index
    %c0_61 = arith.constant 0 : index
    %106 = vector.load %arg20[%c0_59, %c0_60, %c0_61] : memref<1x1x128xf32, #tpu.memory_space<vmem>>, vector<1x1x128xf32>
    %107 = vector.shape_cast %106 : vector<1x1x128xf32> to vector<1x128xf32>
    %cst_62 = arith.constant dense<0.000000e+00> : vector<128xf32>
    %108 = vector.multi_reduction <add>, %103, %cst_62 [1] : vector<128x128xf32> to vector<128xf32>
    %109 = vector.shape_cast %108 : vector<128xf32> to vector<128x1xf32>
    %cst_63 = arith.constant 6.250000e-02 : f32
    %110 = vector.broadcast %cst_63 : f32 to vector<128x1xf32>
    %111 = arith.mulf %109, %110 : vector<128x1xf32>
    %112 = arith.mulf %103, %103 : vector<128x128xf32>
    %cst_64 = arith.constant dense<0.000000e+00> : vector<128xf32>
    %113 = vector.multi_reduction <add>, %112, %cst_64 [1] : vector<128x128xf32> to vector<128xf32>
    %114 = vector.shape_cast %113 : vector<128xf32> to vector<128x1xf32>
    %cst_65 = arith.constant 6.250000e-02 : f32
    %115 = vector.broadcast %cst_65 : f32 to vector<128x1xf32>
    %116 = arith.mulf %114, %115 : vector<128x1xf32>
    %117 = arith.mulf %111, %111 : vector<128x1xf32>
    %118 = arith.subf %116, %117 : vector<128x1xf32>
    %119 = vector.broadcast %111 : vector<128x1xf32> to vector<128x128xf32>
    %120 = arith.subf %103, %119 : vector<128x128xf32>
    %cst_66 = arith.constant 9.99999997E-7 : f32
    %121 = vector.broadcast %cst_66 : f32 to vector<128x1xf32>
    %122 = arith.addf %118, %121 : vector<128x1xf32>
    %123 = math.rsqrt %122 : vector<128x1xf32>
    %124 = vector.broadcast %123 : vector<128x1xf32> to vector<128x128xf32>
    %125 = arith.mulf %120, %124 : vector<128x128xf32>
    %126 = vector.broadcast %105 : vector<1x128xf32> to vector<128x128xf32>
    %127 = arith.mulf %125, %126 : vector<128x128xf32>
    %128 = vector.broadcast %107 : vector<1x128xf32> to vector<128x128xf32>
    %129 = arith.addf %127, %128 : vector<128x128xf32>
    %130 = arith.truncf %129 : vector<128x128xf32> to vector<128x128xbf16>
    %c0_67 = arith.constant 0 : index
    %c0_68 = arith.constant 0 : index
    %c0_69 = arith.constant 0 : index
    %131 = vector.load %arg3[%c0_67, %c0_68, %c0_69] : memref<4x32x128xbf16, #tpu.memory_space<vmem>>, vector<1x32x128xbf16>
    %132 = vector.shape_cast %131 : vector<1x32x128xbf16> to vector<32x128xbf16>
    %cst_70 = arith.constant dense<0.000000e+00> : vector<32x128xf32>
    %133 = tpu.matmul %132, %130, %cst_70 {dimension_numbers = #tpu.dot_dimension_numbers<[1], [0], [0], [1], [0, 0, 1, 1], [], []>} : vector<32x128xbf16>, vector<128x128xbf16>, vector<32x128xf32> -> vector<32x128xf32>
    %c1 = arith.constant 1 : index
    %c0_71 = arith.constant 0 : index
    %c0_72 = arith.constant 0 : index
    %134 = vector.load %arg3[%c1, %c0_71, %c0_72] : memref<4x32x128xbf16, #tpu.memory_space<vmem>>, vector<1x32x128xbf16>
    %135 = vector.shape_cast %134 : vector<1x32x128xbf16> to vector<32x128xbf16>
    %cst_73 = arith.constant dense<0.000000e+00> : vector<32x128xf32>
    %136 = tpu.matmul %135, %130, %cst_73 {dimension_numbers = #tpu.dot_dimension_numbers<[1], [0], [0], [1], [0, 0, 1, 1], [], []>} : vector<32x128xbf16>, vector<128x128xbf16>, vector<32x128xf32> -> vector<32x128xf32>
    %c2 = arith.constant 2 : index
    %c0_74 = arith.constant 0 : index
    %c0_75 = arith.constant 0 : index
    %137 = vector.load %arg3[%c2, %c0_74, %c0_75] : memref<4x32x128xbf16, #tpu.memory_space<vmem>>, vector<1x32x128xbf16>
    %138 = vector.shape_cast %137 : vector<1x32x128xbf16> to vector<32x128xbf16>
    %cst_76 = arith.constant dense<0.000000e+00> : vector<32x128xf32>
    %139 = tpu.matmul %138, %130, %cst_76 {dimension_numbers = #tpu.dot_dimension_numbers<[1], [0], [0], [1], [0, 0, 1, 1], [], []>} : vector<32x128xbf16>, vector<128x128xbf16>, vector<32x128xf32> -> vector<32x128xf32>
    %c3 = arith.constant 3 : index
    %c0_77 = arith.constant 0 : index
    %c0_78 = arith.constant 0 : index
    %140 = vector.load %arg3[%c3, %c0_77, %c0_78] : memref<4x32x128xbf16, #tpu.memory_space<vmem>>, vector<1x32x128xbf16>
    %141 = vector.shape_cast %140 : vector<1x32x128xbf16> to vector<32x128xbf16>
    %cst_79 = arith.constant dense<0.000000e+00> : vector<32x128xf32>
    %142 = tpu.matmul %141, %130, %cst_79 {dimension_numbers = #tpu.dot_dimension_numbers<[1], [0], [0], [1], [0, 0, 1, 1], [], []>} : vector<32x128xbf16>, vector<128x128xbf16>, vector<32x128xf32> -> vector<32x128xf32>
    %143 = tpu.concatenate %133, %136, %139, %142 in 1 : vector<32x128xf32>, vector<32x128xf32>, vector<32x128xf32>, vector<32x128xf32> -> vector<32x512xf32>
    %c0_80 = arith.constant 0 : index
    %c0_81 = arith.constant 0 : index
    %c0_82 = arith.constant 0 : index
    %144 = vector.load %arg21[%c0_80, %c0_81, %c0_82] : memref<1x512x128xbf16, #tpu.memory_space<vmem>>, vector<1x512x128xbf16>
    %145 = vector.shape_cast %144 : vector<1x512x128xbf16> to vector<512x128xbf16>
    %146 = arith.truncf %143 : vector<32x512xf32> to vector<32x512xbf16>
    %cst_83 = arith.constant dense<0.000000e+00> : vector<32x128xf32>
    %147 = tpu.matmul %146, %145, %cst_83 {dimension_numbers = #tpu.dot_dimension_numbers<[1], [0], [0], [1], [0, 0, 1, 1], [], []>} : vector<32x512xbf16>, vector<512x128xbf16>, vector<32x128xf32> -> vector<32x128xf32>
    %c0_84 = arith.constant 0 : index
    %c0_85 = arith.constant 0 : index
    %c0_86 = arith.constant 0 : index
    %148 = vector.load %arg22[%c0_84, %c0_85, %c0_86] : memref<1x1x128xf32, #tpu.memory_space<vmem>>, vector<1x1x128xf32>
    %149 = vector.shape_cast %148 : vector<1x1x128xf32> to vector<1x128xf32>
    %150 = vector.broadcast %149 : vector<1x128xf32> to vector<32x128xf32>
    %151 = arith.addf %147, %150 : vector<32x128xf32>
    %c0_87 = arith.constant 0 : index
    %c0_88 = arith.constant 0 : index
    %c0_89 = arith.constant 0 : index
    %152 = vector.load %arg24[%c0_87, %c0_88, %c0_89] : memref<1x1x128xf32, #tpu.memory_space<vmem>>, vector<1x1x128xf32>
    %153 = vector.shape_cast %152 : vector<1x1x128xf32> to vector<1x128xf32>
    %c0_90 = arith.constant 0 : index
    %c0_91 = arith.constant 0 : index
    %c0_92 = arith.constant 0 : index
    %154 = vector.load %arg25[%c0_90, %c0_91, %c0_92] : memref<1x1x128xf32, #tpu.memory_space<vmem>>, vector<1x1x128xf32>
    %155 = vector.shape_cast %154 : vector<1x1x128xf32> to vector<1x128xf32>
    %c0_93 = arith.constant 0 : index
    %c0_94 = arith.constant 0 : index
    %c0_95 = arith.constant 0 : index
    %156 = vector.load %arg26[%c0_93, %c0_94, %c0_95] : memref<1x1x128xf32, #tpu.memory_space<vmem>>, vector<1x1x128xf32>
    %157 = vector.shape_cast %156 : vector<1x1x128xf32> to vector<1x128xf32>
    %c0_96 = arith.constant 0 : index
    %c0_97 = arith.constant 0 : index
    %c0_98 = arith.constant 0 : index
    %158 = vector.load %arg27[%c0_96, %c0_97, %c0_98] : memref<1x128x128xbf16, #tpu.memory_space<vmem>>, vector<1x128x128xbf16>
    %159 = vector.shape_cast %158 : vector<1x128x128xbf16> to vector<128x128xbf16>
    %c0_99 = arith.constant 0 : index
    %c0_100 = arith.constant 0 : index
    %c0_101 = arith.constant 0 : index
    %160 = vector.load %arg28[%c0_99, %c0_100, %c0_101] : memref<1x1x128xf32, #tpu.memory_space<vmem>>, vector<1x1x128xf32>
    %161 = vector.shape_cast %160 : vector<1x1x128xf32> to vector<1x128xf32>
    %c0_102 = arith.constant 0 : index
    %c0_103 = arith.constant 0 : index
    %c0_104 = arith.constant 0 : index
    %162 = vector.load %arg29[%c0_102, %c0_103, %c0_104] : memref<1x128x128xbf16, #tpu.memory_space<vmem>>, vector<1x128x128xbf16>
    %163 = vector.shape_cast %162 : vector<1x128x128xbf16> to vector<128x128xbf16>
    %c0_105 = arith.constant 0 : index
    %c0_106 = arith.constant 0 : index
    %c0_107 = arith.constant 0 : index
    %164 = vector.load %arg30[%c0_105, %c0_106, %c0_107] : memref<1x1x128xf32, #tpu.memory_space<vmem>>, vector<1x1x128xf32>
    %165 = vector.shape_cast %164 : vector<1x1x128xf32> to vector<1x128xf32>
    %c0_108 = arith.constant 0 : index
    %c0_109 = arith.constant 0 : index
    %c0_110 = arith.constant 0 : index
    %166 = vector.load %arg31[%c0_108, %c0_109, %c0_110] : memref<1x1x128xf32, #tpu.memory_space<vmem>>, vector<1x1x128xf32>
    %167 = vector.shape_cast %166 : vector<1x1x128xf32> to vector<1x128xf32>
    %168 = arith.truncf %151 : vector<32x128xf32> to vector<32x128xbf16>
    %cst_111 = arith.constant 0.000000e+00 : f32
    %169 = vector.broadcast %cst_111 : f32 to vector<32x128xf32>
    %c0_i32_112 = arith.constant 0 : i32
    %c49_i32_113 = arith.constant 49 : i32
    %170 = arith.addi %c0_i32_112, %c49_i32_113 : i32
    %c1_i32_114 = arith.constant 1 : i32
    %171 = scf.for %arg39 = %c0_i32_112 to %170 step %c1_i32_114 iter_args(%arg40 = %169) -> (vector<32x128xf32>)  : i32 {
      %278 = arith.index_cast %arg39 : i32 to index
      %c0_161 = arith.constant 0 : index
      %c0_162 = arith.constant 0 : index
      %279 = vector.load %arg2[%278, %c0_161, %c0_162] : memref<49x32x32xbf16, #tpu.memory_space<vmem>>, vector<1x32x32xbf16>
      %280 = vector.shape_cast %279 : vector<1x32x32xbf16> to vector<32x32xbf16>
      %cst_163 = arith.constant dense<0.000000e+00> : vector<32x128xf32>
      %281 = tpu.matmul %280, %168, %cst_163 {dimension_numbers = #tpu.dot_dimension_numbers<[1], [0], [0], [1], [0, 0, 1, 1], [], []>} : vector<32x32xbf16>, vector<32x128xbf16>, vector<32x128xf32> -> vector<32x128xf32>
      %c0_164 = arith.constant 0 : index
      %282 = arith.index_cast %arg39 : i32 to index
      %c0_165 = arith.constant 0 : index
      %c0_166 = arith.constant 0 : index
      %283 = vector.load %arg23[%c0_164, %282, %c0_165, %c0_166] : memref<1x49x1x128xf32, #tpu.memory_space<vmem>>, vector<1x1x1x128xf32>
      %284 = vector.shape_cast %283 : vector<1x1x1x128xf32> to vector<1x128xf32>
      %285 = vector.broadcast %284 : vector<1x128xf32> to vector<32x128xf32>
      %286 = arith.mulf %281, %285 : vector<32x128xf32>
      %287 = arith.addf %arg40, %286 : vector<32x128xf32>
      scf.yield %287 : vector<32x128xf32>
    }
    %c49_i32_115 = arith.constant 49 : i32
    %172 = vector.broadcast %153 : vector<1x128xf32> to vector<32x128xf32>
    %173 = arith.addf %171, %172 : vector<32x128xf32>
    %cst_116 = arith.constant dense<0.000000e+00> : vector<32xf32>
    %174 = vector.multi_reduction <add>, %173, %cst_116 [1] : vector<32x128xf32> to vector<32xf32>
    %175 = vector.shape_cast %174 : vector<32xf32> to vector<32x1xf32>
    %cst_117 = arith.constant 3.125000e-02 : f32
    %176 = vector.broadcast %cst_117 : f32 to vector<32x1xf32>
    %177 = arith.mulf %175, %176 : vector<32x1xf32>
    %178 = arith.mulf %173, %173 : vector<32x128xf32>
    %cst_118 = arith.constant dense<0.000000e+00> : vector<32xf32>
    %179 = vector.multi_reduction <add>, %178, %cst_118 [1] : vector<32x128xf32> to vector<32xf32>
    %180 = vector.shape_cast %179 : vector<32xf32> to vector<32x1xf32>
    %cst_119 = arith.constant 3.125000e-02 : f32
    %181 = vector.broadcast %cst_119 : f32 to vector<32x1xf32>
    %182 = arith.mulf %180, %181 : vector<32x1xf32>
    %183 = arith.mulf %177, %177 : vector<32x1xf32>
    %184 = arith.subf %182, %183 : vector<32x1xf32>
    %185 = vector.broadcast %177 : vector<32x1xf32> to vector<32x128xf32>
    %186 = arith.subf %173, %185 : vector<32x128xf32>
    %cst_120 = arith.constant 9.99999997E-7 : f32
    %187 = vector.broadcast %cst_120 : f32 to vector<32x1xf32>
    %188 = arith.addf %184, %187 : vector<32x1xf32>
    %189 = math.rsqrt %188 : vector<32x1xf32>
    %190 = vector.broadcast %189 : vector<32x1xf32> to vector<32x128xf32>
    %191 = arith.mulf %186, %190 : vector<32x128xf32>
    %192 = vector.broadcast %155 : vector<1x128xf32> to vector<32x128xf32>
    %193 = arith.mulf %191, %192 : vector<32x128xf32>
    %194 = vector.broadcast %157 : vector<1x128xf32> to vector<32x128xf32>
    %195 = arith.addf %193, %194 : vector<32x128xf32>
    %196 = arith.truncf %195 : vector<32x128xf32> to vector<32x128xbf16>
    %cst_121 = arith.constant dense<0.000000e+00> : vector<32x128xf32>
    %197 = tpu.matmul %196, %159, %cst_121 {dimension_numbers = #tpu.dot_dimension_numbers<[1], [0], [0], [1], [0, 0, 1, 1], [], []>} : vector<32x128xbf16>, vector<128x128xbf16>, vector<32x128xf32> -> vector<32x128xf32>
    %198 = vector.broadcast %161 : vector<1x128xf32> to vector<32x128xf32>
    %199 = arith.addf %197, %198 : vector<32x128xf32>
    %cst_122 = arith.constant 5.000000e-01 : f32
    %200 = vector.broadcast %cst_122 : f32 to vector<32x128xf32>
    %201 = arith.mulf %200, %199 : vector<32x128xf32>
    %cst_123 = arith.constant 4.471500e-02 : f32
    %202 = vector.broadcast %cst_123 : f32 to vector<32x128xf32>
    %203 = arith.mulf %202, %199 : vector<32x128xf32>
    %204 = arith.mulf %203, %199 : vector<32x128xf32>
    %205 = arith.mulf %204, %199 : vector<32x128xf32>
    %206 = arith.addf %199, %205 : vector<32x128xf32>
    %cst_124 = arith.constant 0.797884583 : f32
    %207 = vector.broadcast %cst_124 : f32 to vector<32x128xf32>
    %208 = arith.mulf %207, %206 : vector<32x128xf32>
    %209 = math.tanh %208 : vector<32x128xf32>
    %cst_125 = arith.constant 1.000000e+00 : f32
    %210 = vector.broadcast %cst_125 : f32 to vector<32x128xf32>
    %211 = arith.addf %210, %209 : vector<32x128xf32>
    %212 = arith.mulf %201, %211 : vector<32x128xf32>
    %213 = arith.truncf %212 : vector<32x128xf32> to vector<32x128xbf16>
    %cst_126 = arith.constant dense<0.000000e+00> : vector<32x128xf32>
    %214 = tpu.matmul %213, %163, %cst_126 {dimension_numbers = #tpu.dot_dimension_numbers<[1], [0], [0], [1], [0, 0, 1, 1], [], []>} : vector<32x128xbf16>, vector<128x128xbf16>, vector<32x128xf32> -> vector<32x128xf32>
    %215 = vector.broadcast %165 : vector<1x128xf32> to vector<32x128xf32>
    %216 = arith.addf %214, %215 : vector<32x128xf32>
    %217 = vector.broadcast %167 : vector<1x128xf32> to vector<32x128xf32>
    %218 = arith.mulf %217, %216 : vector<32x128xf32>
    %219 = arith.addf %151, %218 : vector<32x128xf32>
    %c0_127 = arith.constant 0 : index
    %c0_128 = arith.constant 0 : index
    %220 = vector.load %arg4[%c0_127, %c0_128] : memref<2x32xbf16, #tpu.memory_space<vmem>>, vector<2x32xbf16>
    %221 = arith.truncf %219 : vector<32x128xf32> to vector<32x128xbf16>
    %cst_129 = arith.constant dense<0.000000e+00> : vector<2x128xf32>
    %222 = tpu.matmul %220, %221, %cst_129 {dimension_numbers = #tpu.dot_dimension_numbers<[1], [0], [0], [1], [0, 0, 1, 1], [], []>} : vector<2x32xbf16>, vector<32x128xbf16>, vector<2x128xf32> -> vector<2x128xf32>
    %c0_130 = arith.constant 0 : index
    %c0_131 = arith.constant 0 : index
    %c0_132 = arith.constant 0 : index
    %223 = vector.load %arg32[%c0_130, %c0_131, %c0_132] : memref<1x1x128xf32, #tpu.memory_space<vmem>>, vector<1x1x128xf32>
    %224 = vector.shape_cast %223 : vector<1x1x128xf32> to vector<1x128xf32>
    %c0_133 = arith.constant 0 : index
    %c0_134 = arith.constant 0 : index
    %c0_135 = arith.constant 0 : index
    %225 = vector.load %arg33[%c0_133, %c0_134, %c0_135] : memref<1x1x128xf32, #tpu.memory_space<vmem>>, vector<1x1x128xf32>
    %226 = vector.shape_cast %225 : vector<1x1x128xf32> to vector<1x128xf32>
    %cst_136 = arith.constant dense<0.000000e+00> : vector<2xf32>
    %227 = vector.multi_reduction <add>, %222, %cst_136 [1] : vector<2x128xf32> to vector<2xf32>
    %228 = vector.shape_cast %227 : vector<2xf32> to vector<2x1xf32>
    %cst_137 = arith.constant 3.125000e-02 : f32
    %229 = vector.broadcast %cst_137 : f32 to vector<2x1xf32>
    %230 = arith.mulf %228, %229 : vector<2x1xf32>
    %231 = arith.mulf %222, %222 : vector<2x128xf32>
    %cst_138 = arith.constant dense<0.000000e+00> : vector<2xf32>
    %232 = vector.multi_reduction <add>, %231, %cst_138 [1] : vector<2x128xf32> to vector<2xf32>
    %233 = vector.shape_cast %232 : vector<2xf32> to vector<2x1xf32>
    %cst_139 = arith.constant 3.125000e-02 : f32
    %234 = vector.broadcast %cst_139 : f32 to vector<2x1xf32>
    %235 = arith.mulf %233, %234 : vector<2x1xf32>
    %236 = arith.mulf %230, %230 : vector<2x1xf32>
    %237 = arith.subf %235, %236 : vector<2x1xf32>
    %238 = vector.broadcast %230 : vector<2x1xf32> to vector<2x128xf32>
    %239 = arith.subf %222, %238 : vector<2x128xf32>
    %cst_140 = arith.constant 9.99999997E-7 : f32
    %240 = vector.broadcast %cst_140 : f32 to vector<2x1xf32>
    %241 = arith.addf %237, %240 : vector<2x1xf32>
    %242 = math.rsqrt %241 : vector<2x1xf32>
    %243 = vector.broadcast %242 : vector<2x1xf32> to vector<2x128xf32>
    %244 = arith.mulf %239, %243 : vector<2x128xf32>
    %245 = vector.broadcast %224 : vector<1x128xf32> to vector<2x128xf32>
    %246 = arith.mulf %244, %245 : vector<2x128xf32>
    %247 = vector.broadcast %226 : vector<1x128xf32> to vector<2x128xf32>
    %248 = arith.addf %246, %247 : vector<2x128xf32>
    %c0_141 = arith.constant 0 : index
    %c0_142 = arith.constant 0 : index
    %c0_143 = arith.constant 0 : index
    %249 = vector.load %arg34[%c0_141, %c0_142, %c0_143] : memref<1x128x128xbf16, #tpu.memory_space<vmem>>, vector<1x128x128xbf16>
    %250 = vector.shape_cast %249 : vector<1x128x128xbf16> to vector<128x128xbf16>
    %251 = arith.truncf %248 : vector<2x128xf32> to vector<2x128xbf16>
    %cst_144 = arith.constant dense<0.000000e+00> : vector<2x128xf32>
    %252 = tpu.matmul %251, %250, %cst_144 {dimension_numbers = #tpu.dot_dimension_numbers<[1], [0], [0], [1], [0, 0, 1, 1], [], []>} : vector<2x128xbf16>, vector<128x128xbf16>, vector<2x128xf32> -> vector<2x128xf32>
    %c0_145 = arith.constant 0 : index
    %c0_146 = arith.constant 0 : index
    %c0_147 = arith.constant 0 : index
    %253 = vector.load %arg35[%c0_145, %c0_146, %c0_147] : memref<1x1x128xf32, #tpu.memory_space<vmem>>, vector<1x1x128xf32>
    %254 = vector.shape_cast %253 : vector<1x1x128xf32> to vector<1x128xf32>
    %255 = vector.broadcast %254 : vector<1x128xf32> to vector<2x128xf32>
    %256 = arith.addf %252, %255 : vector<2x128xf32>
    %cst_148 = arith.constant 0.000000e+00 : f32
    %257 = vector.broadcast %cst_148 : f32 to vector<2x128xf32>
    %258 = arith.maximumf %256, %257 : vector<2x128xf32>
    %c0_149 = arith.constant 0 : index
    %c0_150 = arith.constant 0 : index
    %c0_151 = arith.constant 0 : index
    %259 = vector.load %arg36[%c0_149, %c0_150, %c0_151] : memref<1x128x128xbf16, #tpu.memory_space<vmem>>, vector<1x128x128xbf16>
    %260 = vector.shape_cast %259 : vector<1x128x128xbf16> to vector<128x128xbf16>
    %261 = arith.truncf %258 : vector<2x128xf32> to vector<2x128xbf16>
    %cst_152 = arith.constant dense<0.000000e+00> : vector<2x128xf32>
    %262 = tpu.matmul %261, %260, %cst_152 {dimension_numbers = #tpu.dot_dimension_numbers<[1], [0], [0], [1], [0, 0, 1, 1], [], []>} : vector<2x128xbf16>, vector<128x128xbf16>, vector<2x128xf32> -> vector<2x128xf32>
    %c0_153 = arith.constant 0 : index
    %c0_154 = arith.constant 0 : index
    %c0_155 = arith.constant 0 : index
    %263 = vector.load %arg37[%c0_153, %c0_154, %c0_155] : memref<1x1x128xf32, #tpu.memory_space<vmem>>, vector<1x1x128xf32>
    %264 = vector.shape_cast %263 : vector<1x1x128xf32> to vector<1x128xf32>
    %265 = vector.broadcast %264 : vector<1x128xf32> to vector<2x128xf32>
    %266 = arith.addf %262, %265 : vector<2x128xf32>
    %267 = arith.mulf %266, %266 : vector<2x128xf32>
    %cst_156 = arith.constant dense<0.000000e+00> : vector<2xf32>
    %268 = vector.multi_reduction <add>, %267, %cst_156 [1] : vector<2x128xf32> to vector<2xf32>
    %269 = vector.shape_cast %268 : vector<2xf32> to vector<2x1xf32>
    %270 = math.sqrt %269 : vector<2x1xf32>
    %cst_157 = arith.constant 9.99999996E-13 : f32
    %271 = vector.broadcast %cst_157 : f32 to vector<2x1xf32>
    %272 = arith.maximumf %270, %271 : vector<2x1xf32>
    %273 = vector.broadcast %272 : vector<2x1xf32> to vector<2x128xf32>
    %274 = arith.divf %266, %273 : vector<2x128xf32>
    %c0_158 = arith.constant 0 : index
    %c0_159 = arith.constant 0 : index
    %c0_160 = arith.constant 0 : index
    %275 = vector.load %arg38[%c0_158, %c0_159, %c0_160] : memref<1x2x128xf32, #tpu.memory_space<vmem>>, vector<1x2x128xf32>
    %276 = vector.shape_cast %275 : vector<1x2x128xf32> to vector<2x128xf32>
    %277 = vector.shape_cast %274 : vector<2x128xf32> to vector<1x2x128xf32>
    tpu.vector_store %arg38[%c0_158, %c0_159, %c0_160], %277 {strides = array<i32>} : memref<1x2x128xf32, #tpu.memory_space<vmem>>, vector<1x2x128xf32>,
    return
  }
  func.func @transform_0(%arg0: i32) -> (i32, i32, i32) {
    %c0_i32 = arith.constant 0 : i32
    %c0_i32_0 = arith.constant 0 : i32
    %c0_i32_1 = arith.constant 0 : i32
    %c0_i32_2 = arith.constant 0 : i32
    return %c0_i32, %c0_i32_0, %c0_i32_1 : i32, i32, i32
  }
  func.func @transform_1(%arg0: i32) -> (i32, i32, i32) {
    %c0_i32 = arith.constant 0 : i32
    %c0_i32_0 = arith.constant 0 : i32
    %c0_i32_1 = arith.constant 0 : i32
    %c0_i32_2 = arith.constant 0 : i32
    return %c0_i32, %c0_i32_0, %c0_i32_1 : i32, i32, i32
  }
  func.func @transform_2(%arg0: i32) -> (i32, i32, i32) {
    %c0_i32 = arith.constant 0 : i32
    %c0_i32_0 = arith.constant 0 : i32
    %c0_i32_1 = arith.constant 0 : i32
    %c0_i32_2 = arith.constant 0 : i32
    return %c0_i32, %c0_i32_0, %c0_i32_1 : i32, i32, i32
  }
  func.func @transform_3(%arg0: i32) -> (i32, i32) {
    %c0_i32 = arith.constant 0 : i32
    %c0_i32_0 = arith.constant 0 : i32
    %c0_i32_1 = arith.constant 0 : i32
    return %c0_i32, %c0_i32_0 : i32, i32
  }
  func.func @transform_4(%arg0: i32) -> (i32, i32, i32) {
    %c0_i32 = arith.constant 0 : i32
    %c0_i32_0 = arith.constant 0 : i32
    %c0_i32_1 = arith.constant 0 : i32
    return %arg0, %c0_i32, %c0_i32_0 : i32, i32, i32
  }
  func.func @transform_5(%arg0: i32) -> (i32, i32, i32) {
    %c0_i32 = arith.constant 0 : i32
    %c0_i32_0 = arith.constant 0 : i32
    %c0_i32_1 = arith.constant 0 : i32
    return %arg0, %c0_i32, %c0_i32_0 : i32, i32, i32
  }
  func.func @transform_6(%arg0: i32) -> (i32, i32, i32) {
    %c0_i32 = arith.constant 0 : i32
    %c0_i32_0 = arith.constant 0 : i32
    %c0_i32_1 = arith.constant 0 : i32
    return %arg0, %c0_i32, %c0_i32_0 : i32, i32, i32
  }
  func.func @transform_7(%arg0: i32) -> (i32, i32, i32) {
    %c0_i32 = arith.constant 0 : i32
    %c0_i32_0 = arith.constant 0 : i32
    %c0_i32_1 = arith.constant 0 : i32
    return %arg0, %c0_i32, %c0_i32_0 : i32, i32, i32
  }
  func.func @transform_8(%arg0: i32) -> (i32, i32, i32) {
    %c0_i32 = arith.constant 0 : i32
    %c0_i32_0 = arith.constant 0 : i32
    %c0_i32_1 = arith.constant 0 : i32
    return %arg0, %c0_i32, %c0_i32_0 : i32, i32, i32
  }
  func.func @transform_9(%arg0: i32) -> (i32, i32, i32, i32) {
    %c0_i32 = arith.constant 0 : i32
    %c0_i32_0 = arith.constant 0 : i32
    %c0_i32_1 = arith.constant 0 : i32
    %c0_i32_2 = arith.constant 0 : i32
    return %arg0, %c0_i32, %c0_i32_0, %c0_i32_1 : i32, i32, i32, i32
  }
  func.func @transform_10(%arg0: i32) -> (i32, i32, i32) {
    %c0_i32 = arith.constant 0 : i32
    %c0_i32_0 = arith.constant 0 : i32
    %c0_i32_1 = arith.constant 0 : i32
    return %arg0, %c0_i32, %c0_i32_0 : i32, i32, i32
  }
  func.func @transform_11(%arg0: i32) -> (i32, i32, i32) {
    %c0_i32 = arith.constant 0 : i32
    %c0_i32_0 = arith.constant 0 : i32
    %c0_i32_1 = arith.constant 0 : i32
    return %arg0, %c0_i32, %c0_i32_0 : i32, i32, i32
  }
  func.func @transform_12(%arg0: i32) -> (i32, i32, i32) {
    %c0_i32 = arith.constant 0 : i32
    %c0_i32_0 = arith.constant 0 : i32
    %c0_i32_1 = arith.constant 0 : i32
    return %arg0, %c0_i32, %c0_i32_0 : i32, i32, i32
  }
  func.func @transform_13(%arg0: i32) -> (i32, i32, i32) {
    %c0_i32 = arith.constant 0 : i32
    %c0_i32_0 = arith.constant 0 : i32
    %c0_i32_1 = arith.constant 0 : i32
    return %arg0, %c0_i32, %c0_i32_0 : i32, i32, i32
  }
  func.func @transform_14(%arg0: i32) -> (i32, i32, i32) {
    %c0_i32 = arith.constant 0 : i32
    %c0_i32_0 = arith.constant 0 : i32
    %c0_i32_1 = arith.constant 0 : i32
    return %arg0, %c0_i32, %c0_i32_0 : i32, i32, i32
  }
  func.func @transform_15(%arg0: i32) -> (i32, i32, i32) {
    %c0_i32 = arith.constant 0 : i32
    %c0_i32_0 = arith.constant 0 : i32
    %c0_i32_1 = arith.constant 0 : i32
    return %arg0, %c0_i32, %c0_i32_0 : i32, i32, i32
  }
  func.func @transform_16(%arg0: i32) -> (i32, i32, i32) {
    %c0_i32 = arith.constant 0 : i32
    %c0_i32_0 = arith.constant 0 : i32
    %c0_i32_1 = arith.constant 0 : i32
    return %arg0, %c0_i32, %c0_i32_0 : i32, i32, i32
  }
  func.func @transform_17(%arg0: i32) -> (i32, i32, i32) {
    %c0_i32 = arith.constant 0 : i32
    %c0_i32_0 = arith.constant 0 : i32
    %c0_i32_1 = arith.constant 0 : i32
    return %arg0, %c0_i32, %c0_i32_0 : i32, i32, i32
  }
  func.func @transform_18(%arg0: i32) -> (i32, i32, i32) {
    %c0_i32 = arith.constant 0 : i32
    %c0_i32_0 = arith.constant 0 : i32
    %c0_i32_1 = arith.constant 0 : i32
    return %arg0, %c0_i32, %c0_i32_0 : i32, i32, i32
  }
  func.func @transform_19(%arg0: i32) -> (i32, i32, i32) {
    %c0_i32 = arith.constant 0 : i32
    %c0_i32_0 = arith.constant 0 : i32
    %c0_i32_1 = arith.constant 0 : i32
    return %arg0, %c0_i32, %c0_i32_0 : i32, i32, i32
  }
  func.func @transform_20(%arg0: i32) -> (i32, i32, i32) {
    %c0_i32 = arith.constant 0 : i32
    %c0_i32_0 = arith.constant 0 : i32
    %c0_i32_1 = arith.constant 0 : i32
    return %arg0, %c0_i32, %c0_i32_0 : i32, i32, i32
  }
  func.func @transform_21(%arg0: i32) -> (i32, i32, i32) {
    %c0_i32 = arith.constant 0 : i32
    %c0_i32_0 = arith.constant 0 : i32
    %c0_i32_1 = arith.constant 0 : i32
    return %arg0, %c0_i32, %c0_i32_0 : i32, i32, i32
  }
  func.func @transform_22(%arg0: i32) -> (i32, i32, i32, i32) {
    %c0_i32 = arith.constant 0 : i32
    %c0_i32_0 = arith.constant 0 : i32
    %c0_i32_1 = arith.constant 0 : i32
    %c0_i32_2 = arith.constant 0 : i32
    return %arg0, %c0_i32, %c0_i32_0, %c0_i32_1 : i32, i32, i32, i32
  }
  func.func @transform_23(%arg0: i32) -> (i32, i32, i32) {
    %c0_i32 = arith.constant 0 : i32
    %c0_i32_0 = arith.constant 0 : i32
    %c0_i32_1 = arith.constant 0 : i32
    return %arg0, %c0_i32, %c0_i32_0 : i32, i32, i32
  }
  func.func @transform_24(%arg0: i32) -> (i32, i32, i32) {
    %c0_i32 = arith.constant 0 : i32
    %c0_i32_0 = arith.constant 0 : i32
    %c0_i32_1 = arith.constant 0 : i32
    return %arg0, %c0_i32, %c0_i32_0 : i32, i32, i32
  }
  func.func @transform_25(%arg0: i32) -> (i32, i32, i32) {
    %c0_i32 = arith.constant 0 : i32
    %c0_i32_0 = arith.constant 0 : i32
    %c0_i32_1 = arith.constant 0 : i32
    return %arg0, %c0_i32, %c0_i32_0 : i32, i32, i32
  }
  func.func @transform_26(%arg0: i32) -> (i32, i32, i32) {
    %c0_i32 = arith.constant 0 : i32
    %c0_i32_0 = arith.constant 0 : i32
    %c0_i32_1 = arith.constant 0 : i32
    return %arg0, %c0_i32, %c0_i32_0 : i32, i32, i32
  }
  func.func @transform_27(%arg0: i32) -> (i32, i32, i32) {
    %c0_i32 = arith.constant 0 : i32
    %c0_i32_0 = arith.constant 0 : i32
    %c0_i32_1 = arith.constant 0 : i32
    return %arg0, %c0_i32, %c0_i32_0 : i32, i32, i32
  }
  func.func @transform_28(%arg0: i32) -> (i32, i32, i32) {
    %c0_i32 = arith.constant 0 : i32
    %c0_i32_0 = arith.constant 0 : i32
    %c0_i32_1 = arith.constant 0 : i32
    return %arg0, %c0_i32, %c0_i32_0 : i32, i32, i32
  }
  func.func @transform_29(%arg0: i32) -> (i32, i32, i32) {
    %c0_i32 = arith.constant 0 : i32
    %c0_i32_0 = arith.constant 0 : i32
    %c0_i32_1 = arith.constant 0 : i32
    return %arg0, %c0_i32, %c0_i32_0 : i32, i32, i32
  }
  func.func @transform_30(%arg0: i32) -> (i32, i32, i32) {
    %c0_i32 = arith.constant 0 : i32
    %c0_i32_0 = arith.constant 0 : i32
    %c0_i32_1 = arith.constant 0 : i32
    return %arg0, %c0_i32, %c0_i32_0 : i32, i32, i32
  }
  func.func @transform_31(%arg0: i32) -> (i32, i32, i32) {
    %c0_i32 = arith.constant 0 : i32
    %c0_i32_0 = arith.constant 0 : i32
    %c0_i32_1 = arith.constant 0 : i32
    return %arg0, %c0_i32, %c0_i32_0 : i32, i32, i32
  }
  func.func @transform_32(%arg0: i32) -> (i32, i32, i32) {
    %c0_i32 = arith.constant 0 : i32
    %c0_i32_0 = arith.constant 0 : i32
    %c0_i32_1 = arith.constant 0 : i32
    return %arg0, %c0_i32, %c0_i32_0 : i32, i32, i32
  }
  func.func @transform_33(%arg0: i32) -> (i32, i32, i32) {
    %c0_i32 = arith.constant 0 : i32
    %c0_i32_0 = arith.constant 0 : i32
    %c0_i32_1 = arith.constant 0 : i32
    return %arg0, %c0_i32, %c0_i32_0 : i32, i32, i32
  }
  func.func @transform_34(%arg0: i32) -> (i32, i32, i32) {
    %c0_i32 = arith.constant 0 : i32
    %c0_i32_0 = arith.constant 0 : i32
    %c0_i32_1 = arith.constant 0 : i32
    return %arg0, %c0_i32, %c0_i32_0 : i32, i32, i32
  }
  func.func @transform_35(%arg0: i32) -> (i32, i32, i32) {
    %c0_i32 = arith.constant 0 : i32
    %c0_i32_0 = arith.constant 0 : i32
    %c0_i32_1 = arith.constant 0 : i32
    return %arg0, %c0_i32, %c0_i32_0 : i32, i32, i32
  }
  func.func @transform_36(%arg0: i32) -> (i32, i32, i32) {
    %c0_i32 = arith.constant 0 : i32
    %c0_i32_0 = arith.constant 0 : i32
    %c0_i32_1 = arith.constant 0 : i32
    return %arg0, %c0_i32, %c0_i32_0 : i32, i32, i32
  }
  func.func @transform_37(%arg0: i32) -> (i32, i32, i32) {
    %c0_i32 = arith.constant 0 : i32
    %c0_i32_0 = arith.constant 0 : i32
    %c0_i32_1 = arith.constant 0 : i32
    return %arg0, %c0_i32, %c0_i32_0 : i32, i32, i32
  }
}

</mosaic_0001>

<llo_original>
// kernel: moco_forward.1
$region0: #{moco_forward.1}
  #allocation0 [shape = 'u32[]', space=smem, size = 0x4, offset = 0x4, fixed_abs, tag = 'smem constant byte address 0x4 - core index']
  #allocation1 [shape = 'u32[144,128]{1,0:T(1,128)}', space=vmem, size = 0x12000, scoped, tag = 'internal scratch']
  %s0 = inlined_call_operand.smem [shape: u32[38], index: -1, kind: input, shape index: {}]
  %s1 = sld [smem:[%s0]]
  %s2 = scalar_lea.smem %s0, 1
  %s3 = sld [smem:[%s2]]
  %s4 = scalar_lea.smem %s0, 2
  %s5 = sld [smem:[%s4]]
  %s6 = scalar_lea.smem %s0, 3
  %s7 = sld [smem:[%s6]]
  %s8 = scalar_lea.smem %s0, 4
  %s9 = sld [smem:[%s8]]
  %s10 = scalar_lea.smem %s0, 5
  %s11 = sld [smem:[%s10]]
  %s12 = scalar_lea.smem %s0, 6
  %s13 = sld [smem:[%s12]]
  %s14 = scalar_lea.smem %s0, 7
  %s15 = sld [smem:[%s14]]
  %s16 = scalar_lea.smem %s0, 8
  %s17 = sld [smem:[%s16]]
  %s18 = scalar_lea.smem %s0, 9
  %s19 = sld [smem:[%s18]]
  %s20 = scalar_lea.smem %s0, 10
  %s21 = sld [smem:[%s20]]
  %s22 = scalar_lea.smem %s0, 11
  %s23 = sld [smem:[%s22]]
  %s24 = scalar_lea.smem %s0, 12
  %s25 = sld [smem:[%s24]]
  %s26 = scalar_lea.smem %s0, 13
  %s27 = sld [smem:[%s26]]
  %s28 = scalar_lea.smem %s0, 14
  %s29 = sld [smem:[%s28]]
  %s30 = scalar_lea.smem %s0, 15
  %s31 = sld [smem:[%s30]]
  %s32 = scalar_lea.smem %s0, 16
  %s33 = sld [smem:[%s32]]
  %s34 = scalar_lea.smem %s0, 17
  %s35 = sld [smem:[%s34]]
  %s36 = scalar_lea.smem %s0, 18
  %s37 = sld [smem:[%s36]]
  %s38 = scalar_lea.smem %s0, 19
  %s39 = sld [smem:[%s38]]
  %s40 = scalar_lea.smem %s0, 20
  %s41 = sld [smem:[%s40]]
  %s42 = scalar_lea.smem %s0, 21
  %s43 = sld [smem:[%s42]]
  %s44 = scalar_lea.smem %s0, 22
  %s45 = sld [smem:[%s44]]
  %s46 = scalar_lea.smem %s0, 23
  %s47 = sld [smem:[%s46]]
  %s48 = scalar_lea.smem %s0, 24
  %s49 = sld [smem:[%s48]]
  %s50 = scalar_lea.smem %s0, 25
  %s51 = sld [smem:[%s50]]
  %s52 = scalar_lea.smem %s0, 26
  %s53 = sld [smem:[%s52]]
  %s54 = scalar_lea.smem %s0, 27
  %s55 = sld [smem:[%s54]]
  %s56 = scalar_lea.smem %s0, 28
  %s57 = sld [smem:[%s56]]
  %s58 = scalar_lea.smem %s0, 29
  %s59 = sld [smem:[%s58]]
  %s60 = scalar_lea.smem %s0, 30
  %s61 = sld [smem:[%s60]]
  %s62 = scalar_lea.smem %s0, 31
  %s63 = sld [smem:[%s62]]
  %s64 = scalar_lea.smem %s0, 32
  %s65 = sld [smem:[%s64]]
  %s66 = scalar_lea.smem %s0, 33
  %s67 = sld [smem:[%s66]]
  %s68 = scalar_lea.smem %s0, 34
  %s69 = sld [smem:[%s68]]
  %s70 = scalar_lea.smem %s0, 35
  %s71 = sld [smem:[%s70]]
  %s72 = scalar_lea.smem %s0, 36
  %s73 = sld [smem:[%s72]]
  %s74 = scalar_lea.smem %s0, 37
  %s75 = sld [smem:[%s74]]
  %s76 = sld [smem:[#allocation0]]
  $region195: #{moco_forward.1} parent=0
    _
  %s78 = ssub.s32 1, %s76
  %s79 = scalar_select 0, %s78, %s76
  loop: start=0, step=1, limit=4
  $region2: #{moco_forward.1} parent=0 // loop_pre_header
    _
  $region3: #{moco_forward.1} parent=0 // loop_header
    %s81 = sphi 0, %s85
    %p82 = scmp.ge.s32.totalorder %s81, 4
    %s89 = sphi 0, %s89
    %s91 = sphi 0, %s89
    %s92 = sphi 0, %s91
    %s106 = sphi 0, %s92
    %s110 = sphi 0, %s110
    %s112 = sphi 0, %s110
    %s113 = sphi 0, %s112
    %s127 = sphi 0, %s113
    %s131 = sphi 0, %s131
    %s133 = sphi 0, %s131
    %s134 = sphi 0, %s133
    %s148 = sphi 0, %s134
    %s152 = sphi 0, %s152
    %s154 = sphi 0, %s152
    %s155 = sphi 0, %s154
    %s169 = sphi 0, %s155
    %s175 = sphi 0, %s177
    %s178 = sphi 0, %s175
    %s179 = sphi 0, %s178
    %s195 = sphi 0, %s179
    %s201 = sphi 0, %s203
    %s204 = sphi 0, %s201
    %s205 = sphi 0, %s204
    %s221 = sphi 0, %s205
    %s227 = sphi 0, %s229
    %s230 = sphi 0, %s227
    %s231 = sphi 0, %s230
    %s247 = sphi 0, %s231
    %s253 = sphi 0, %s255
    %s256 = sphi 0, %s253
    %s257 = sphi 0, %s256
    %s273 = sphi 0, %s257
    %s279 = sphi 0, %s281
    %s282 = sphi 0, %s279
    %s283 = sphi 0, %s282
    %s299 = sphi 0, %s283
    %s305 = sphi 0, %s307
    %s308 = sphi 0, %s305
    %s309 = sphi 0, %s308
    %s325 = sphi 0, %s309
    %s331 = sphi 0, %s333
    %s334 = sphi 0, %s331
    %s335 = sphi 0, %s334
    %s351 = sphi 0, %s335
    %s357 = sphi 0, %s359
    %s360 = sphi 0, %s357
    %s361 = sphi 0, %s360
    %s377 = sphi 0, %s361
    %s383 = sphi 0, %s385
    %s386 = sphi 0, %s383
    %s387 = sphi 0, %s386
    %s403 = sphi 0, %s387
    %s409 = sphi 0, %s411
    %s412 = sphi 0, %s409
    %s413 = sphi 0, %s412
    %s429 = sphi 0, %s413
    %s435 = sphi 0, %s437
    %s438 = sphi 0, %s435
    %s439 = sphi 0, %s438
    %s455 = sphi 0, %s439
    %s461 = sphi 0, %s463
    %s464 = sphi 0, %s461
    %s465 = sphi 0, %s464
    %s481 = sphi 0, %s465
    %s487 = sphi 0, %s489
    %s490 = sphi 0, %s487
    %s491 = sphi 0, %s490
    %s507 = sphi 0, %s491
    %s513 = sphi 0, %s515
    %s516 = sphi 0, %s513
    %s517 = sphi 0, %s516
    %s533 = sphi 0, %s517
    %s539 = sphi 0, %s541
    %s542 = sphi 0, %s539
    %s543 = sphi 0, %s542
    %s559 = sphi 0, %s543
    %s565 = sphi 0, %s567
    %s568 = sphi 0, %s565
    %s569 = sphi 0, %s568
    %s585 = sphi 0, %s569
    %s591 = sphi 0, %s593
    %s594 = sphi 0, %s591
    %s595 = sphi 0, %s594
    %s611 = sphi 0, %s595
    %s617 = sphi 0, %s619
    %s620 = sphi 0, %s617
    %s621 = sphi 0, %s620
    %s637 = sphi 0, %s621
    %s643 = sphi 0, %s645
    %s646 = sphi 0, %s643
    %s647 = sphi 0, %s646
    %s663 = sphi 0, %s647
    %s669 = sphi 0, %s671
    %s672 = sphi 0, %s669
    %s673 = sphi 0, %s672
    %s689 = sphi 0, %s673
    %s695 = sphi 0, %s697
    %s698 = sphi 0, %s695
    %s699 = sphi 0, %s698
    %s715 = sphi 0, %s699
    %s721 = sphi 0, %s723
    %s724 = sphi 0, %s721
    %s725 = sphi 0, %s724
    %s741 = sphi 0, %s725
    %s747 = sphi 0, %s749
    %s750 = sphi 0, %s747
    %s751 = sphi 0, %s750
    %s767 = sphi 0, %s751
    %s773 = sphi 0, %s775
    %s776 = sphi 0, %s773
    %s777 = sphi 0, %s776
    %s793 = sphi 0, %s777
    %s799 = sphi 0, %s801
    %s802 = sphi 0, %s799
    %s803 = sphi 0, %s802
    %s819 = sphi 0, %s803
    %s825 = sphi 0, %s827
    %s828 = sphi 0, %s825
    %s829 = sphi 0, %s828
    %s845 = sphi 0, %s829
    %s851 = sphi 0, %s853
    %s854 = sphi 0, %s851
    %s855 = sphi 0, %s854
    %s871 = sphi 0, %s855
    %s877 = sphi 0, %s879
    %s880 = sphi 0, %s877
    %s881 = sphi 0, %s880
    %s897 = sphi 0, %s881
    %s903 = sphi 0, %s905
    %s906 = sphi 0, %s903
    %s907 = sphi 0, %s906
    %s923 = sphi 0, %s907
    %s929 = sphi 0, %s931
    %s932 = sphi 0, %s929
    %s933 = sphi 0, %s932
    %s949 = sphi 0, %s933
    %s955 = sphi 0, %s957
    %s958 = sphi 0, %s955
    %s959 = sphi 0, %s958
    %s975 = sphi 0, %s959
    %s981 = sphi 0, %s983
    %s984 = sphi 0, %s981
    %s985 = sphi 0, %s984
    %s1001 = sphi 0, %s985
    %s1007 = sphi 0, %s1009
    %s1010 = sphi 0, %s1007
    %s1011 = sphi 0, %s1010
    %s1027 = sphi 0, %s1011
    %s1033 = sphi 0, %s1035
    %s1036 = sphi 0, %s1033
    %s1037 = sphi 0, %s1036
    %s1053 = sphi 0, %s1037
  $region4: #{moco_forward.1} parent=0 // loop_header_branch
    %84 = sbr.rel (%p82) target = $region8
  $region5: #{moco_forward.1} parent=0 // loop_body
    %s86 = ssub.s32 %s81, 1
    %s87 = ssub.s32 %s81, 2
    %s88 = sadd.s32 %s81, 1
    %s90 = sadd.s32 %s89, 1
    %p93 = scmp.eq.s32.totalorder %s81, 1
    %p94 = scmp.ne.s32.totalorder %s89, %s91
    %p95 = scmp.eq.s32.totalorder %s81, 0
    %p96 = por %p94, %p95
    %p97 = scmp.ne.s32.totalorder %s89, %s91
    %p98 = scmp.eq.s32.totalorder %s86, 1
    %p99 = por %p97, %p98
    %p100 = scmp.ne.s32.totalorder %s91, %s92
    %p101 = scmp.eq.s32.totalorder %s86, 0
    %p102 = por %p100, %p101
    %p103 = scmp.ne.s32.totalorder %s91, %s92
    %p104 = scmp.eq.s32.totalorder %s87, 1
    %p105 = por %p103, %p104
    %p107 = scmp.ne.s32.totalorder %s92, %s106
    %p108 = scmp.eq.s32.totalorder %s87, 0
    %p109 = por %p107, %p108
    %s111 = sadd.s32 %s110, 1
    %p114 = scmp.eq.s32.totalorder %s81, 1
    %p115 = scmp.ne.s32.totalorder %s110, %s112
    %p116 = scmp.eq.s32.totalorder %s81, 0
    %p117 = por %p115, %p116
    %p118 = scmp.ne.s32.totalorder %s110, %s112
    %p119 = scmp.eq.s32.totalorder %s86, 1
    %p120 = por %p118, %p119
    %p121 = scmp.ne.s32.totalorder %s112, %s113
    %p122 = scmp.eq.s32.totalorder %s86, 0
    %p123 = por %p121, %p122
    %p124 = scmp.ne.s32.totalorder %s112, %s113
    %p125 = scmp.eq.s32.totalorder %s87, 1
    %p126 = por %p124, %p125
    %p128 = scmp.ne.s32.totalorder %s113, %s127
    %p129 = scmp.eq.s32.totalorder %s87, 0
    %p130 = por %p128, %p129
    %s132 = sadd.s32 %s131, 1
    %p135 = scmp.eq.s32.totalorder %s81, 1
    %p136 = scmp.ne.s32.totalorder %s131, %s133
    %p137 = scmp.eq.s32.totalorder %s81, 0
    %p138 = por %p136, %p137
    %p139 = scmp.ne.s32.totalorder %s131, %s133
    %p140 = scmp.eq.s32.totalorder %s86, 1
    %p141 = por %p139, %p140
    %p142 = scmp.ne.s32.totalorder %s133, %s134
    %p143 = scmp.eq.s32.totalorder %s86, 0
    %p144 = por %p142, %p143
    %p145 = scmp.ne.s32.totalorder %s133, %s134
    %p146 = scmp.eq.s32.totalorder %s87, 1
    %p147 = por %p145, %p146
    %p149 = scmp.ne.s32.totalorder %s134, %s148
    %p150 = scmp.eq.s32.totalorder %s87, 0
    %p151 = por %p149, %p150
    %s153 = sadd.s32 %s152, 1
    %p156 = scmp.eq.s32.totalorder %s81, 1
    %p157 = scmp.ne.s32.totalorder %s152, %s154
    %p158 = scmp.eq.s32.totalorder %s81, 0
    %p159 = por %p157, %p158
    %p160 = scmp.ne.s32.totalorder %s152, %s154
    %p161 = scmp.eq.s32.totalorder %s86, 1
    %p162 = por %p160, %p161
    %p163 = scmp.ne.s32.totalorder %s154, %s155
    %p164 = scmp.eq.s32.totalorder %s86, 0
    %p165 = por %p163, %p164
    %p166 = scmp.ne.s32.totalorder %s154, %s155
    %p167 = scmp.eq.s32.totalorder %s87, 1
    %p168 = por %p166, %p167
    %p170 = scmp.ne.s32.totalorder %s155, %s169
    %p171 = scmp.eq.s32.totalorder %s87, 0
    %p172 = por %p170, %p171
    %s173 = ssub.s32 %s81, %s88
    %p174 = scmp.eq.s32.totalorder %s173, 0
    %s176 = sadd.s32 %s175, 1
    %s177 = scalar_select %p174, %s175, %s176
    %p180 = pneg %p174
    %p181 = scmp.eq.s32.totalorder %s81, 1
    %p182 = por %p180, %p181
    %p183 = scmp.ne.s32.totalorder %s175, %s178
    %p184 = scmp.eq.s32.totalorder %s81, 0
    %p185 = por %p183, %p184
    %p186 = scmp.ne.s32.totalorder %s175, %s178
    %p187 = scmp.eq.s32.totalorder %s86, 1
    %p188 = por %p186, %p187
    %p189 = scmp.ne.s32.totalorder %s178, %s179
    %p190 = scmp.eq.s32.totalorder %s86, 0
    %p191 = por %p189, %p190
    %p192 = scmp.ne.s32.totalorder %s178, %s179
    %p193 = scmp.eq.s32.totalorder %s87, 1
    %p194 = por %p192, %p193
    %p196 = scmp.ne.s32.totalorder %s179, %s195
    %p197 = scmp.eq.s32.totalorder %s87, 0
    %p198 = por %p196, %p197
    %s199 = ssub.s32 %s81, %s88
    %p200 = scmp.eq.s32.totalorder %s199, 0
    %s202 = sadd.s32 %s201, 1
    %s203 = scalar_select %p200, %s201, %s202
    %p206 = pneg %p200
    %p207 = scmp.eq.s32.totalorder %s81, 1
    %p208 = por %p206, %p207
    %p209 = scmp.ne.s32.totalorder %s201, %s204
    %p210 = scmp.eq.s32.totalorder %s81, 0
    %p211 = por %p209, %p210
    %p212 = scmp.ne.s32.totalorder %s201, %s204
    %p213 = scmp.eq.s32.totalorder %s86, 1
    %p214 = por %p212, %p213
    %p215 = scmp.ne.s32.totalorder %s204, %s205
    %p216 = scmp.eq.s32.totalorder %s86, 0
    %p217 = por %p215, %p216
    %p218 = scmp.ne.s32.totalorder %s204, %s205
    %p219 = scmp.eq.s32.totalorder %s87, 1
    %p220 = por %p218, %p219
    %p222 = scmp.ne.s32.totalorder %s205, %s221
    %p223 = scmp.eq.s32.totalorder %s87, 0
    %p224 = por %p222, %p223
    %s225 = ssub.s32 %s81, %s88
    %p226 = scmp.eq.s32.totalorder %s225, 0
    %s228 = sadd.s32 %s227, 1
    %s229 = scalar_select %p226, %s227, %s228
    %p232 = pneg %p226
    %p233 = scmp.eq.s32.totalorder %s81, 1
    %p234 = por %p232, %p233
    %p235 = scmp.ne.s32.totalorder %s227, %s230
    %p236 = scmp.eq.s32.totalorder %s81, 0
    %p237 = por %p235, %p236
    %p238 = scmp.ne.s32.totalorder %s227, %s230
    %p239 = scmp.eq.s32.totalorder %s86, 1
    %p240 = por %p238, %p239
    %p241 = scmp.ne.s32.totalorder %s230, %s231
    %p242 = scmp.eq.s32.totalorder %s86, 0
    %p243 = por %p241, %p242
    %p244 = scmp.ne.s32.totalorder %s230, %s231
    %p245 = scmp.eq.s32.totalorder %s87, 1
    %p246 = por %p244, %p245
    %p248 = scmp.ne.s32.totalorder %s231, %s247
    %p249 = scmp.eq.s32.totalorder %s87, 0
    %p250 = por %p248, %p249
    %s251 = ssub.s32 %s81, %s88
    %p252 = scmp.eq.s32.totalorder %s251, 0
    %s254 = sadd.s32 %s253, 1
    %s255 = scalar_select %p252, %s253, %s254
    %p258 = pneg %p252
    %p259 = scmp.eq.s32.totalorder %s81, 1
    %p260 = por %p258, %p259
    %p261 = scmp.ne.s32.totalorder %s253, %s256
    %p262 = scmp.eq.s32.totalorder %s81, 0
    %p263 = por %p261, %p262
    %p264 = scmp.ne.s32.totalorder %s253, %s256
    %p265 = scmp.eq.s32.totalorder %s86, 1
    %p266 = por %p264, %p265
    %p267 = scmp.ne.s32.totalorder %s256, %s257
    %p268 = scmp.eq.s32.totalorder %s86, 0
    %p269 = por %p267, %p268
    %p270 = scmp.ne.s32.totalorder %s256, %s257
    %p271 = scmp.eq.s32.totalorder %s87, 1
    %p272 = por %p270, %p271
    %p274 = scmp.ne.s32.totalorder %s257, %s273
    %p275 = scmp.eq.s32.totalorder %s87, 0
    %p276 = por %p274, %p275
    %s277 = ssub.s32 %s81, %s88
    %p278 = scmp.eq.s32.totalorder %s277, 0
    %s280 = sadd.s32 %s279, 1
    %s281 = scalar_select %p278, %s279, %s280
    %p284 = pneg %p278
    %p285 = scmp.eq.s32.totalorder %s81, 1
    %p286 = por %p284, %p285
    %p287 = scmp.ne.s32.totalorder %s279, %s282
    %p288 = scmp.eq.s32.totalorder %s81, 0
    %p289 = por %p287, %p288
    %p290 = scmp.ne.s32.totalorder %s279, %s282
    %p291 = scmp.eq.s32.totalorder %s86, 1
    %p292 = por %p290, %p291
    %p293 = scmp.ne.s32.totalorder %s282, %s283
    %p294 = scmp.eq.s32.totalorder %s86, 0
    %p295 = por %p293, %p294
    %p296 = scmp.ne.s32.totalorder %s282, %s283
    %p297 = scmp.eq.s32.totalorder %s87, 1
    %p298 = por %p296, %p297
    %p300 = scmp.ne.s32.totalorder %s283, %s299
    %p301 = scmp.eq.s32.totalorder %s87, 0
    %p302 = por %p300, %p301
    %s303 = ssub.s32 %s81, %s88
    %p304 = scmp.eq.s32.totalorder %s303, 0
    %s306 = sadd.s32 %s305, 1
    %s307 = scalar_select %p304, %s305, %s306
    %p310 = pneg %p304
    %p311 = scmp.eq.s32.totalorder %s81, 1
    %p312 = por %p310, %p311
    %p313 = scmp.ne.s32.totalorder %s305, %s308
    %p314 = scmp.eq.s32.totalorder %s81, 0
    %p315 = por %p313, %p314
    %p316 = scmp.ne.s32.totalorder %s305, %s308
    %p317 = scmp.eq.s32.totalorder %s86, 1
    %p318 = por %p316, %p317
    %p319 = scmp.ne.s32.totalorder %s308, %s309
    %p320 = scmp.eq.s32.totalorder %s86, 0
    %p321 = por %p319, %p320
    %p322 = scmp.ne.s32.totalorder %s308, %s309
    %p323 = scmp.eq.s32.totalorder %s87, 1
    %p324 = por %p322, %p323
    %p326 = scmp.ne.s32.totalorder %s309, %s325
    %p327 = scmp.eq.s32.totalorder %s87, 0
    %p328 = por %p326, %p327
    %s329 = ssub.s32 %s81, %s88
    %p330 = scmp.eq.s32.totalorder %s329, 0
    %s332 = sadd.s32 %s331, 1
    %s333 = scalar_select %p330, %s331, %s332
    %p336 = pneg %p330
    %p337 = scmp.eq.s32.totalorder %s81, 1
    %p338 = por %p336, %p337
    %p339 = scmp.ne.s32.totalorder %s331, %s334
    %p340 = scmp.eq.s32.totalorder %s81, 0
    %p341 = por %p339, %p340
    %p342 = scmp.ne.s32.totalorder %s331, %s334
    %p343 = scmp.eq.s32.totalorder %s86, 1
    %p344 = por %p342, %p343
    %p345 = scmp.ne.s32.totalorder %s334, %s335
    %p346 = scmp.eq.s32.totalorder %s86, 0
    %p347 = por %p345, %p346
    %p348 = scmp.ne.s32.totalorder %s334, %s335
    %p349 = scmp.eq.s32.totalorder %s87, 1
    %p350 = por %p348, %p349
    %p352 = scmp.ne.s32.totalorder %s335, %s351
    %p353 = scmp.eq.s32.totalorder %s87, 0
    %p354 = por %p352, %p353
    %s355 = ssub.s32 %s81, %s88
    %p356 = scmp.eq.s32.totalorder %s355, 0
    %s358 = sadd.s32 %s357, 1
    %s359 = scalar_select %p356, %s357, %s358
    %p362 = pneg %p356
    %p363 = scmp.eq.s32.totalorder %s81, 1
    %p364 = por %p362, %p363
    %p365 = scmp.ne.s32.totalorder %s357, %s360
    %p366 = scmp.eq.s32.totalorder %s81, 0
    %p367 = por %p365, %p366
    %p368 = scmp.ne.s32.totalorder %s357, %s360
    %p369 = scmp.eq.s32.totalorder %s86, 1
    %p370 = por %p368, %p369
    %p371 = scmp.ne.s32.totalorder %s360, %s361
    %p372 = scmp.eq.s32.totalorder %s86, 0
    %p373 = por %p371, %p372
    %p374 = scmp.ne.s32.totalorder %s360, %s361
    %p375 = scmp.eq.s32.totalorder %s87, 1
    %p376 = por %p374, %p375
    %p378 = scmp.ne.s32.totalorder %s361, %s377
    %p379 = scmp.eq.s32.totalorder %s87, 0
    %p380 = por %p378, %p379
    %s381 = ssub.s32 %s81, %s88
    %p382 = scmp.eq.s32.totalorder %s381, 0
    %s384 = sadd.s32 %s383, 1
    %s385 = scalar_select %p382, %s383, %s384
    %p388 = pneg %p382
    %p389 = scmp.eq.s32.totalorder %s81, 1
    %p390 = por %p388, %p389
    %p391 = scmp.ne.s32.totalorder %s383, %s386
    %p392 = scmp.eq.s32.totalorder %s81, 0
    %p393 = por %p391, %p392
    %p394 = scmp.ne.s32.totalorder %s383, %s386
    %p395 = scmp.eq.s32.totalorder %s86, 1
    %p396 = por %p394, %p395
    %p397 = scmp.ne.s32.totalorder %s386, %s387
    %p398 = scmp.eq.s32.totalorder %s86, 0
    %p399 = por %p397, %p398
    %p400 = scmp.ne.s32.totalorder %s386, %s387
    %p401 = scmp.eq.s32.totalorder %s87, 1
    %p402 = por %p400, %p401
    %p404 = scmp.ne.s32.totalorder %s387, %s403
    %p405 = scmp.eq.s32.totalorder %s87, 0
    %p406 = por %p404, %p405
    %s407 = ssub.s32 %s81, %s88
    %p408 = scmp.eq.s32.totalorder %s407, 0
    %s410 = sadd.s32 %s409, 1
    %s411 = scalar_select %p408, %s409, %s410
    %p414 = pneg %p408
    %p415 = scmp.eq.s32.totalorder %s81, 1
    %p416 = por %p414, %p415
    %p417 = scmp.ne.s32.totalorder %s409, %s412
    %p418 = scmp.eq.s32.totalorder %s81, 0
    %p419 = por %p417, %p418
    %p420 = scmp.ne.s32.totalorder %s409, %s412
    %p421 = scmp.eq.s32.totalorder %s86, 1
    %p422 = por %p420, %p421
    %p423 = scmp.ne.s32.totalorder %s412, %s413
    %p424 = scmp.eq.s32.totalorder %s86, 0
    %p425 = por %p423, %p424
    %p426 = scmp.ne.s32.totalorder %s412, %s413
    %p427 = scmp.eq.s32.totalorder %s87, 1
    %p428 = por %p426, %p427
    %p430 = scmp.ne.s32.totalorder %s413, %s429
    %p431 = scmp.eq.s32.totalorder %s87, 0
    %p432 = por %p430, %p431
    %s433 = ssub.s32 %s81, %s88
    %p434 = scmp.eq.s32.totalorder %s433, 0
    %s436 = sadd.s32 %s435, 1
    %s437 = scalar_select %p434, %s435, %s436
    %p440 = pneg %p434
    %p441 = scmp.eq.s32.totalorder %s81, 1
    %p442 = por %p440, %p441
    %p443 = scmp.ne.s32.totalorder %s435, %s438
    %p444 = scmp.eq.s32.totalorder %s81, 0
    %p445 = por %p443, %p444
    %p446 = scmp.ne.s32.totalorder %s435, %s438
    %p447 = scmp.eq.s32.totalorder %s86, 1
    %p448 = por %p446, %p447
    %p449 = scmp.ne.s32.totalorder %s438, %s439
    %p450 = scmp.eq.s32.totalorder %s86, 0
    %p451 = por %p449, %p450
    %p452 = scmp.ne.s32.totalorder %s438, %s439
    %p453 = scmp.eq.s32.totalorder %s87, 1
    %p454 = por %p452, %p453
    %p456 = scmp.ne.s32.totalorder %s439, %s455
    %p457 = scmp.eq.s32.totalorder %s87, 0
    %p458 = por %p456, %p457
    %s459 = ssub.s32 %s81, %s88
    %p460 = scmp.eq.s32.totalorder %s459, 0
    %s462 = sadd.s32 %s461, 1
    %s463 = scalar_select %p460, %s461, %s462
    %p466 = pneg %p460
    %p467 = scmp.eq.s32.totalorder %s81, 1
    %p468 = por %p466, %p467
    %p469 = scmp.ne.s32.totalorder %s461, %s464
    %p470 = scmp.eq.s32.totalorder %s81, 0
    %p471 = por %p469, %p470
    %p472 = scmp.ne.s32.totalorder %s461, %s464
    %p473 = scmp.eq.s32.totalorder %s86, 1
    %p474 = por %p472, %p473
    %p475 = scmp.ne.s32.totalorder %s464, %s465
    %p476 = scmp.eq.s32.totalorder %s86, 0
    %p477 = por %p475, %p476
    %p478 = scmp.ne.s32.totalorder %s464, %s465
    %p479 = scmp.eq.s32.totalorder %s87, 1
    %p480 = por %p478, %p479
    %p482 = scmp.ne.s32.totalorder %s465, %s481
    %p483 = scmp.eq.s32.totalorder %s87, 0
    %p484 = por %p482, %p483
    %s485 = ssub.s32 %s81, %s88
    %p486 = scmp.eq.s32.totalorder %s485, 0
    %s488 = sadd.s32 %s487, 1
    %s489 = scalar_select %p486, %s487, %s488
    %p492 = pneg %p486
    %p493 = scmp.eq.s32.totalorder %s81, 1
    %p494 = por %p492, %p493
    %p495 = scmp.ne.s32.totalorder %s487, %s490
    %p496 = scmp.eq.s32.totalorder %s81, 0
    %p497 = por %p495, %p496
    %p498 = scmp.ne.s32.totalorder %s487, %s490
    %p499 = scmp.eq.s32.totalorder %s86, 1
    %p500 = por %p498, %p499
    %p501 = scmp.ne.s32.totalorder %s490, %s491
    %p502 = scmp.eq.s32.totalorder %s86, 0
    %p503 = por %p501, %p502
    %p504 = scmp.ne.s32.totalorder %s490, %s491
    %p505 = scmp.eq.s32.totalorder %s87, 1
    %p506 = por %p504, %p505
    %p508 = scmp.ne.s32.totalorder %s491, %s507
    %p509 = scmp.eq.s32.totalorder %s87, 0
    %p510 = por %p508, %p509
    %s511 = ssub.s32 %s81, %s88
    %p512 = scmp.eq.s32.totalorder %s511, 0
    %s514 = sadd.s32 %s513, 1
    %s515 = scalar_select %p512, %s513, %s514
    %p518 = pneg %p512
    %p519 = scmp.eq.s32.totalorder %s81, 1
    %p520 = por %p518, %p519
    %p521 = scmp.ne.s32.totalorder %s513, %s516
    %p522 = scmp.eq.s32.totalorder %s81, 0
    %p523 = por %p521, %p522
    %p524 = scmp.ne.s32.totalorder %s513, %s516
    %p525 = scmp.eq.s32.totalorder %s86, 1
    %p526 = por %p524, %p525
    %p527 = scmp.ne.s32.totalorder %s516, %s517
    %p528 = scmp.eq.s32.totalorder %s86, 0
    %p529 = por %p527, %p528
    %p530 = scmp.ne.s32.totalorder %s516, %s517
    %p531 = scmp.eq.s32.totalorder %s87, 1
    %p532 = por %p530, %p531
    %p534 = scmp.ne.s32.totalorder %s517, %s533
    %p535 = scmp.eq.s32.totalorder %s87, 0
    %p536 = por %p534, %p535
    %s537 = ssub.s32 %s81, %s88
    %p538 = scmp.eq.s32.totalorder %s537, 0
    %s540 = sadd.s32 %s539, 1
    %s541 = scalar_select %p538, %s539, %s540
    %p544 = pneg %p538
    %p545 = scmp.eq.s32.totalorder %s81, 1
    %p546 = por %p544, %p545
    %p547 = scmp.ne.s32.totalorder %s539, %s542
    %p548 = scmp.eq.s32.totalorder %s81, 0
    %p549 = por %p547, %p548
    %p550 = scmp.ne.s32.totalorder %s539, %s542
    %p551 = scmp.eq.s32.totalorder %s86, 1
    %p552 = por %p550, %p551
    %p553 = scmp.ne.s32.totalorder %s542, %s543
    %p554 = scmp.eq.s32.totalorder %s86, 0
    %p555 = por %p553, %p554
    %p556 = scmp.ne.s32.totalorder %s542, %s543
    %p557 = scmp.eq.s32.totalorder %s87, 1
    %p558 = por %p556, %p557
    %p560 = scmp.ne.s32.totalorder %s543, %s559
    %p561 = scmp.eq.s32.totalorder %s87, 0
    %p562 = por %p560, %p561
    %s563 = ssub.s32 %s81, %s88
    %p564 = scmp.eq.s32.totalorder %s563, 0
    %s566 = sadd.s32 %s565, 1
    %s567 = scalar_select %p564, %s565, %s566
    %p570 = pneg %p564
    %p571 = scmp.eq.s32.totalorder %s81, 1
    %p572 = por %p570, %p571
    %p573 = scmp.ne.s32.totalorder %s565, %s568
    %p574 = scmp.eq.s32.totalorder %s81, 0
    %p575 = por %p573, %p574
    %p576 = scmp.ne.s32.totalorder %s565, %s568
    %p577 = scmp.eq.s32.totalorder %s86, 1
    %p578 = por %p576, %p577
    %p579 = scmp.ne.s32.totalorder %s568, %s569
    %p580 = scmp.eq.s32.totalorder %s86, 0
    %p581 = por %p579, %p580
    %p582 = scmp.ne.s32.totalorder %s568, %s569
    %p583 = scmp.eq.s32.totalorder %s87, 1
    %p584 = por %p582, %p583
    %p586 = scmp.ne.s32.totalorder %s569, %s585
    %p587 = scmp.eq.s32.totalorder %s87, 0
    %p588 = por %p586, %p587
    %s589 = ssub.s32 %s81, %s88
    %p590 = scmp.eq.s32.totalorder %s589, 0
    %s592 = sadd.s32 %s591, 1
    %s593 = scalar_select %p590, %s591, %s592
    %p596 = pneg %p590
    %p597 = scmp.eq.s32.totalorder %s81, 1
    %p598 = por %p596, %p597
    %p599 = scmp.ne.s32.totalorder %s591, %s594
    %p600 = scmp.eq.s32.totalorder %s81, 0
    %p601 = por %p599, %p600
    %p602 = scmp.ne.s32.totalorder %s591, %s594
    %p603 = scmp.eq.s32.totalorder %s86, 1
    %p604 = por %p602, %p603
    %p605 = scmp.ne.s32.totalorder %s594, %s595
    %p606 = scmp.eq.s32.totalorder %s86, 0
    %p607 = por %p605, %p606
    %p608 = scmp.ne.s32.totalorder %s594, %s595
    %p609 = scmp.eq.s32.totalorder %s87, 1
    %p610 = por %p608, %p609
    %p612 = scmp.ne.s32.totalorder %s595, %s611
    %p613 = scmp.eq.s32.totalorder %s87, 0
    %p614 = por %p612, %p613
    %s615 = ssub.s32 %s81, %s88
    %p616 = scmp.eq.s32.totalorder %s615, 0
    %s618 = sadd.s32 %s617, 1
    %s619 = scalar_select %p616, %s617, %s618
    %p622 = pneg %p616
    %p623 = scmp.eq.s32.totalorder %s81, 1
    %p624 = por %p622, %p623
    %p625 = scmp.ne.s32.totalorder %s617, %s620
    %p626 = scmp.eq.s32.totalorder %s81, 0
    %p627 = por %p625, %p626
    %p628 = scmp.ne.s32.totalorder %s617, %s620
    %p629 = scmp.eq.s32.totalorder %s86, 1
    %p630 = por %p628, %p629
    %p631 = scmp.ne.s32.totalorder %s620, %s621
    %p632 = scmp.eq.s32.totalorder %s86, 0
    %p633 = por %p631, %p632
    %p634 = scmp.ne.s32.totalorder %s620, %s621
    %p635 = scmp.eq.s32.totalorder %s87, 1
    %p636 = por %p634, %p635
    %p638 = scmp.ne.s32.totalorder %s621, %s637
    %p639 = scmp.eq.s32.totalorder %s87, 0
    %p640 = por %p638, %p639
    %s641 = ssub.s32 %s81, %s88
    %p642 = scmp.eq.s32.totalorder %s641, 0
    %s644 = sadd.s32 %s643, 1
    %s645 = scalar_select %p642, %s643, %s644
    %p648 = pneg %p642
    %p649 = scmp.eq.s32.totalorder %s81, 1
    %p650 = por %p648, %p649
    %p651 = scmp.ne.s32.totalorder %s643, %s646
    %p652 = scmp.eq.s32.totalorder %s81, 0
    %p653 = por %p651, %p652
    %p654 = scmp.ne.s32.totalorder %s643, %s646
    %p655 = scmp.eq.s32.totalorder %s86, 1
    %p656 = por %p654, %p655
    %p657 = scmp.ne.s32.totalorder %s646, %s647
    %p658 = scmp.eq.s32.totalorder %s86, 0
    %p659 = por %p657, %p658
    %p660 = scmp.ne.s32.totalorder %s646, %s647
    %p661 = scmp.eq.s32.totalorder %s87, 1
    %p662 = por %p660, %p661
    %p664 = scmp.ne.s32.totalorder %s647, %s663
    %p665 = scmp.eq.s32.totalorder %s87, 0
    %p666 = por %p664, %p665
    %s667 = ssub.s32 %s81, %s88
    %p668 = scmp.eq.s32.totalorder %s667, 0
    %s670 = sadd.s32 %s669, 1
    %s671 = scalar_select %p668, %s669, %s670
    %p674 = pneg %p668
    %p675 = scmp.eq.s32.totalorder %s81, 1
    %p676 = por %p674, %p675
    %p677 = scmp.ne.s32.totalorder %s669, %s672
    %p678 = scmp.eq.s32.totalorder %s81, 0
    %p679 = por %p677, %p678
    %p680 = scmp.ne.s32.totalorder %s669, %s672
    %p681 = scmp.eq.s32.totalorder %s86, 1
    %p682 = por %p680, %p681
    %p683 = scmp.ne.s32.totalorder %s672, %s673
    %p684 = scmp.eq.s32.totalorder %s86, 0
    %p685 = por %p683, %p684
    %p686 = scmp.ne.s32.totalorder %s672, %s673
    %p687 = scmp.eq.s32.totalorder %s87, 1
    %p688 = por %p686, %p687
    %p690 = scmp.ne.s32.totalorder %s673, %s689
    %p691 = scmp.eq.s32.totalorder %s87, 0
    %p692 = por %p690, %p691
    %s693 = ssub.s32 %s81, %s88
    %p694 = scmp.eq.s32.totalorder %s693, 0
    %s696 = sadd.s32 %s695, 1
    %s697 = scalar_select %p694, %s695, %s696
    %p700 = pneg %p694
    %p701 = scmp.eq.s32.totalorder %s81, 1
    %p702 = por %p700, %p701
    %p703 = scmp.ne.s32.totalorder %s695, %s698
    %p704 = scmp.eq.s32.totalorder %s81, 0
    %p705 = por %p703, %p704
    %p706 = scmp.ne.s32.totalorder %s695, %s698
    %p707 = scmp.eq.s32.totalorder %s86, 1
    %p708 = por %p706, %p707
    %p709 = scmp.ne.s32.totalorder %s698, %s699
    %p710 = scmp.eq.s32.totalorder %s86, 0
    %p711 = por %p709, %p710
    %p712 = scmp.ne.s32.totalorder %s698, %s699
    %p713 = scmp.eq.s32.totalorder %s87, 1
    %p714 = por %p712, %p713
    %p716 = scmp.ne.s32.totalorder %s699, %s715
    %p717 = scmp.eq.s32.totalorder %s87, 0
    %p718 = por %p716, %p717
    %s719 = ssub.s32 %s81, %s88
    %p720 = scmp.eq.s32.totalorder %s719, 0
    %s722 = sadd.s32 %s721, 1
    %s723 = scalar_select %p720, %s721, %s722
    %p726 = pneg %p720
    %p727 = scmp.eq.s32.totalorder %s81, 1
    %p728 = por %p726, %p727
    %p729 = scmp.ne.s32.totalorder %s721, %s724
    %p730 = scmp.eq.s32.totalorder %s81, 0
    %p731 = por %p729, %p730
    %p732 = scmp.ne.s32.totalorder %s721, %s724
    %p733 = scmp.eq.s32.totalorder %s86, 1
    %p734 = por %p732, %p733
    %p735 = scmp.ne.s32.totalorder %s724, %s725
    %p736 = scmp.eq.s32.totalorder %s86, 0
    %p737 = por %p735, %p736
    %p738 = scmp.ne.s32.totalorder %s724, %s725
    %p739 = scmp.eq.s32.totalorder %s87, 1
    %p740 = por %p738, %p739
    %p742 = scmp.ne.s32.totalorder %s725, %s741
    %p743 = scmp.eq.s32.totalorder %s87, 0
    %p744 = por %p742, %p743
    %s745 = ssub.s32 %s81, %s88
    %p746 = scmp.eq.s32.totalorder %s745, 0
    %s748 = sadd.s32 %s747, 1
    %s749 = scalar_select %p746, %s747, %s748
    %p752 = pneg %p746
    %p753 = scmp.eq.s32.totalorder %s81, 1
    %p754 = por %p752, %p753
    %p755 = scmp.ne.s32.totalorder %s747, %s750
    %p756 = scmp.eq.s32.totalorder %s81, 0
    %p757 = por %p755, %p756
    %p758 = scmp.ne.s32.totalorder %s747, %s750
    %p759 = scmp.eq.s32.totalorder %s86, 1
    %p760 = por %p758, %p759
    %p761 = scmp.ne.s32.totalorder %s750, %s751
    %p762 = scmp.eq.s32.totalorder %s86, 0
    %p763 = por %p761, %p762
    %p764 = scmp.ne.s32.totalorder %s750, %s751
    %p765 = scmp.eq.s32.totalorder %s87, 1
    %p766 = por %p764, %p765
    %p768 = scmp.ne.s32.totalorder %s751, %s767
    %p769 = scmp.eq.s32.totalorder %s87, 0
    %p770 = por %p768, %p769
    %s771 = ssub.s32 %s81, %s88
    %p772 = scmp.eq.s32.totalorder %s771, 0
    %s774 = sadd.s32 %s773, 1
    %s775 = scalar_select %p772, %s773, %s774
    %p778 = pneg %p772
    %p779 = scmp.eq.s32.totalorder %s81, 1
    %p780 = por %p778, %p779
    %p781 = scmp.ne.s32.totalorder %s773, %s776
    %p782 = scmp.eq.s32.totalorder %s81, 0
    %p783 = por %p781, %p782
    %p784 = scmp.ne.s32.totalorder %s773, %s776
    %p785 = scmp.eq.s32.totalorder %s86, 1
    %p786 = por %p784, %p785
    %p787 = scmp.ne.s32.totalorder %s776, %s777
    %p788 = scmp.eq.s32.totalorder %s86, 0
    %p789 = por %p787, %p788
    %p790 = scmp.ne.s32.totalorder %s776, %s777
    %p791 = scmp.eq.s32.totalorder %s87, 1
    %p792 = por %p790, %p791
    %p794 = scmp.ne.s32.totalorder %s777, %s793
    %p795 = scmp.eq.s32.totalorder %s87, 0
    %p796 = por %p794, %p795
    %s797 = ssub.s32 %s81, %s88
    %p798 = scmp.eq.s32.totalorder %s797, 0
    %s800 = sadd.s32 %s799, 1
    %s801 = scalar_select %p798, %s799, %s800
    %p804 = pneg %p798
    %p805 = scmp.eq.s32.totalorder %s81, 1
    %p806 = por %p804, %p805
    %p807 = scmp.ne.s32.totalorder %s799, %s802
    %p808 = scmp.eq.s32.totalorder %s81, 0
    %p809 = por %p807, %p808
    %p810 = scmp.ne.s32.totalorder %s799, %s802
    %p811 = scmp.eq.s32.totalorder %s86, 1
    %p812 = por %p810, %p811
    %p813 = scmp.ne.s32.totalorder %s802, %s803
    %p814 = scmp.eq.s32.totalorder %s86, 0
    %p815 = por %p813, %p814
    %p816 = scmp.ne.s32.totalorder %s802, %s803
    %p817 = scmp.eq.s32.totalorder %s87, 1
    %p818 = por %p816, %p817
    %p820 = scmp.ne.s32.totalorder %s803, %s819
    %p821 = scmp.eq.s32.totalorder %s87, 0
    %p822 = por %p820, %p821
    %s823 = ssub.s32 %s81, %s88
    %p824 = scmp.eq.s32.totalorder %s823, 0
    %s826 = sadd.s32 %s825, 1
    %s827 = scalar_select %p824, %s825, %s826
    %p830 = pneg %p824
    %p831 = scmp.eq.s32.totalorder %s81, 1
    %p832 = por %p830, %p831
    %p833 = scmp.ne.s32.totalorder %s825, %s828
    %p834 = scmp.eq.s32.totalorder %s81, 0
    %p835 = por %p833, %p834
    %p836 = scmp.ne.s32.totalorder %s825, %s828
    %p837 = scmp.eq.s32.totalorder %s86, 1
    %p838 = por %p836, %p837
    %p839 = scmp.ne.s32.totalorder %s828, %s829
    %p840 = scmp.eq.s32.totalorder %s86, 0
    %p841 = por %p839, %p840
    %p842 = scmp.ne.s32.totalorder %s828, %s829
    %p843 = scmp.eq.s32.totalorder %s87, 1
    %p844 = por %p842, %p843
    %p846 = scmp.ne.s32.totalorder %s829, %s845
    %p847 = scmp.eq.s32.totalorder %s87, 0
    %p848 = por %p846, %p847
    %s849 = ssub.s32 %s81, %s88
    %p850 = scmp.eq.s32.totalorder %s849, 0
    %s852 = sadd.s32 %s851, 1
    %s853 = scalar_select %p850, %s851, %s852
    %p856 = pneg %p850
    %p857 = scmp.eq.s32.totalorder %s81, 1
    %p858 = por %p856, %p857
    %p859 = scmp.ne.s32.totalorder %s851, %s854
    %p860 = scmp.eq.s32.totalorder %s81, 0
    %p861 = por %p859, %p860
    %p862 = scmp.ne.s32.totalorder %s851, %s854
    %p863 = scmp.eq.s32.totalorder %s86, 1
    %p864 = por %p862, %p863
    %p865 = scmp.ne.s32.totalorder %s854, %s855
    %p866 = scmp.eq.s32.totalorder %s86, 0
    %p867 = por %p865, %p866
    %p868 = scmp.ne.s32.totalorder %s854, %s855
    %p869 = scmp.eq.s32.totalorder %s87, 1
    %p870 = por %p868, %p869
    %p872 = scmp.ne.s32.totalorder %s855, %s871
    %p873 = scmp.eq.s32.totalorder %s87, 0
    %p874 = por %p872, %p873
    %s875 = ssub.s32 %s81, %s88
    %p876 = scmp.eq.s32.totalorder %s875, 0
    %s878 = sadd.s32 %s877, 1
    %s879 = scalar_select %p876, %s877, %s878
    %p882 = pneg %p876
    %p883 = scmp.eq.s32.totalorder %s81, 1
    %p884 = por %p882, %p883
    %p885 = scmp.ne.s32.totalorder %s877, %s880
    %p886 = scmp.eq.s32.totalorder %s81, 0
    %p887 = por %p885, %p886
    %p888 = scmp.ne.s32.totalorder %s877, %s880
    %p889 = scmp.eq.s32.totalorder %s86, 1
    %p890 = por %p888, %p889
    %p891 = scmp.ne.s32.totalorder %s880, %s881
    %p892 = scmp.eq.s32.totalorder %s86, 0
    %p893 = por %p891, %p892
    %p894 = scmp.ne.s32.totalorder %s880, %s881
    %p895 = scmp.eq.s32.totalorder %s87, 1
    %p896 = por %p894, %p895
    %p898 = scmp.ne.s32.totalorder %s881, %s897
    %p899 = scmp.eq.s32.totalorder %s87, 0
    %p900 = por %p898, %p899
    %s901 = ssub.s32 %s81, %s88
    %p902 = scmp.eq.s32.totalorder %s901, 0
    %s904 = sadd.s32 %s903, 1
    %s905 = scalar_select %p902, %s903, %s904
    %p908 = pneg %p902
    %p909 = scmp.eq.s32.totalorder %s81, 1
    %p910 = por %p908, %p909
    %p911 = scmp.ne.s32.totalorder %s903, %s906
    %p912 = scmp.eq.s32.totalorder %s81, 0
    %p913 = por %p911, %p912
    %p914 = scmp.ne.s32.totalorder %s903, %s906
    %p915 = scmp.eq.s32.totalorder %s86, 1
    %p916 = por %p914, %p915
    %p917 = scmp.ne.s32.totalorder %s906, %s907
    %p918 = scmp.eq.s32.totalorder %s86, 0
    %p919 = por %p917, %p918
    %p920 = scmp.ne.s32.totalorder %s906, %s907
    %p921 = scmp.eq.s32.totalorder %s87, 1
    %p922 = por %p920, %p921
    %p924 = scmp.ne.s32.totalorder %s907, %s923
    %p925 = scmp.eq.s32.totalorder %s87, 0
    %p926 = por %p924, %p925
    %s927 = ssub.s32 %s81, %s88
    %p928 = scmp.eq.s32.totalorder %s927, 0
    %s930 = sadd.s32 %s929, 1
    %s931 = scalar_select %p928, %s929, %s930
    %p934 = pneg %p928
    %p935 = scmp.eq.s32.totalorder %s81, 1
    %p936 = por %p934, %p935
    %p937 = scmp.ne.s32.totalorder %s929, %s932
    %p938 = scmp.eq.s32.totalorder %s81, 0
    %p939 = por %p937, %p938
    %p940 = scmp.ne.s32.totalorder %s929, %s932
    %p941 = scmp.eq.s32.totalorder %s86, 1
    %p942 = por %p940, %p941
    %p943 = scmp.ne.s32.totalorder %s932, %s933
    %p944 = scmp.eq.s32.totalorder %s86, 0
    %p945 = por %p943, %p944
    %p946 = scmp.ne.s32.totalorder %s932, %s933
    %p947 = scmp.eq.s32.totalorder %s87, 1
    %p948 = por %p946, %p947
    %p950 = scmp.ne.s32.totalorder %s933, %s949
    %p951 = scmp.eq.s32.totalorder %s87, 0
    %p952 = por %p950, %p951
    %s953 = ssub.s32 %s81, %s88
    %p954 = scmp.eq.s32.totalorder %s953, 0
    %s956 = sadd.s32 %s955, 1
    %s957 = scalar_select %p954, %s955, %s956
    %p960 = pneg %p954
    %p961 = scmp.eq.s32.totalorder %s81, 1
    %p962 = por %p960, %p961
    %p963 = scmp.ne.s32.totalorder %s955, %s958
    %p964 = scmp.eq.s32.totalorder %s81, 0
    %p965 = por %p963, %p964
    %p966 = scmp.ne.s32.totalorder %s955, %s958
    %p967 = scmp.eq.s32.totalorder %s86, 1
    %p968 = por %p966, %p967
    %p969 = scmp.ne.s32.totalorder %s958, %s959
    %p970 = scmp.eq.s32.totalorder %s86, 0
    %p971 = por %p969, %p970
    %p972 = scmp.ne.s32.totalorder %s958, %s959
    %p973 = scmp.eq.s32.totalorder %s87, 1
    %p974 = por %p972, %p973
    %p976 = scmp.ne.s32.totalorder %s959, %s975
    %p977 = scmp.eq.s32.totalorder %s87, 0
    %p978 = por %p976, %p977
    %s979 = ssub.s32 %s81, %s88
    %p980 = scmp.eq.s32.totalorder %s979, 0
    %s982 = sadd.s32 %s981, 1
    %s983 = scalar_select %p980, %s981, %s982
    %p986 = pneg %p980
    %p987 = scmp.eq.s32.totalorder %s81, 1
    %p988 = por %p986, %p987
    %p989 = scmp.ne.s32.totalorder %s981, %s984
    %p990 = scmp.eq.s32.totalorder %s81, 0
    %p991 = por %p989, %p990
    %p992 = scmp.ne.s32.totalorder %s981, %s984
    %p993 = scmp.eq.s32.totalorder %s86, 1
    %p994 = por %p992, %p993
    %p995 = scmp.ne.s32.totalorder %s984, %s985
    %p996 = scmp.eq.s32.totalorder %s86, 0
    %p997 = por %p995, %p996
    %p998 = scmp.ne.s32.totalorder %s984, %s985
    %p999 = scmp.eq.s32.totalorder %s87, 1
    %p1000 = por %p998, %p999
    %p1002 = scmp.ne.s32.totalorder %s985, %s1001
    %p1003 = scmp.eq.s32.totalorder %s87, 0
    %p1004 = por %p1002, %p1003
    %s1005 = ssub.s32 %s81, %s88
    %p1006 = scmp.eq.s32.totalorder %s1005, 0
    %s1008 = sadd.s32 %s1007, 1
    %s1009 = scalar_select %p1006, %s1007, %s1008
    %p1012 = pneg %p1006
    %p1013 = scmp.eq.s32.totalorder %s81, 1
    %p1014 = por %p1012, %p1013
    %p1015 = scmp.ne.s32.totalorder %s1007, %s1010
    %p1016 = scmp.eq.s32.totalorder %s81, 0
    %p1017 = por %p1015, %p1016
    %p1018 = scmp.ne.s32.totalorder %s1007, %s1010
    %p1019 = scmp.eq.s32.totalorder %s86, 1
    %p1020 = por %p1018, %p1019
    %p1021 = scmp.ne.s32.totalorder %s1010, %s1011
    %p1022 = scmp.eq.s32.totalorder %s86, 0
    %p1023 = por %p1021, %p1022
    %p1024 = scmp.ne.s32.totalorder %s1010, %s1011
    %p1025 = scmp.eq.s32.totalorder %s87, 1
    %p1026 = por %p1024, %p1025
    %p1028 = scmp.ne.s32.totalorder %s1011, %s1027
    %p1029 = scmp.eq.s32.totalorder %s87, 0
    %p1030 = por %p1028, %p1029
    %s1031 = ssub.s32 %s81, %s88
    %p1032 = scmp.eq.s32.totalorder %s1031, 0
    %s1034 = sadd.s32 %s1033, 1
    %s1035 = scalar_select %p1032, %s1033, %s1034
    %p1038 = pneg %p1032
    %p1039 = scmp.eq.s32.totalorder %s81, 1
    %p1040 = por %p1038, %p1039
    %p1041 = scmp.ne.s32.totalorder %s1033, %s1036
    %p1042 = scmp.eq.s32.totalorder %s81, 0
    %p1043 = por %p1041, %p1042
    %p1044 = scmp.ne.s32.totalorder %s1033, %s1036
    %p1045 = scmp.eq.s32.totalorder %s86, 1
    %p1046 = por %p1044, %p1045
    %p1047 = scmp.ne.s32.totalorder %s1036, %s1037
    %p1048 = scmp.eq.s32.totalorder %s86, 0
    %p1049 = por %p1047, %p1048
    %p1050 = scmp.ne.s32.totalorder %s1036, %s1037
    %p1051 = scmp.eq.s32.totalorder %s87, 1
    %p1052 = por %p1050, %p1051
    %p1054 = scmp.ne.s32.totalorder %s1037, %s1053
    %p1055 = scmp.eq.s32.totalorder %s87, 0
    %p1056 = por %p1054, %p1055
    %p1057 = scmp.le.s32.totalorder 1, %s81
    %p1058 = scmp.lt.s32.totalorder %s81, 3
    %p1059 = pnand %p1057, %p1058
    %p1060 = pneg %p1059
    // Predicated region
    $region9: #{moco_forward.1} parent=5 // pred_check
      _
    $region10: #{moco_forward.1} parent=5 // pred_check_branch
      %1062 = sbr.rel (%p1059) target = $region12
    $region11: #{moco_forward.1} parent=5 // pred_region
      %s1063 = ssub.s32 %s81, 1
      // Predicated region
      $region13: #{moco_forward.1} parent=11 // pred_check
        %p1064 = pneg %p102
      $region14: #{moco_forward.1} parent=11 // pred_check_branch
        %1066 = sbr.rel (%p1064) target = $region16
      $region15: #{moco_forward.1} parent=11 // pred_region
        _
      $region16: #{moco_forward.1} parent=11 // pred_fallthru
        _
      // Predicated region
      $region17: #{moco_forward.1} parent=11 // pred_check
        %p1067 = pneg %p123
      $region18: #{moco_forward.1} parent=11 // pred_check_branch
        %1069 = sbr.rel (%p1067) target = $region20
      $region19: #{moco_forward.1} parent=11 // pred_region
        _
      $region20: #{moco_forward.1} parent=11 // pred_fallthru
        _
      // Predicated region
      $region21: #{moco_forward.1} parent=11 // pred_check
        %p1070 = pneg %p144
      $region22: #{moco_forward.1} parent=11 // pred_check_branch
        %1072 = sbr.rel (%p1070) target = $region24
      $region23: #{moco_forward.1} parent=11 // pred_region
        _
      $region24: #{moco_forward.1} parent=11 // pred_fallthru
        _
      // Predicated region
      $region25: #{moco_forward.1} parent=11 // pred_check
        %p1073 = pneg %p165
      $region26: #{moco_forward.1} parent=11 // pred_check_branch
        %1075 = sbr.rel (%p1073) target = $region28
      $region27: #{moco_forward.1} parent=11 // pred_region
        _
      $region28: #{moco_forward.1} parent=11 // pred_fallthru
        _
    $region12: #{moco_forward.1} parent=5 // pred_fallthru
      _
    %p1076 = scmp.lt.s32.totalorder %s81, 2
    // Predicated region
    $region29: #{moco_forward.1} parent=5 // pred_check
      %p1077 = pneg %p1076
    $region30: #{moco_forward.1} parent=5 // pred_check_branch
      %1079 = sbr.rel (%p1077) target = $region32
    $region31: #{moco_forward.1} parent=5 // pred_region
      // Predicated region
      $region33: #{moco_forward.1} parent=31 // pred_check
        %p1080 = pneg %p185
      $region34: #{moco_forward.1} parent=31 // pred_check_branch
        %1082 = sbr.rel (%p1080) target = $region36
      $region35: #{moco_forward.1} parent=31 // pred_region
        %p1083 = scmp.lt.s32.totalorder %s81, 1
        %s1084 = scalar_select %p1083, %s81, 1
        %s1085 = smul.addr %s1084, 16
        %s1086 = smul.addr %s1085, 8
        %s1087 = scalar_lea.vmem %s9, %s1086
      $region36: #{moco_forward.1} parent=31 // pred_fallthru
        _
      // Predicated region
      $region37: #{moco_forward.1} parent=31 // pred_check
        %p1088 = pneg %p211
      $region38: #{moco_forward.1} parent=31 // pred_check_branch
        %1090 = sbr.rel (%p1088) target = $region40
      $region39: #{moco_forward.1} parent=31 // pred_region
        %p1091 = scmp.lt.s32.totalorder %s81, 1
        %s1092 = scalar_select %p1091, %s81, 1
        %s1093 = smul.addr %s1092, 16
        %s1094 = smul.addr %s1093, 4
        %s1095 = scalar_lea.vmem %s11, %s1094
      $region40: #{moco_forward.1} parent=31 // pred_fallthru
        _
      // Predicated region
      $region41: #{moco_forward.1} parent=31 // pred_check
        %p1096 = pneg %p237
      $region42: #{moco_forward.1} parent=31 // pred_check_branch
        %1098 = sbr.rel (%p1096) target = $region44
      $region43: #{moco_forward.1} parent=31 // pred_region
        %p1099 = scmp.lt.s32.totalorder %s81, 1
        %s1100 = scalar_select %p1099, %s81, 1
        %s1101 = scalar_lea.vmem %s13, %s1100
      $region44: #{moco_forward.1} parent=31 // pred_fallthru
        _
      // Predicated region
      $region45: #{moco_forward.1} parent=31 // pred_check
        %p1102 = pneg %p263
      $region46: #{moco_forward.1} parent=31 // pred_check_branch
        %1104 = sbr.rel (%p1102) target = $region48
      $region47: #{moco_forward.1} parent=31 // pred_region
        %p1105 = scmp.lt.s32.totalorder %s81, 1
        %s1106 = scalar_select %p1105, %s81, 1
        %s1107 = scalar_lea.vmem %s15, %s1106
      $region48: #{moco_forward.1} parent=31 // pred_fallthru
        _
      // Predicated region
      $region49: #{moco_forward.1} parent=31 // pred_check
        %p1108 = pneg %p289
      $region50: #{moco_forward.1} parent=31 // pred_check_branch
        %1110 = sbr.rel (%p1108) target = $region52
      $region51: #{moco_forward.1} parent=31 // pred_region
        %p1111 = scmp.lt.s32.totalorder %s81, 1
        %s1112 = scalar_select %p1111, %s81, 1
        %s1113 = scalar_lea.vmem %s17, %s1112
      $region52: #{moco_forward.1} parent=31 // pred_fallthru
        _
      // Predicated region
      $region53: #{moco_forward.1} parent=31 // pred_check
        %p1114 = pneg %p315
      $region54: #{moco_forward.1} parent=31 // pred_check_branch
        %1116 = sbr.rel (%p1114) target = $region56
      $region55: #{moco_forward.1} parent=31 // pred_region
        %p1117 = scmp.lt.s32.totalorder %s81, 1
        %s1118 = scalar_select %p1117, %s81, 1
        %s1119 = smul.addr %s1118, 49
        %s1120 = scalar_lea.vmem %s19, %s1119
      $region56: #{moco_forward.1} parent=31 // pred_fallthru
        _
      // Predicated region
      $region57: #{moco_forward.1} parent=31 // pred_check
        %p1121 = pneg %p341
      $region58: #{moco_forward.1} parent=31 // pred_check_branch
        %1123 = sbr.rel (%p1121) target = $region60
      $region59: #{moco_forward.1} parent=31 // pred_region
        %p1124 = scmp.lt.s32.totalorder %s81, 1
        %s1125 = scalar_select %p1124, %s81, 1
        %s1126 = scalar_lea.vmem %s21, %s1125
      $region60: #{moco_forward.1} parent=31 // pred_fallthru
        _
      // Predicated region
      $region61: #{moco_forward.1} parent=31 // pred_check
        %p1127 = pneg %p367
      $region62: #{moco_forward.1} parent=31 // pred_check_branch
        %1129 = sbr.rel (%p1127) target = $region64
      $region63: #{moco_forward.1} parent=31 // pred_region
        %p1130 = scmp.lt.s32.totalorder %s81, 1
        %s1131 = scalar_select %p1130, %s81, 1
        %s1132 = scalar_lea.vmem %s23, %s1131
      $region64: #{moco_forward.1} parent=31 // pred_fallthru
        _
      // Predicated region
      $region65: #{moco_forward.1} parent=31 // pred_check
        %p1133 = pneg %p393
      $region66: #{moco_forward.1} parent=31 // pred_check_branch
        %1135 = sbr.rel (%p1133) target = $region68
      $region67: #{moco_forward.1} parent=31 // pred_region
        %p1136 = scmp.lt.s32.totalorder %s81, 1
        %s1137 = scalar_select %p1136, %s81, 1
        %s1138 = scalar_lea.vmem %s25, %s1137
      $region68: #{moco_forward.1} parent=31 // pred_fallthru
        _
      // Predicated region
      $region69: #{moco_forward.1} parent=31 // pred_check
        %p1139 = pneg %p419
      $region70: #{moco_forward.1} parent=31 // pred_check_branch
        %1141 = sbr.rel (%p1139) target = $region72
      $region71: #{moco_forward.1} parent=31 // pred_region
        %p1142 = scmp.lt.s32.totalorder %s81, 1
        %s1143 = scalar_select %p1142, %s81, 1
        %s1144 = smul.addr %s1143, 16
        %s1145 = smul.addr %s1144, 4
        %s1146 = scalar_lea.vmem %s27, %s1145
      $region72: #{moco_forward.1} parent=31 // pred_fallthru
        _
      // Predicated region
      $region73: #{moco_forward.1} parent=31 // pred_check
        %p1147 = pneg %p445
      $region74: #{moco_forward.1} parent=31 // pred_check_branch
        %1149 = sbr.rel (%p1147) target = $region76
      $region75: #{moco_forward.1} parent=31 // pred_region
        %p1150 = scmp.lt.s32.totalorder %s81, 1
        %s1151 = scalar_select %p1150, %s81, 1
        %s1152 = scalar_lea.vmem %s29, %s1151
      $region76: #{moco_forward.1} parent=31 // pred_fallthru
        _
      // Predicated region
      $region77: #{moco_forward.1} parent=31 // pred_check
        %p1153 = pneg %p471
      $region78: #{moco_forward.1} parent=31 // pred_check_branch
        %1155 = sbr.rel (%p1153) target = $region80
      $region79: #{moco_forward.1} parent=31 // pred_region
        %p1156 = scmp.lt.s32.totalorder %s81, 1
        %s1157 = scalar_select %p1156, %s81, 1
        %s1158 = smul.addr %s1157, 16
        %s1159 = smul.addr %s1158, 4
        %s1160 = scalar_lea.vmem %s31, %s1159
      $region80: #{moco_forward.1} parent=31 // pred_fallthru
        _
      // Predicated region
      $region81: #{moco_forward.1} parent=31 // pred_check
        %p1161 = pneg %p497
      $region82: #{moco_forward.1} parent=31 // pred_check_branch
        %1163 = sbr.rel (%p1161) target = $region84
      $region83: #{moco_forward.1} parent=31 // pred_region
        %p1164 = scmp.lt.s32.totalorder %s81, 1
        %s1165 = scalar_select %p1164, %s81, 1
        %s1166 = scalar_lea.vmem %s33, %s1165
      $region84: #{moco_forward.1} parent=31 // pred_fallthru
        _
      // Predicated region
      $region85: #{moco_forward.1} parent=31 // pred_check
        %p1167 = pneg %p523
      $region86: #{moco_forward.1} parent=31 // pred_check_branch
        %1169 = sbr.rel (%p1167) target = $region88
      $region87: #{moco_forward.1} parent=31 // pred_region
        %p1170 = scmp.lt.s32.totalorder %s81, 1
        %s1171 = scalar_select %p1170, %s81, 1
        %s1172 = scalar_lea.vmem %s35, %s1171
      $region88: #{moco_forward.1} parent=31 // pred_fallthru
        _
      // Predicated region
      $region89: #{moco_forward.1} parent=31 // pred_check
        %p1173 = pneg %p549
      $region90: #{moco_forward.1} parent=31 // pred_check_branch
        %1175 = sbr.rel (%p1173) target = $region92
      $region91: #{moco_forward.1} parent=31 // pred_region
        %p1176 = scmp.lt.s32.totalorder %s81, 1
        %s1177 = scalar_select %p1176, %s81, 1
        %s1178 = scalar_lea.vmem %s37, %s1177
      $region92: #{moco_forward.1} parent=31 // pred_fallthru
        _
      // Predicated region
      $region93: #{moco_forward.1} parent=31 // pred_check
        %p1179 = pneg %p575
      $region94: #{moco_forward.1} parent=31 // pred_check_branch
        %1181 = sbr.rel (%p1179) target = $region96
      $region95: #{moco_forward.1} parent=31 // pred_region
        %p1182 = scmp.lt.s32.totalorder %s81, 1
        %s1183 = scalar_select %p1182, %s81, 1
        %s1184 = scalar_lea.vmem %s39, %s1183
      $region96: #{moco_forward.1} parent=31 // pred_fallthru
        _
      // Predicated region
      $region97: #{moco_forward.1} parent=31 // pred_check
        %p1185 = pneg %p601
      $region98: #{moco_forward.1} parent=31 // pred_check_branch
        %1187 = sbr.rel (%p1185) target = $region100
      $region99: #{moco_forward.1} parent=31 // pred_region
        %p1188 = scmp.lt.s32.totalorder %s81, 1
        %s1189 = scalar_select %p1188, %s81, 1
        %s1190 = smul.addr %s1189, 64
        %s1191 = smul.addr %s1190, 4
        %s1192 = scalar_lea.vmem %s41, %s1191
      $region100: #{moco_forward.1} parent=31 // pred_fallthru
        _
      // Predicated region
      $region101: #{moco_forward.1} parent=31 // pred_check
        %p1193 = pneg %p627
      $region102: #{moco_forward.1} parent=31 // pred_check_branch
        %1195 = sbr.rel (%p1193) target = $region104
      $region103: #{moco_forward.1} parent=31 // pred_region
        %p1196 = scmp.lt.s32.totalorder %s81, 1
        %s1197 = scalar_select %p1196, %s81, 1
        %s1198 = scalar_lea.vmem %s43, %s1197
      $region104: #{moco_forward.1} parent=31 // pred_fallthru
        _
      // Predicated region
      $region105: #{moco_forward.1} parent=31 // pred_check
        %p1199 = pneg %p653
      $region106: #{moco_forward.1} parent=31 // pred_check_branch
        %1201 = sbr.rel (%p1199) target = $region108
      $region107: #{moco_forward.1} parent=31 // pred_region
        %p1202 = scmp.lt.s32.totalorder %s81, 1
        %s1203 = scalar_select %p1202, %s81, 1
        %s1204 = smul.addr %s1203, 49
        %s1205 = scalar_lea.vmem %s45, %s1204
      $region108: #{moco_forward.1} parent=31 // pred_fallthru
        _
      // Predicated region
      $region109: #{moco_forward.1} parent=31 // pred_check
        %p1206 = pneg %p679
      $region110: #{moco_forward.1} parent=31 // pred_check_branch
        %1208 = sbr.rel (%p1206) target = $region112
      $region111: #{moco_forward.1} parent=31 // pred_region
        %p1209 = scmp.lt.s32.totalorder %s81, 1
        %s1210 = scalar_select %p1209, %s81, 1
        %s1211 = scalar_lea.vmem %s47, %s1210
      $region112: #{moco_forward.1} parent=31 // pred_fallthru
        _
      // Predicated region
      $region113: #{moco_forward.1} parent=31 // pred_check
        %p1212 = pneg %p705
      $region114: #{moco_forward.1} parent=31 // pred_check_branch
        %1214 = sbr.rel (%p1212) target = $region116
      $region115: #{moco_forward.1} parent=31 // pred_region
        %p1215 = scmp.lt.s32.totalorder %s81, 1
        %s1216 = scalar_select %p1215, %s81, 1
        %s1217 = scalar_lea.vmem %s49, %s1216
      $region116: #{moco_forward.1} parent=31 // pred_fallthru
        _
      // Predicated region
      $region117: #{moco_forward.1} parent=31 // pred_check
        %p1218 = pneg %p731
      $region118: #{moco_forward.1} parent=31 // pred_check_branch
        %1220 = sbr.rel (%p1218) target = $region120
      $region119: #{moco_forward.1} parent=31 // pred_region
        %p1221 = scmp.lt.s32.totalorder %s81, 1
        %s1222 = scalar_select %p1221, %s81, 1
        %s1223 = scalar_lea.vmem %s51, %s1222
      $region120: #{moco_forward.1} parent=31 // pred_fallthru
        _
      // Predicated region
      $region121: #{moco_forward.1} parent=31 // pred_check
        %p1224 = pneg %p757
      $region122: #{moco_forward.1} parent=31 // pred_check_branch
        %1226 = sbr.rel (%p1224) target = $region124
      $region123: #{moco_forward.1} parent=31 // pred_region
        %p1227 = scmp.lt.s32.totalorder %s81, 1
        %s1228 = scalar_select %p1227, %s81, 1
        %s1229 = smul.addr %s1228, 16
        %s1230 = smul.addr %s1229, 4
        %s1231 = scalar_lea.vmem %s53, %s1230
      $region124: #{moco_forward.1} parent=31 // pred_fallthru
        _
      // Predicated region
      $region125: #{moco_forward.1} parent=31 // pred_check
        %p1232 = pneg %p783
      $region126: #{moco_forward.1} parent=31 // pred_check_branch
        %1234 = sbr.rel (%p1232) target = $region128
      $region127: #{moco_forward.1} parent=31 // pred_region
        %p1235 = scmp.lt.s32.totalorder %s81, 1
        %s1236 = scalar_select %p1235, %s81, 1
        %s1237 = scalar_lea.vmem %s55, %s1236
      $region128: #{moco_forward.1} parent=31 // pred_fallthru
        _
      // Predicated region
      $region129: #{moco_forward.1} parent=31 // pred_check
        %p1238 = pneg %p809
      $region130: #{moco_forward.1} parent=31 // pred_check_branch
        %1240 = sbr.rel (%p1238) target = $region132
      $region131: #{moco_forward.1} parent=31 // pred_region
        %p1241 = scmp.lt.s32.totalorder %s81, 1
        %s1242 = scalar_select %p1241, %s81, 1
        %s1243 = smul.addr %s1242, 16
        %s1244 = smul.addr %s1243, 4
        %s1245 = scalar_lea.vmem %s57, %s1244
      $region132: #{moco_forward.1} parent=31 // pred_fallthru
        _
      // Predicated region
      $region133: #{moco_forward.1} parent=31 // pred_check
        %p1246 = pneg %p835
      $region134: #{moco_forward.1} parent=31 // pred_check_branch
        %1248 = sbr.rel (%p1246) target = $region136
      $region135: #{moco_forward.1} parent=31 // pred_region
        %p1249 = scmp.lt.s32.totalorder %s81, 1
        %s1250 = scalar_select %p1249, %s81, 1
        %s1251 = scalar_lea.vmem %s59, %s1250
      $region136: #{moco_forward.1} parent=31 // pred_fallthru
        _
      // Predicated region
      $region137: #{moco_forward.1} parent=31 // pred_check
        %p1252 = pneg %p861
      $region138: #{moco_forward.1} parent=31 // pred_check_branch
        %1254 = sbr.rel (%p1252) target = $region140
      $region139: #{moco_forward.1} parent=31 // pred_region
        %p1255 = scmp.lt.s32.totalorder %s81, 1
        %s1256 = scalar_select %p1255, %s81, 1
        %s1257 = scalar_lea.vmem %s61, %s1256
      $region140: #{moco_forward.1} parent=31 // pred_fallthru
        _
      // Predicated region
      $region141: #{moco_forward.1} parent=31 // pred_check
        %p1258 = pneg %p887
      $region142: #{moco_forward.1} parent=31 // pred_check_branch
        %1260 = sbr.rel (%p1258) target = $region144
      $region143: #{moco_forward.1} parent=31 // pred_region
        %p1261 = scmp.lt.s32.totalorder %s81, 1
        %s1262 = scalar_select %p1261, %s81, 1
        %s1263 = scalar_lea.vmem %s63, %s1262
      $region144: #{moco_forward.1} parent=31 // pred_fallthru
        _
      // Predicated region
      $region145: #{moco_forward.1} parent=31 // pred_check
        %p1264 = pneg %p913
      $region146: #{moco_forward.1} parent=31 // pred_check_branch
        %1266 = sbr.rel (%p1264) target = $region148
      $region147: #{moco_forward.1} parent=31 // pred_region
        %p1267 = scmp.lt.s32.totalorder %s81, 1
        %s1268 = scalar_select %p1267, %s81, 1
        %s1269 = scalar_lea.vmem %s65, %s1268
      $region148: #{moco_forward.1} parent=31 // pred_fallthru
        _
      // Predicated region
      $region149: #{moco_forward.1} parent=31 // pred_check
        %p1270 = pneg %p939
      $region150: #{moco_forward.1} parent=31 // pred_check_branch
        %1272 = sbr.rel (%p1270) target = $region152
      $region151: #{moco_forward.1} parent=31 // pred_region
        %p1273 = scmp.lt.s32.totalorder %s81, 1
        %s1274 = scalar_select %p1273, %s81, 1
        %s1275 = smul.addr %s1274, 16
        %s1276 = smul.addr %s1275, 4
        %s1277 = scalar_lea.vmem %s67, %s1276
      $region152: #{moco_forward.1} parent=31 // pred_fallthru
        _
      // Predicated region
      $region153: #{moco_forward.1} parent=31 // pred_check
        %p1278 = pneg %p965
      $region154: #{moco_forward.1} parent=31 // pred_check_branch
        %1280 = sbr.rel (%p1278) target = $region156
      $region155: #{moco_forward.1} parent=31 // pred_region
        %p1281 = scmp.lt.s32.totalorder %s81, 1
        %s1282 = scalar_select %p1281, %s81, 1
        %s1283 = scalar_lea.vmem %s69, %s1282
      $region156: #{moco_forward.1} parent=31 // pred_fallthru
        _
      // Predicated region
      $region157: #{moco_forward.1} parent=31 // pred_check
        %p1284 = pneg %p991
      $region158: #{moco_forward.1} parent=31 // pred_check_branch
        %1286 = sbr.rel (%p1284) target = $region160
      $region159: #{moco_forward.1} parent=31 // pred_region
        %p1287 = scmp.lt.s32.totalorder %s81, 1
        %s1288 = scalar_select %p1287, %s81, 1
        %s1289 = smul.addr %s1288, 16
        %s1290 = smul.addr %s1289, 4
        %s1291 = scalar_lea.vmem %s71, %s1290
      $region160: #{moco_forward.1} parent=31 // pred_fallthru
        _
      // Predicated region
      $region161: #{moco_forward.1} parent=31 // pred_check
        %p1292 = pneg %p1017
      $region162: #{moco_forward.1} parent=31 // pred_check_branch
        %1294 = sbr.rel (%p1292) target = $region164
      $region163: #{moco_forward.1} parent=31 // pred_region
        %p1295 = scmp.lt.s32.totalorder %s81, 1
        %s1296 = scalar_select %p1295, %s81, 1
        %s1297 = scalar_lea.vmem %s73, %s1296
      $region164: #{moco_forward.1} parent=31 // pred_fallthru
        _
    $region32: #{moco_forward.1} parent=5 // pred_fallthru
      _
    %p1298 = scmp.le.s32.totalorder 1, %s81
    %p1299 = scmp.lt.s32.totalorder %s81, 3
    %p1300 = pnand %p1298, %p1299
    %p1301 = pneg %p1300
    // Predicated region
    $region165: #{moco_forward.1} parent=5 // pred_check
      _
    $region166: #{moco_forward.1} parent=5 // pred_check_branch
      %1303 = sbr.rel (%p1300) target = $region168
    $region167: #{moco_forward.1} parent=5 // pred_region
      %s1304 = ssub.s32 %s81, 1
      %p1305 = pneg %p102
      %p1306 = pneg %p99
      %p1307 = pneg %p123
      %p1308 = pneg %p120
      %p1309 = pneg %p144
      %p1310 = pneg %p141
      %p1311 = pneg %p165
      %p1312 = pneg %p162
      %p1313 = scmp.lt.s32.totalorder %s86, 1
      %s1314 = scalar_select %p1313, %s86, 1
      %s1315 = smul.addr %s1314, 16
      %s1316 = smul.addr %s1315, 8
      %s1317 = scalar_lea.vmem %s9, %s1316
      %p1318 = pneg %p191
      %p1319 = pneg %p188
      %p1320 = scmp.lt.s32.totalorder %s86, 1
      %s1321 = scalar_select %p1320, %s86, 1
      %s1322 = smul.addr %s1321, 16
      %s1323 = smul.addr %s1322, 4
      %s1324 = scalar_lea.vmem %s11, %s1323
      %p1325 = pneg %p217
      %p1326 = pneg %p214
      %p1327 = scmp.lt.s32.totalorder %s86, 1
      %s1328 = scalar_select %p1327, %s86, 1
      %s1329 = scalar_lea.vmem %s13, %s1328
      %p1330 = pneg %p243
      %p1331 = pneg %p240
      %p1332 = scmp.lt.s32.totalorder %s86, 1
      %s1333 = scalar_select %p1332, %s86, 1
      %s1334 = scalar_lea.vmem %s15, %s1333
      %p1335 = pneg %p269
      %p1336 = pneg %p266
      %p1337 = scmp.lt.s32.totalorder %s86, 1
      %s1338 = scalar_select %p1337, %s86, 1
      %s1339 = scalar_lea.vmem %s17, %s1338
      %p1340 = pneg %p295
      %p1341 = pneg %p292
      %p1342 = scmp.lt.s32.totalorder %s86, 1
      %s1343 = scalar_select %p1342, %s86, 1
      %s1344 = smul.addr %s1343, 49
      %s1345 = scalar_lea.vmem %s19, %s1344
      %p1346 = pneg %p321
      %p1347 = pneg %p318
      %p1348 = scmp.lt.s32.totalorder %s86, 1
      %s1349 = scalar_select %p1348, %s86, 1
      %s1350 = scalar_lea.vmem %s21, %s1349
      %p1351 = pneg %p347
      %p1352 = pneg %p344
      %p1353 = scmp.lt.s32.totalorder %s86, 1
      %s1354 = scalar_select %p1353, %s86, 1
      %s1355 = scalar_lea.vmem %s23, %s1354
      %p1356 = pneg %p373
      %p1357 = pneg %p370
      %p1358 = scmp.lt.s32.totalorder %s86, 1
      %s1359 = scalar_select %p1358, %s86, 1
      %s1360 = scalar_lea.vmem %s25, %s1359
      %p1361 = pneg %p399
      %p1362 = pneg %p396
      %p1363 = scmp.lt.s32.totalorder %s86, 1
      %s1364 = scalar_select %p1363, %s86, 1
      %s1365 = smul.addr %s1364, 16
      %s1366 = smul.addr %s1365, 4
      %s1367 = scalar_lea.vmem %s27, %s1366
      %p1368 = pneg %p425
      %p1369 = pneg %p422
      %p1370 = scmp.lt.s32.totalorder %s86, 1
      %s1371 = scalar_select %p1370, %s86, 1
      %s1372 = scalar_lea.vmem %s29, %s1371
      %p1373 = pneg %p451
      %p1374 = pneg %p448
      %p1375 = scmp.lt.s32.totalorder %s86, 1
      %s1376 = scalar_select %p1375, %s86, 1
      %s1377 = smul.addr %s1376, 16
      %s1378 = smul.addr %s1377, 4
      %s1379 = scalar_lea.vmem %s31, %s1378
      %p1380 = pneg %p477
      %p1381 = pneg %p474
      %p1382 = scmp.lt.s32.totalorder %s86, 1
      %s1383 = scalar_select %p1382, %s86, 1
      %s1384 = scalar_lea.vmem %s33, %s1383
      %p1385 = pneg %p503
      %p1386 = pneg %p500
      %p1387 = scmp.lt.s32.totalorder %s86, 1
      %s1388 = scalar_select %p1387, %s86, 1
      %s1389 = scalar_lea.vmem %s35, %s1388
      %p1390 = pneg %p529
      %p1391 = pneg %p526
      %p1392 = scmp.lt.s32.totalorder %s86, 1
      %s1393 = scalar_select %p1392, %s86, 1
      %s1394 = scalar_lea.vmem %s37, %s1393
      %p1395 = pneg %p555
      %p1396 = pneg %p552
      %p1397 = scmp.lt.s32.totalorder %s86, 1
      %s1398 = scalar_select %p1397, %s86, 1
      %s1399 = scalar_lea.vmem %s39, %s1398
      %p1400 = pneg %p581
      %p1401 = pneg %p578
      %p1402 = scmp.lt.s32.totalorder %s86, 1
      %s1403 = scalar_select %p1402, %s86, 1
      %s1404 = smul.addr %s1403, 64
      %s1405 = smul.addr %s1404, 4
      %s1406 = scalar_lea.vmem %s41, %s1405
      %p1407 = pneg %p607
      %p1408 = pneg %p604
      %p1409 = scmp.lt.s32.totalorder %s86, 1
      %s1410 = scalar_select %p1409, %s86, 1
      %s1411 = scalar_lea.vmem %s43, %s1410
      %p1412 = pneg %p633
      %p1413 = pneg %p630
      %p1414 = scmp.lt.s32.totalorder %s86, 1
      %s1415 = scalar_select %p1414, %s86, 1
      %s1416 = smul.addr %s1415, 49
      %s1417 = scalar_lea.vmem %s45, %s1416
      %p1418 = pneg %p659
      %p1419 = pneg %p656
      %p1420 = scmp.lt.s32.totalorder %s86, 1
      %s1421 = scalar_select %p1420, %s86, 1
      %s1422 = scalar_lea.vmem %s47, %s1421
      %p1423 = pneg %p685
      %p1424 = pneg %p682
      %p1425 = scmp.lt.s32.totalorder %s86, 1
      %s1426 = scalar_select %p1425, %s86, 1
      %s1427 = scalar_lea.vmem %s49, %s1426
      %p1428 = pneg %p711
      %p1429 = pneg %p708
      %p1430 = scmp.lt.s32.totalorder %s86, 1
      %s1431 = scalar_select %p1430, %s86, 1
      %s1432 = scalar_lea.vmem %s51, %s1431
      %p1433 = pneg %p737
      %p1434 = pneg %p734
      %p1435 = scmp.lt.s32.totalorder %s86, 1
      %s1436 = scalar_select %p1435, %s86, 1
      %s1437 = smul.addr %s1436, 16
      %s1438 = smul.addr %s1437, 4
      %s1439 = scalar_lea.vmem %s53, %s1438
      %p1440 = pneg %p763
      %p1441 = pneg %p760
      %p1442 = scmp.lt.s32.totalorder %s86, 1
      %s1443 = scalar_select %p1442, %s86, 1
      %s1444 = scalar_lea.vmem %s55, %s1443
      %p1445 = pneg %p789
      %p1446 = pneg %p786
      %p1447 = scmp.lt.s32.totalorder %s86, 1
      %s1448 = scalar_select %p1447, %s86, 1
      %s1449 = smul.addr %s1448, 16
      %s1450 = smul.addr %s1449, 4
      %s1451 = scalar_lea.vmem %s57, %s1450
      %p1452 = pneg %p815
      %p1453 = pneg %p812
      %p1454 = scmp.lt.s32.totalorder %s86, 1
      %s1455 = scalar_select %p1454, %s86, 1
      %s1456 = scalar_lea.vmem %s59, %s1455
      %p1457 = pneg %p841
      %p1458 = pneg %p838
      %p1459 = scmp.lt.s32.totalorder %s86, 1
      %s1460 = scalar_select %p1459, %s86, 1
      %s1461 = scalar_lea.vmem %s61, %s1460
      %p1462 = pneg %p867
      %p1463 = pneg %p864
      %p1464 = scmp.lt.s32.totalorder %s86, 1
      %s1465 = scalar_select %p1464, %s86, 1
      %s1466 = scalar_lea.vmem %s63, %s1465
      %p1467 = pneg %p893
      %p1468 = pneg %p890
      %p1469 = scmp.lt.s32.totalorder %s86, 1
      %s1470 = scalar_select %p1469, %s86, 1
      %s1471 = scalar_lea.vmem %s65, %s1470
      %p1472 = pneg %p919
      %p1473 = pneg %p916
      %p1474 = scmp.lt.s32.totalorder %s86, 1
      %s1475 = scalar_select %p1474, %s86, 1
      %s1476 = smul.addr %s1475, 16
      %s1477 = smul.addr %s1476, 4
      %s1478 = scalar_lea.vmem %s67, %s1477
      %p1479 = pneg %p945
      %p1480 = pneg %p942
      %p1481 = scmp.lt.s32.totalorder %s86, 1
      %s1482 = scalar_select %p1481, %s86, 1
      %s1483 = scalar_lea.vmem %s69, %s1482
      %p1484 = pneg %p971
      %p1485 = pneg %p968
      %p1486 = scmp.lt.s32.totalorder %s86, 1
      %s1487 = scalar_select %p1486, %s86, 1
      %s1488 = smul.addr %s1487, 16
      %s1489 = smul.addr %s1488, 4
      %s1490 = scalar_lea.vmem %s71, %s1489
      %p1491 = pneg %p997
      %p1492 = pneg %p994
      %p1493 = scmp.lt.s32.totalorder %s86, 1
      %s1494 = scalar_select %p1493, %s86, 1
      %s1495 = scalar_lea.vmem %s73, %s1494
      %p1496 = pneg %p1023
      %p1497 = pneg %p1020
      %p1498 = pneg %p1049
      %p1499 = pneg %p1046
      %p1500 = scmp.lt.s32.totalorder %s86, 1
      %s1501 = scalar_select %p1500, %s86, 1
      %s1502 = smul.addr %s1501, 2
      %s1503 = scalar_lea.vmem %s75, %s1502
      %p1504 = scmp.lt.s32.totalorder %s86, 1
      %s1505 = scalar_select %p1504, %s86, 1
      %s1506 = smul.addr %s1505, 16
      %s1507 = smul.addr %s1506, 8
      %s1508 = scalar_lea.vmem %s9, %s1507
      %p1509 = scmp.lt.s32.totalorder %s86, 1
      %s1510 = scalar_select %p1509, %s86, 1
      %s1511 = smul.addr %s1510, 16
      %s1512 = smul.addr %s1511, 4
      %s1513 = scalar_lea.vmem %s11, %s1512
      %p1514 = scmp.lt.s32.totalorder %s86, 1
      %s1515 = scalar_select %p1514, %s86, 1
      %s1516 = scalar_lea.vmem %s13, %s1515
      %p1517 = scmp.lt.s32.totalorder %s86, 1
      %s1518 = scalar_select %p1517, %s86, 1
      %s1519 = scalar_lea.vmem %s15, %s1518
      %p1520 = scmp.lt.s32.totalorder %s86, 1
      %s1521 = scalar_select %p1520, %s86, 1
      %s1522 = scalar_lea.vmem %s17, %s1521
      %p1523 = scmp.lt.s32.totalorder %s86, 1
      %s1524 = scalar_select %p1523, %s86, 1
      %s1525 = smul.addr %s1524, 49
      %s1526 = scalar_lea.vmem %s19, %s1525
      %p1527 = scmp.lt.s32.totalorder %s86, 1
      %s1528 = scalar_select %p1527, %s86, 1
      %s1529 = scalar_lea.vmem %s21, %s1528
      %p1530 = scmp.lt.s32.totalorder %s86, 1
      %s1531 = scalar_select %p1530, %s86, 1
      %s1532 = scalar_lea.vmem %s23, %s1531
      %p1533 = scmp.lt.s32.totalorder %s86, 1
      %s1534 = scalar_select %p1533, %s86, 1
      %s1535 = scalar_lea.vmem %s25, %s1534
      %p1536 = scmp.lt.s32.totalorder %s86, 1
      %s1537 = scalar_select %p1536, %s86, 1
      %s1538 = smul.addr %s1537, 16
      %s1539 = smul.addr %s1538, 4
      %s1540 = scalar_lea.vmem %s27, %s1539
      %p1541 = scmp.lt.s32.totalorder %s86, 1
      %s1542 = scalar_select %p1541, %s86, 1
      %s1543 = scalar_lea.vmem %s29, %s1542
      %p1544 = scmp.lt.s32.totalorder %s86, 1
      %s1545 = scalar_select %p1544, %s86, 1
      %s1546 = smul.addr %s1545, 16
      %s1547 = smul.addr %s1546, 4
      %s1548 = scalar_lea.vmem %s31, %s1547
      %p1549 = scmp.lt.s32.totalorder %s86, 1
      %s1550 = scalar_select %p1549, %s86, 1
      %s1551 = scalar_lea.vmem %s33, %s1550
      %p1552 = scmp.lt.s32.totalorder %s86, 1
      %s1553 = scalar_select %p1552, %s86, 1
      %s1554 = scalar_lea.vmem %s35, %s1553
      %p1555 = scmp.lt.s32.totalorder %s86, 1
      %s1556 = scalar_select %p1555, %s86, 1
      %s1557 = scalar_lea.vmem %s37, %s1556
      %p1558 = scmp.lt.s32.totalorder %s86, 1
      %s1559 = scalar_select %p1558, %s86, 1
      %s1560 = scalar_lea.vmem %s39, %s1559
      %p1561 = scmp.lt.s32.totalorder %s86, 1
      %s1562 = scalar_select %p1561, %s86, 1
      %s1563 = smul.addr %s1562, 64
      %s1564 = smul.addr %s1563, 4
      %s1565 = scalar_lea.vmem %s41, %s1564
      %p1566 = scmp.lt.s32.totalorder %s86, 1
      %s1567 = scalar_select %p1566, %s86, 1
      %s1568 = scalar_lea.vmem %s43, %s1567
      %p1569 = scmp.lt.s32.totalorder %s86, 1
      %s1570 = scalar_select %p1569, %s86, 1
      %s1571 = smul.addr %s1570, 49
      %s1572 = scalar_lea.vmem %s45, %s1571
      %p1573 = scmp.lt.s32.totalorder %s86, 1
      %s1574 = scalar_select %p1573, %s86, 1
      %s1575 = scalar_lea.vmem %s47, %s1574
      %p1576 = scmp.lt.s32.totalorder %s86, 1
      %s1577 = scalar_select %p1576, %s86, 1
      %s1578 = scalar_lea.vmem %s49, %s1577
      %p1579 = scmp.lt.s32.totalorder %s86, 1
      %s1580 = scalar_select %p1579, %s86, 1
      %s1581 = scalar_lea.vmem %s51, %s1580
      %p1582 = scmp.lt.s32.totalorder %s86, 1
      %s1583 = scalar_select %p1582, %s86, 1
      %s1584 = smul.addr %s1583, 16
      %s1585 = smul.addr %s1584, 4
      %s1586 = scalar_lea.vmem %s53, %s1585
      %p1587 = scmp.lt.s32.totalorder %s86, 1
      %s1588 = scalar_select %p1587, %s86, 1
      %s1589 = scalar_lea.vmem %s55, %s1588
      %p1590 = scmp.lt.s32.totalorder %s86, 1
      %s1591 = scalar_select %p1590, %s86, 1
      %s1592 = smul.addr %s1591, 16
      %s1593 = smul.addr %s1592, 4
      %s1594 = scalar_lea.vmem %s57, %s1593
      %p1595 = scmp.lt.s32.totalorder %s86, 1
      %s1596 = scalar_select %p1595, %s86, 1
      %s1597 = scalar_lea.vmem %s59, %s1596
      %p1598 = scmp.lt.s32.totalorder %s86, 1
      %s1599 = scalar_select %p1598, %s86, 1
      %s1600 = scalar_lea.vmem %s61, %s1599
      %p1601 = scmp.lt.s32.totalorder %s86, 1
      %s1602 = scalar_select %p1601, %s86, 1
      %s1603 = scalar_lea.vmem %s63, %s1602
      %p1604 = scmp.lt.s32.totalorder %s86, 1
      %s1605 = scalar_select %p1604, %s86, 1
      %s1606 = scalar_lea.vmem %s65, %s1605
      %p1607 = scmp.lt.s32.totalorder %s86, 1
      %s1608 = scalar_select %p1607, %s86, 1
      %s1609 = smul.addr %s1608, 16
      %s1610 = smul.addr %s1609, 4
      %s1611 = scalar_lea.vmem %s67, %s1610
      %p1612 = scmp.lt.s32.totalorder %s86, 1
      %s1613 = scalar_select %p1612, %s86, 1
      %s1614 = scalar_lea.vmem %s69, %s1613
      %p1615 = scmp.lt.s32.totalorder %s86, 1
      %s1616 = scalar_select %p1615, %s86, 1
      %s1617 = smul.addr %s1616, 16
      %s1618 = smul.addr %s1617, 4
      %s1619 = scalar_lea.vmem %s71, %s1618
      %p1620 = scmp.lt.s32.totalorder %s86, 1
      %s1621 = scalar_select %p1620, %s86, 1
      %s1622 = scalar_lea.vmem %s73, %s1621
      %p1623 = scmp.lt.s32.totalorder %s86, 1
      %s1624 = scalar_select %p1623, %s86, 1
      %s1625 = smul.addr %s1624, 2
      %s1626 = scalar_lea.vmem %s75, %s1625
      %v1628 = vld [vmem:[%s1508] sm:$0xff]
      %v1629 = vld [vmem:[%s1508 + $0x8] sm:$0xff]
      %v1630 = vld [vmem:[%s1508 + $0x10] sm:$0xff]
      %v1631 = vld [vmem:[%s1508 + $0x18] sm:$0xff]
      %v1632 = vld [vmem:[%s1508 + $0x20] sm:$0xff]
      %v1633 = vld [vmem:[%s1508 + $0x28] sm:$0xff]
      %v1634 = vld [vmem:[%s1508 + $0x30] sm:$0xff]
      %v1635 = vld [vmem:[%s1508 + $0x38] sm:$0xff]
      %v1636 = vld [vmem:[%s1508 + $0x40] sm:$0xff]
      %v1637 = vld [vmem:[%s1508 + $0x48] sm:$0xff]
      %v1638 = vld [vmem:[%s1508 + $0x50] sm:$0xff]
      %v1639 = vld [vmem:[%s1508 + $0x58] sm:$0xff]
      %v1640 = vld [vmem:[%s1508 + $0x60] sm:$0xff]
      %v1641 = vld [vmem:[%s1508 + $0x68] sm:$0xff]
      %v1642 = vld [vmem:[%s1508 + $0x70] sm:$0xff]
      %v1643 = vld [vmem:[%s1508 + $0x78] sm:$0xff]
      %v1644 = vld [vmem:[%s1513] sm:$0xf]
      %v1645 = vld [vmem:[%s1513 + $0x4] sm:$0xf]
      %v1646 = vld [vmem:[%s1513 + $0x8] sm:$0xf]
      %v1647 = vld [vmem:[%s1513 + $0xc] sm:$0xf]
      %v1648 = vld [vmem:[%s1513 + $0x10] sm:$0xf]
      %v1649 = vld [vmem:[%s1513 + $0x14] sm:$0xf]
      %v1650 = vld [vmem:[%s1513 + $0x18] sm:$0xf]
      %v1651 = vld [vmem:[%s1513 + $0x1c] sm:$0xf]
      %v1652 = vld [vmem:[%s1513 + $0x20] sm:$0xf]
      %v1653 = vld [vmem:[%s1513 + $0x24] sm:$0xf]
      %v1654 = vld [vmem:[%s1513 + $0x28] sm:$0xf]
      %v1655 = vld [vmem:[%s1513 + $0x2c] sm:$0xf]
      %v1656 = vld [vmem:[%s1513 + $0x30] sm:$0xf]
      %v1657 = vld [vmem:[%s1513 + $0x34] sm:$0xf]
      %v1658 = vld [vmem:[%s1513 + $0x38] sm:$0xf]
      %v1659 = vld [vmem:[%s1513 + $0x3c] sm:$0xf]
      %v1660 = vpack.c.bf16 %v1629, %v1628
      %v1661 = vpack.c.bf16 %v1631, %v1630
      %v1662 = vpack.c.bf16 %v1633, %v1632
      %v1663 = vpack.c.bf16 %v1635, %v1634
      %v1664 = vpack.c.bf16 %v1637, %v1636
      %v1665 = vpack.c.bf16 %v1639, %v1638
      %v1666 = vpack.c.bf16 %v1641, %v1640
      %v1667 = vpack.c.bf16 %v1643, %v1642
      %v1668 = vld [vmem:[%s1516] sm:$0x1]
      %v1670 = vlaneseq
      %v1671 = vshrl.u32 %v1670, 7
      %v1672 = vsub.s32 0, %v1671
      %v1673 = vrot.slane %v1668, %v1672
      %v1691 = vunpack.c.l.b16 %v1644
      %v1692 = vunpack.c.l.b16 %v1645
      %v1693 = vunpack.c.l.b16 %v1646
      %v1694 = vunpack.c.l.b16 %v1647
      %v1695 = vunpack.c.l.b16 %v1648
      %v1696 = vunpack.c.l.b16 %v1649
      %v1697 = vunpack.c.l.b16 %v1650
      %v1698 = vunpack.c.l.b16 %v1651
      %v1699 = vunpack.c.l.b16 %v1652
      %v1700 = vunpack.c.l.b16 %v1653
      %v1701 = vunpack.c.l.b16 %v1654
      %v1702 = vunpack.c.l.b16 %v1655
      %v1703 = vunpack.c.l.b16 %v1656
      %v1704 = vunpack.c.l.b16 %v1657
      %v1705 = vunpack.c.l.b16 %v1658
      %v1706 = vunpack.c.l.b16 %v1659
      %v1707 = vpack.c.b16 %v1692, %v1691
      %v1708 = vpack.c.b16 %v1694, %v1693
      %v1709 = vpack.c.b16 %v1696, %v1695
      %v1710 = vpack.c.b16 %v1698, %v1697
      %v1711 = vpack.c.b16 %v1700, %v1699
      %v1712 = vpack.c.b16 %v1702, %v1701
      %v1713 = vpack.c.b16 %v1704, %v1703
      %v1714 = vpack.c.b16 %v1706, %v1705
      %1723 = vmatprep.subr.bf16.mxu0 0
      %1724 = vmatpush1.bf16.msra.mxu0 %v1707
      %1725 = vmatprep.subr.bf16.mxu0 0
      %1726 = vmatpush1.bf16.msra.mxu0 %v1708
      %1727 = vmatprep.subr.bf16.mxu0 0
      %1728 = vmatpush1.bf16.msra.mxu0 %v1709
      %1729 = vmatprep.subr.bf16.mxu0 0
      %1730 = vmatpush1.bf16.msra.mxu0 %v1710
      %1731 = vmatprep.subr.bf16.mxu0 0
      %1732 = vmatpush1.bf16.msra.mxu0 %v1711
      %1733 = vmatprep.subr.bf16.mxu0 0
      %1734 = vmatpush1.bf16.msra.mxu0 %v1712
      %1735 = vmatprep.subr.bf16.mxu0 0
      %1736 = vmatpush1.bf16.msra.mxu0 %v1713
      %1737 = vmatprep.subr.bf16.mxu0 0
      %1738 = vmatpush1.bf16.msra.mxu0 %v1714
      %1739 = vmatprep.subr.bf16.mxu0 0
      %1740 = vmatpush1.bf16.msra.mxu0 0
      %1741 = vmatprep.subr.bf16.mxu0 0
      %1742 = vmatpush1.bf16.msra.mxu0 0
      %1743 = vmatprep.subr.bf16.mxu0 0
      %1744 = vmatpush1.bf16.msra.mxu0 0
      %1745 = vmatprep.subr.bf16.mxu0 0
      %1746 = vmatpush1.bf16.msra.mxu0 0
      %1747 = vmatprep.subr.bf16.mxu0 0
      %1748 = vmatpush1.bf16.msra.mxu0 0
      %1749 = vmatprep.subr.bf16.mxu0 0
      %1750 = vmatpush1.bf16.msra.mxu0 0
      %1751 = vmatprep.subr.bf16.mxu0 0
      %1752 = vmatpush1.bf16.msra.mxu0 0
      %1753 = vmatprep.subr.bf16.mxu0 0
      %1754 = vmatpush1.bf16.msra.mxu0 0
      %1755 = vmatprep.mubr.bf16.mxu0 0
      %1756 = vmatmul.mubr.bf16.gmra.mrb[0].mxu0 %v1660
      %v1757 = vpop.f32.mrb[0].mxu0
      %v1758 = vadd.f32 %v1673, %v1757
      %v1759 = vpop.f32.mrb[0].mxu0
      %v1760 = vpop.f32.mrb[0].mxu0
      %v1761 = vadd.f32 %v1673, %v1760
      %v1762 = vpop.f32.mrb[0].mxu0
      %1763 = vmatprep.mubr.bf16.mxu0 0
      %1764 = vmatmul.mubr.bf16.gmra.mrb[0].mxu0 %v1661
      %v1765 = vpop.f32.mrb[0].mxu0
      %v1766 = vadd.f32 %v1673, %v1765
      %v1767 = vpop.f32.mrb[0].mxu0
      %v1768 = vpop.f32.mrb[0].mxu0
      %v1769 = vadd.f32 %v1673, %v1768
      %v1770 = vpop.f32.mrb[0].mxu0
      %1771 = vmatprep.mubr.bf16.mxu0 0
      %1772 = vmatmul.mubr.bf16.gmra.mrb[0].mxu0 %v1662
      %v1773 = vpop.f32.mrb[0].mxu0
      %v1774 = vadd.f32 %v1673, %v1773
      %v1775 = vpop.f32.mrb[0].mxu0
      %v1776 = vpop.f32.mrb[0].mxu0
      %v1777 = vadd.f32 %v1673, %v1776
      %v1778 = vpop.f32.mrb[0].mxu0
      %1779 = vmatprep.mubr.bf16.mxu0 0
      %1780 = vmatmul.mubr.bf16.gmra.mrb[0].mxu0 %v1663
      %v1781 = vpop.f32.mrb[0].mxu0
      %v1782 = vadd.f32 %v1673, %v1781
      %v1783 = vpop.f32.mrb[0].mxu0
      %v1784 = vpop.f32.mrb[0].mxu0
      %v1785 = vadd.f32 %v1673, %v1784
      %v1786 = vpop.f32.mrb[0].mxu0
      %1787 = vmatprep.mubr.bf16.mxu0 0
      %1788 = vmatmul.mubr.bf16.gmra.mrb[0].mxu0 %v1664
      %v1789 = vpop.f32.mrb[0].mxu0
      %v1790 = vadd.f32 %v1673, %v1789
      %v1791 = vpop.f32.mrb[0].mxu0
      %v1792 = vpop.f32.mrb[0].mxu0
      %v1793 = vadd.f32 %v1673, %v1792
      %v1794 = vpop.f32.mrb[0].mxu0
      %1795 = vmatprep.mubr.bf16.mxu0 0
      %1796 = vmatmul.mubr.bf16.gmra.mrb[0].mxu0 %v1665
      %v1797 = vpop.f32.mrb[0].mxu0
      %v1798 = vadd.f32 %v1673, %v1797
      %v1799 = vpop.f32.mrb[0].mxu0
      %v1800 = vpop.f32.mrb[0].mxu0
      %v1801 = vadd.f32 %v1673, %v1800
      %v1802 = vpop.f32.mrb[0].mxu0
      %1803 = vmatprep.mubr.bf16.mxu0 0
      %1804 = vmatmul.mubr.bf16.gmra.mrb[0].mxu0 %v1666
      %v1805 = vpop.f32.mrb[0].mxu0
      %v1806 = vadd.f32 %v1673, %v1805
      %v1807 = vpop.f32.mrb[0].mxu0
      %v1808 = vpop.f32.mrb[0].mxu0
      %v1809 = vadd.f32 %v1673, %v1808
      %v1810 = vpop.f32.mrb[0].mxu0
      %1811 = vmatprep.mubr.bf16.mxu0 0
      %1812 = vmatmul.mubr.bf16.gmra.mrb[0].mxu0 %v1667
      %v1813 = vpop.f32.mrb[0].mxu0
      %v1814 = vadd.f32 %v1673, %v1813
      %v1815 = vpop.f32.mrb[0].mxu0
      %v1816 = vpop.f32.mrb[0].mxu0
      %v1817 = vadd.f32 %v1673, %v1816
      %v1818 = vpop.f32.mrb[0].mxu0
      %1819 = vdwg.mxu0
      %v1820 = vld [vmem:[%s1519] sm:$0x1]
      %v1821 = vld [vmem:[%s1522] sm:$0x1]
      %1822 = vadd.xlane.f32.xlu0 %v1758
      %v1823 = vpop.xlane.xlu0 %1822
      %1824 = vadd.xlane.f32.xlu0 %v1761
      %v1825 = vpop.xlane.xlu0 %1824
      %1826 = vadd.xlane.f32.xlu0 %v1766
      %v1827 = vpop.xlane.xlu0 %1826
      %1828 = vadd.xlane.f32.xlu0 %v1769
      %v1829 = vpop.xlane.xlu0 %1828
      %1830 = vadd.xlane.f32.xlu0 %v1774
      %v1831 = vpop.xlane.xlu0 %1830
      %1832 = vadd.xlane.f32.xlu0 %v1777
      %v1833 = vpop.xlane.xlu0 %1832
      %1834 = vadd.xlane.f32.xlu0 %v1782
      %v1835 = vpop.xlane.xlu0 %1834
      %1836 = vadd.xlane.f32.xlu0 %v1785
      %v1837 = vpop.xlane.xlu0 %1836
      %1838 = vadd.xlane.f32.xlu0 %v1790
      %v1839 = vpop.xlane.xlu0 %1838
      %1840 = vadd.xlane.f32.xlu0 %v1793
      %v1841 = vpop.xlane.xlu0 %1840
      %1842 = vadd.xlane.f32.xlu0 %v1798
      %v1843 = vpop.xlane.xlu0 %1842
      %1844 = vadd.xlane.f32.xlu0 %v1801
      %v1845 = vpop.xlane.xlu0 %1844
      %1846 = vadd.xlane.f32.xlu0 %v1806
      %v1847 = vpop.xlane.xlu0 %1846
      %1848 = vadd.xlane.f32.xlu0 %v1809
      %v1849 = vpop.xlane.xlu0 %1848
      %1850 = vadd.xlane.f32.xlu0 %v1814
      %v1851 = vpop.xlane.xlu0 %1850
      %1852 = vadd.xlane.f32.xlu0 %v1817
      %v1853 = vpop.xlane.xlu0 %1852
      %v1854 = vmul.f32 %v1823, 0.0625
      %v1855 = vmul.f32 %v1825, 0.0625
      %v1856 = vmul.f32 %v1827, 0.0625
      %v1857 = vmul.f32 %v1829, 0.0625
      %v1858 = vmul.f32 %v1831, 0.0625
      %v1859 = vmul.f32 %v1833, 0.0625
      %v1860 = vmul.f32 %v1835, 0.0625
      %v1861 = vmul.f32 %v1837, 0.0625
      %v1862 = vmul.f32 %v1839, 0.0625
      %v1863 = vmul.f32 %v1841, 0.0625
      %v1864 = vmul.f32 %v1843, 0.0625
      %v1865 = vmul.f32 %v1845, 0.0625
      %v1866 = vmul.f32 %v1847, 0.0625
      %v1867 = vmul.f32 %v1849, 0.0625
      %v1868 = vmul.f32 %v1851, 0.0625
      %v1869 = vmul.f32 %v1853, 0.0625
      %v1870 = vmul.f32 %v1758, %v1758
      %v1871 = vmul.f32 %v1761, %v1761
      %v1872 = vmul.f32 %v1766, %v1766
      %v1873 = vmul.f32 %v1769, %v1769
      %v1874 = vmul.f32 %v1774, %v1774
      %v1875 = vmul.f32 %v1777, %v1777
      %v1876 = vmul.f32 %v1782, %v1782
      %v1877 = vmul.f32 %v1785, %v1785
      %v1878 = vmul.f32 %v1790, %v1790
      %v1879 = vmul.f32 %v1793, %v1793
      %v1880 = vmul.f32 %v1798, %v1798
      %v1881 = vmul.f32 %v1801, %v1801
      %v1882 = vmul.f32 %v1806, %v1806
      %v1883 = vmul.f32 %v1809, %v1809
      %v1884 = vmul.f32 %v1814, %v1814
      %v1885 = vmul.f32 %v1817, %v1817
      %1886 = vadd.xlane.f32.xlu0 %v1870
      %v1887 = vpop.xlane.xlu0 %1886
      %1888 = vadd.xlane.f32.xlu0 %v1871
      %v1889 = vpop.xlane.xlu0 %1888
      %1890 = vadd.xlane.f32.xlu0 %v1872
      %v1891 = vpop.xlane.xlu0 %1890
      %1892 = vadd.xlane.f32.xlu0 %v1873
      %v1893 = vpop.xlane.xlu0 %1892
      %1894 = vadd.xlane.f32.xlu0 %v1874
      %v1895 = vpop.xlane.xlu0 %1894
      %1896 = vadd.xlane.f32.xlu0 %v1875
      %v1897 = vpop.xlane.xlu0 %1896
      %1898 = vadd.xlane.f32.xlu0 %v1876
      %v1899 = vpop.xlane.xlu0 %1898
      %1900 = vadd.xlane.f32.xlu0 %v1877
      %v1901 = vpop.xlane.xlu0 %1900
      %1902 = vadd.xlane.f32.xlu0 %v1878
      %v1903 = vpop.xlane.xlu0 %1902
      %1904 = vadd.xlane.f32.xlu0 %v1879
      %v1905 = vpop.xlane.xlu0 %1904
      %1906 = vadd.xlane.f32.xlu0 %v1880
      %v1907 = vpop.xlane.xlu0 %1906
      %1908 = vadd.xlane.f32.xlu0 %v1881
      %v1909 = vpop.xlane.xlu0 %1908
      %1910 = vadd.xlane.f32.xlu0 %v1882
      %v1911 = vpop.xlane.xlu0 %1910
      %1912 = vadd.xlane.f32.xlu0 %v1883
      %v1913 = vpop.xlane.xlu0 %1912
      %1914 = vadd.xlane.f32.xlu0 %v1884
      %v1915 = vpop.xlane.xlu0 %1914
      %1916 = vadd.xlane.f32.xlu0 %v1885
      %v1917 = vpop.xlane.xlu0 %1916
      %v1918 = vmul.f32 %v1887, 0.0625
      %v1919 = vmul.f32 %v1889, 0.0625
      %v1920 = vmul.f32 %v1891, 0.0625
      %v1921 = vmul.f32 %v1893, 0.0625
      %v1922 = vmul.f32 %v1895, 0.0625
      %v1923 = vmul.f32 %v1897, 0.0625
      %v1924 = vmul.f32 %v1899, 0.0625
      %v1925 = vmul.f32 %v1901, 0.0625
      %v1926 = vmul.f32 %v1903, 0.0625
      %v1927 = vmul.f32 %v1905, 0.0625
      %v1928 = vmul.f32 %v1907, 0.0625
      %v1929 = vmul.f32 %v1909, 0.0625
      %v1930 = vmul.f32 %v1911, 0.0625
      %v1931 = vmul.f32 %v1913, 0.0625
      %v1932 = vmul.f32 %v1915, 0.0625
      %v1933 = vmul.f32 %v1917, 0.0625
      %v1934 = vmul.f32 %v1854, %v1854
      %v1935 = vmul.f32 %v1855, %v1855
      %v1936 = vmul.f32 %v1856, %v1856
      %v1937 = vmul.f32 %v1857, %v1857
      %v1938 = vmul.f32 %v1858, %v1858
      %v1939 = vmul.f32 %v1859, %v1859
      %v1940 = vmul.f32 %v1860, %v1860
      %v1941 = vmul.f32 %v1861, %v1861
      %v1942 = vmul.f32 %v1862, %v1862
      %v1943 = vmul.f32 %v1863, %v1863
      %v1944 = vmul.f32 %v1864, %v1864
      %v1945 = vmul.f32 %v1865, %v1865
      %v1946 = vmul.f32 %v1866, %v1866
      %v1947 = vmul.f32 %v1867, %v1867
      %v1948 = vmul.f32 %v1868, %v1868
      %v1949 = vmul.f32 %v1869, %v1869
      %v1950 = vsub.f32 %v1918, %v1934
      %v1951 = vsub.f32 %v1919, %v1935
      %v1952 = vsub.f32 %v1920, %v1936
      %v1953 = vsub.f32 %v1921, %v1937
      %v1954 = vsub.f32 %v1922, %v1938
      %v1955 = vsub.f32 %v1923, %v1939
      %v1956 = vsub.f32 %v1924, %v1940
      %v1957 = vsub.f32 %v1925, %v1941
      %v1958 = vsub.f32 %v1926, %v1942
      %v1959 = vsub.f32 %v1927, %v1943
      %v1960 = vsub.f32 %v1928, %v1944
      %v1961 = vsub.f32 %v1929, %v1945
      %v1962 = vsub.f32 %v1930, %v1946
      %v1963 = vsub.f32 %v1931, %v1947
      %v1964 = vsub.f32 %v1932, %v1948
      %v1965 = vsub.f32 %v1933, %v1949
      %v1966 = vsub.f32 %v1758, %v1854
      %v1967 = vsub.f32 %v1761, %v1855
      %v1968 = vsub.f32 %v1766, %v1856
      %v1969 = vsub.f32 %v1769, %v1857
      %v1970 = vsub.f32 %v1774, %v1858
      %v1971 = vsub.f32 %v1777, %v1859
      %v1972 = vsub.f32 %v1782, %v1860
      %v1973 = vsub.f32 %v1785, %v1861
      %v1974 = vsub.f32 %v1790, %v1862
      %v1975 = vsub.f32 %v1793, %v1863
      %v1976 = vsub.f32 %v1798, %v1864
      %v1977 = vsub.f32 %v1801, %v1865
      %v1978 = vsub.f32 %v1806, %v1866
      %v1979 = vsub.f32 %v1809, %v1867
      %v1980 = vsub.f32 %v1814, %v1868
      %v1981 = vsub.f32 %v1817, %v1869
      %v1982 = vadd.f32 %v1950, 1e-06
      %v1983 = vadd.f32 %v1951, 1e-06
      %v1984 = vadd.f32 %v1952, 1e-06
      %v1985 = vadd.f32 %v1953, 1e-06
      %v1986 = vadd.f32 %v1954, 1e-06
      %v1987 = vadd.f32 %v1955, 1e-06
      %v1988 = vadd.f32 %v1956, 1e-06
      %v1989 = vadd.f32 %v1957, 1e-06
      %v1990 = vadd.f32 %v1958, 1e-06
      %v1991 = vadd.f32 %v1959, 1e-06
      %v1992 = vadd.f32 %v1960, 1e-06
      %v1993 = vadd.f32 %v1961, 1e-06
      %v1994 = vadd.f32 %v1962, 1e-06
      %v1995 = vadd.f32 %v1963, 1e-06
      %v1996 = vadd.f32 %v1964, 1e-06
      %v1997 = vadd.f32 %v1965, 1e-06
      %v1998 = vrsqrt.pop %v1982
      %v1999 = vrsqrt.pop %v1983
      %v2000 = vrsqrt.pop %v1984
      %v2001 = vrsqrt.pop %v1985
      %v2002 = vrsqrt.pop %v1986
      %v2003 = vrsqrt.pop %v1987
      %v2004 = vrsqrt.pop %v1988
      %v2005 = vrsqrt.pop %v1989
      %v2006 = vrsqrt.pop %v1990
      %v2007 = vrsqrt.pop %v1991
      %v2008 = vrsqrt.pop %v1992
      %v2009 = vrsqrt.pop %v1993
      %v2010 = vrsqrt.pop %v1994
      %v2011 = vrsqrt.pop %v1995
      %v2012 = vrsqrt.pop %v1996
      %v2013 = vrsqrt.pop %v1997
      %v2014 = vmul.f32 %v1966, %v1998
      %v2015 = vmul.f32 %v1967, %v1999
      %v2016 = vmul.f32 %v1968, %v2000
      %v2017 = vmul.f32 %v1969, %v2001
      %v2018 = vmul.f32 %v1970, %v2002
      %v2019 = vmul.f32 %v1971, %v2003
      %v2020 = vmul.f32 %v1972, %v2004
      %v2021 = vmul.f32 %v1973, %v2005
      %v2022 = vmul.f32 %v1974, %v2006
      %v2023 = vmul.f32 %v1975, %v2007
      %v2024 = vmul.f32 %v1976, %v2008
      %v2025 = vmul.f32 %v1977, %v2009
      %v2026 = vmul.f32 %v1978, %v2010
      %v2027 = vmul.f32 %v1979, %v2011
      %v2028 = vmul.f32 %v1980, %v2012
      %v2029 = vmul.f32 %v1981, %v2013
      %v2031 = vlaneseq
      %v2032 = vshrl.u32 %v2031, 7
      %v2033 = vsub.s32 0, %v2032
      %v2034 = vrot.slane %v1820, %v2033
      %v2036 = vmul.f32 %v2014, %v2034
      %v2037 = vmul.f32 %v2015, %v2034
      %v2038 = vmul.f32 %v2016, %v2034
      %v2039 = vmul.f32 %v2017, %v2034
      %v2040 = vmul.f32 %v2018, %v2034
      %v2041 = vmul.f32 %v2019, %v2034
      %v2042 = vmul.f32 %v2020, %v2034
      %v2043 = vmul.f32 %v2021, %v2034
      %v2044 = vmul.f32 %v2022, %v2034
      %v2045 = vmul.f32 %v2023, %v2034
      %v2046 = vmul.f32 %v2024, %v2034
      %v2047 = vmul.f32 %v2025, %v2034
      %v2048 = vmul.f32 %v2026, %v2034
      %v2049 = vmul.f32 %v2027, %v2034
      %v2050 = vmul.f32 %v2028, %v2034
      %v2051 = vmul.f32 %v2029, %v2034
      %v2053 = vlaneseq
      %v2054 = vshrl.u32 %v2053, 7
      %v2055 = vsub.s32 0, %v2054
      %v2056 = vrot.slane %v1821, %v2055
      %v2058 = vadd.f32 %v2036, %v2056
      %v2059 = vadd.f32 %v2037, %v2056
      %v2060 = vadd.f32 %v2038, %v2056
      %v2061 = vadd.f32 %v2039, %v2056
      %v2062 = vadd.f32 %v2040, %v2056
      %v2063 = vadd.f32 %v2041, %v2056
      %v2064 = vadd.f32 %v2042, %v2056
      %v2065 = vadd.f32 %v2043, %v2056
      %v2066 = vadd.f32 %v2044, %v2056
      %v2067 = vadd.f32 %v2045, %v2056
      %v2068 = vadd.f32 %v2046, %v2056
      %v2069 = vadd.f32 %v2047, %v2056
      %v2070 = vadd.f32 %v2048, %v2056
      %v2071 = vadd.f32 %v2049, %v2056
      %v2072 = vadd.f32 %v2050, %v2056
      %v2073 = vadd.f32 %v2051, %v2056
      %v2074 = vld [vmem:[%s1529] sm:$0x1]
      %v2075 = vld [vmem:[%s1532] sm:$0x1]
      %v2076 = vld [vmem:[%s1535] sm:$0x1]
      %v2077 = vld [vmem:[%s1540] sm:$0xf]
      %v2078 = vld [vmem:[%s1540 + $0x4] sm:$0xf]
      %v2079 = vld [vmem:[%s1540 + $0x8] sm:$0xf]
      %v2080 = vld [vmem:[%s1540 + $0xc] sm:$0xf]
      %v2081 = vld [vmem:[%s1540 + $0x10] sm:$0xf]
      %v2082 = vld [vmem:[%s1540 + $0x14] sm:$0xf]
      %v2083 = vld [vmem:[%s1540 + $0x18] sm:$0xf]
      %v2084 = vld [vmem:[%s1540 + $0x1c] sm:$0xf]
      %v2085 = vld [vmem:[%s1540 + $0x20] sm:$0xf]
      %v2086 = vld [vmem:[%s1540 + $0x24] sm:$0xf]
      %v2087 = vld [vmem:[%s1540 + $0x28] sm:$0xf]
      %v2088 = vld [vmem:[%s1540 + $0x2c] sm:$0xf]
      %v2089 = vld [vmem:[%s1540 + $0x30] sm:$0xf]
      %v2090 = vld [vmem:[%s1540 + $0x34] sm:$0xf]
      %v2091 = vld [vmem:[%s1540 + $0x38] sm:$0xf]
      %v2092 = vld [vmem:[%s1540 + $0x3c] sm:$0xf]
      %v2093 = vld [vmem:[%s1543] sm:$0x1]
      %v2094 = vld [vmem:[%s1548] sm:$0xf]
      %v2095 = vld [vmem:[%s1548 + $0x4] sm:$0xf]
      %v2096 = vld [vmem:[%s1548 + $0x8] sm:$0xf]
      %v2097 = vld [vmem:[%s1548 + $0xc] sm:$0xf]
      %v2098 = vld [vmem:[%s1548 + $0x10] sm:$0xf]
      %v2099 = vld [vmem:[%s1548 + $0x14] sm:$0xf]
      %v2100 = vld [vmem:[%s1548 + $0x18] sm:$0xf]
      %v2101 = vld [vmem:[%s1548 + $0x1c] sm:$0xf]
      %v2102 = vld [vmem:[%s1548 + $0x20] sm:$0xf]
      %v2103 = vld [vmem:[%s1548 + $0x24] sm:$0xf]
      %v2104 = vld [vmem:[%s1548 + $0x28] sm:$0xf]
      %v2105 = vld [vmem:[%s1548 + $0x2c] sm:$0xf]
      %v2106 = vld [vmem:[%s1548 + $0x30] sm:$0xf]
      %v2107 = vld [vmem:[%s1548 + $0x34] sm:$0xf]
      %v2108 = vld [vmem:[%s1548 + $0x38] sm:$0xf]
      %v2109 = vld [vmem:[%s1548 + $0x3c] sm:$0xf]
      %v2110 = vld [vmem:[%s1551] sm:$0x1]
      %v2111 = vld [vmem:[%s1554] sm:$0x1]
      %v2112 = vpack.c.bf16 %v2059, %v2058
      %v2113 = vpack.c.bf16 %v2061, %v2060
      %v2114 = vpack.c.bf16 %v2063, %v2062
      %v2115 = vpack.c.bf16 %v2065, %v2064
      %v2116 = vpack.c.bf16 %v2067, %v2066
      %v2117 = vpack.c.bf16 %v2069, %v2068
      %v2118 = vpack.c.bf16 %v2071, %v2070
      %v2119 = vpack.c.bf16 %v2073, %v2072
      loop: start=0, step=1, limit=49
      $region169: #{moco_forward.1} parent=167 // loop_pre_header
        _
      $region170: #{moco_forward.1} parent=167 // loop_header
        %s2121 = sphi 0, %s2125
        %p2122 = scmp.ge.s32.totalorder %s2121, 49
        %v2126 = vphi 0.0, %v2330
        %v2127 = vphi 0.0, %v2331
        %v2128 = vphi 0.0, %v2332
        %v2129 = vphi 0.0, %v2333
        %v2130 = vphi 0.0, %v2334
        %v2131 = vphi 0.0, %v2335
        %v2132 = vphi 0.0, %v2336
        %v2133 = vphi 0.0, %v2337
        %v2134 = vphi 0.0, %v2338
        %v2135 = vphi 0.0, %v2339
        %v2136 = vphi 0.0, %v2340
        %v2137 = vphi 0.0, %v2341
        %v2138 = vphi 0.0, %v2342
        %v2139 = vphi 0.0, %v2343
        %v2140 = vphi 0.0, %v2344
        %v2141 = vphi 0.0, %v2345
      $region171: #{moco_forward.1} parent=167 // loop_header_branch
        %2124 = sbr.rel (%p2122) target = $region175
      $region172: #{moco_forward.1} parent=167 // loop_body
        %s2142 = smul.u32 %s2121, 16
        %s2143 = smul.addr %s2142, 4
        %s2144 = scalar_lea.vmem %s1, %s2143
        %v2145 = vld [vmem:[%s2144] sm:$0xf]
        %v2146 = vld [vmem:[%s2144 + $0x4] sm:$0xf]
        %v2147 = vld [vmem:[%s2144 + $0x8] sm:$0xf]
        %v2148 = vld [vmem:[%s2144 + $0xc] sm:$0xf]
        %v2149 = vld [vmem:[%s2144 + $0x10] sm:$0xf]
        %v2150 = vld [vmem:[%s2144 + $0x14] sm:$0xf]
        %v2151 = vld [vmem:[%s2144 + $0x18] sm:$0xf]
        %v2152 = vld [vmem:[%s2144 + $0x1c] sm:$0xf]
        %v2153 = vld [vmem:[%s2144 + $0x20] sm:$0xf]
        %v2154 = vld [vmem:[%s2144 + $0x24] sm:$0xf]
        %v2155 = vld [vmem:[%s2144 + $0x28] sm:$0xf]
        %v2156 = vld [vmem:[%s2144 + $0x2c] sm:$0xf]
        %v2157 = vld [vmem:[%s2144 + $0x30] sm:$0xf]
        %v2158 = vld [vmem:[%s2144 + $0x34] sm:$0xf]
        %v2159 = vld [vmem:[%s2144 + $0x38] sm:$0xf]
        %v2160 = vld [vmem:[%s2144 + $0x3c] sm:$0xf]
        %v2177 = vunpack.c.l.b16 %v2145
        %v2178 = vunpack.c.l.b16 %v2146
        %v2179 = vunpack.c.l.b16 %v2147
        %v2180 = vunpack.c.l.b16 %v2148
        %v2181 = vunpack.c.l.b16 %v2149
        %v2182 = vunpack.c.l.b16 %v2150
        %v2183 = vunpack.c.l.b16 %v2151
        %v2184 = vunpack.c.l.b16 %v2152
        %v2185 = vunpack.c.l.b16 %v2153
        %v2186 = vunpack.c.l.b16 %v2154
        %v2187 = vunpack.c.l.b16 %v2155
        %v2188 = vunpack.c.l.b16 %v2156
        %v2189 = vunpack.c.l.b16 %v2157
        %v2190 = vunpack.c.l.b16 %v2158
        %v2191 = vunpack.c.l.b16 %v2159
        %v2192 = vunpack.c.l.b16 %v2160
        %v2193 = vpack.c.b16 %v2178, %v2177
        %v2194 = vpack.c.b16 %v2180, %v2179
        %v2195 = vpack.c.b16 %v2182, %v2181
        %v2196 = vpack.c.b16 %v2184, %v2183
        %v2197 = vpack.c.b16 %v2186, %v2185
        %v2198 = vpack.c.b16 %v2188, %v2187
        %v2199 = vpack.c.b16 %v2190, %v2189
        %v2200 = vpack.c.b16 %v2192, %v2191
        %2209 = vmatprep.subr.bf16.mxu0 0
        %2210 = vmatpush1.bf16.msra.mxu0 %v2112
        %2211 = vmatprep.subr.bf16.mxu0 0
        %2212 = vmatpush1.bf16.msra.mxu0 %v2113
        %2213 = vmatprep.subr.bf16.mxu0 0
        %2214 = vmatpush1.bf16.msra.mxu0 %v2114
        %2215 = vmatprep.subr.bf16.mxu0 0
        %2216 = vmatpush1.bf16.msra.mxu0 %v2115
        %2217 = vmatprep.subr.bf16.mxu0 0
        %2218 = vmatpush1.bf16.msra.mxu0 %v2116
        %2219 = vmatprep.subr.bf16.mxu0 0
        %2220 = vmatpush1.bf16.msra.mxu0 %v2117
        %2221 = vmatprep.subr.bf16.mxu0 0
        %2222 = vmatpush1.bf16.msra.mxu0 %v2118
        %2223 = vmatprep.subr.bf16.mxu0 0
        %2224 = vmatpush1.bf16.msra.mxu0 %v2119
        %2225 = vmatprep.subr.bf16.mxu0 0
        %2226 = vmatpush1.bf16.msra.mxu0 0
        %2227 = vmatprep.subr.bf16.mxu0 0
        %2228 = vmatpush1.bf16.msra.mxu0 0
        %2229 = vmatprep.subr.bf16.mxu0 0
        %2230 = vmatpush1.bf16.msra.mxu0 0
        %2231 = vmatprep.subr.bf16.mxu0 0
        %2232 = vmatpush1.bf16.msra.mxu0 0
        %2233 = vmatprep.subr.bf16.mxu0 0
        %2234 = vmatpush1.bf16.msra.mxu0 0
        %2235 = vmatprep.subr.bf16.mxu0 0
        %2236 = vmatpush1.bf16.msra.mxu0 0
        %2237 = vmatprep.subr.bf16.mxu0 0
        %2238 = vmatpush1.bf16.msra.mxu0 0
        %2239 = vmatprep.subr.bf16.mxu0 0
        %2240 = vmatpush1.bf16.msra.mxu0 0
        %2241 = vmatprep.mubr.bf16.mxu0 0
        %2242 = vmatmul.mubr.bf16.gmra.mrb[0].mxu0 %v2193
        %v2243 = vpop.f32.mrb[0].mxu0
        %v2244 = vadd.f32 0.0, %v2243
        %v2245 = vpop.f32.mrb[0].mxu0
        %v2246 = vpop.f32.mrb[0].mxu0
        %v2247 = vadd.f32 0.0, %v2246
        %v2248 = vpop.f32.mrb[0].mxu0
        %2249 = vmatprep.mubr.bf16.mxu0 0
        %2250 = vmatmul.mubr.bf16.gmra.mrb[0].mxu0 %v2194
        %v2251 = vpop.f32.mrb[0].mxu0
        %v2252 = vadd.f32 0.0, %v2251
        %v2253 = vpop.f32.mrb[0].mxu0
        %v2254 = vpop.f32.mrb[0].mxu0
        %v2255 = vadd.f32 0.0, %v2254
        %v2256 = vpop.f32.mrb[0].mxu0
        %2257 = vmatprep.mubr.bf16.mxu0 0
        %2258 = vmatmul.mubr.bf16.gmra.mrb[0].mxu0 %v2195
        %v2259 = vpop.f32.mrb[0].mxu0
        %v2260 = vadd.f32 0.0, %v2259
        %v2261 = vpop.f32.mrb[0].mxu0
        %v2262 = vpop.f32.mrb[0].mxu0
        %v2263 = vadd.f32 0.0, %v2262
        %v2264 = vpop.f32.mrb[0].mxu0
        %2265 = vmatprep.mubr.bf16.mxu0 0
        %2266 = vmatmul.mubr.bf16.gmra.mrb[0].mxu0 %v2196
        %v2267 = vpop.f32.mrb[0].mxu0
        %v2268 = vadd.f32 0.0, %v2267
        %v2269 = vpop.f32.mrb[0].mxu0
        %v2270 = vpop.f32.mrb[0].mxu0
        %v2271 = vadd.f32 0.0, %v2270
        %v2272 = vpop.f32.mrb[0].mxu0
        %2273 = vmatprep.mubr.bf16.mxu0 0
        %2274 = vmatmul.mubr.bf16.gmra.mrb[0].mxu0 %v2197
        %v2275 = vpop.f32.mrb[0].mxu0
        %v2276 = vadd.f32 0.0, %v2275
        %v2277 = vpop.f32.mrb[0].mxu0
        %v2278 = vpop.f32.mrb[0].mxu0
        %v2279 = vadd.f32 0.0, %v2278
        %v2280 = vpop.f32.mrb[0].mxu0
        %2281 = vmatprep.mubr.bf16.mxu0 0
        %2282 = vmatmul.mubr.bf16.gmra.mrb[0].mxu0 %v2198
        %v2283 = vpop.f32.mrb[0].mxu0
        %v2284 = vadd.f32 0.0, %v2283
        %v2285 = vpop.f32.mrb[0].mxu0
        %v2286 = vpop.f32.mrb[0].mxu0
        %v2287 = vadd.f32 0.0, %v2286
        %v2288 = vpop.f32.mrb[0].mxu0
        %2289 = vmatprep.mubr.bf16.mxu0 0
        %2290 = vmatmul.mubr.bf16.gmra.mrb[0].mxu0 %v2199
        %v2291 = vpop.f32.mrb[0].mxu0
        %v2292 = vadd.f32 0.0, %v2291
        %v2293 = vpop.f32.mrb[0].mxu0
        %v2294 = vpop.f32.mrb[0].mxu0
        %v2295 = vadd.f32 0.0, %v2294
        %v2296 = vpop.f32.mrb[0].mxu0
        %2297 = vmatprep.mubr.bf16.mxu0 0
        %2298 = vmatmul.mubr.bf16.gmra.mrb[0].mxu0 %v2200
        %v2299 = vpop.f32.mrb[0].mxu0
        %v2300 = vadd.f32 0.0, %v2299
        %v2301 = vpop.f32.mrb[0].mxu0
        %v2302 = vpop.f32.mrb[0].mxu0
        %v2303 = vadd.f32 0.0, %v2302
        %v2304 = vpop.f32.mrb[0].mxu0
        %2305 = vdwg.mxu0
        %s2306 = scalar_lea.vmem %s1526, %s2121
        %v2307 = vld [vmem:[%s2306] sm:$0x1]
        %v2309 = vlaneseq
        %v2310 = vshrl.u32 %v2309, 7
        %v2311 = vsub.s32 0, %v2310
        %v2312 = vrot.slane %v2307, %v2311
        %v2314 = vmul.f32 %v2244, %v2312
        %v2315 = vmul.f32 %v2247, %v2312
        %v2316 = vmul.f32 %v2252, %v2312
        %v2317 = vmul.f32 %v2255, %v2312
        %v2318 = vmul.f32 %v2260, %v2312
        %v2319 = vmul.f32 %v2263, %v2312
        %v2320 = vmul.f32 %v2268, %v2312
        %v2321 = vmul.f32 %v2271, %v2312
        %v2322 = vmul.f32 %v2276, %v2312
        %v2323 = vmul.f32 %v2279, %v2312
        %v2324 = vmul.f32 %v2284, %v2312
        %v2325 = vmul.f32 %v2287, %v2312
        %v2326 = vmul.f32 %v2292, %v2312
        %v2327 = vmul.f32 %v2295, %v2312
        %v2328 = vmul.f32 %v2300, %v2312
        %v2329 = vmul.f32 %v2303, %v2312
        %v2330 = vadd.f32 %v2126, %v2314
        %v2331 = vadd.f32 %v2127, %v2315
        %v2332 = vadd.f32 %v2128, %v2316
        %v2333 = vadd.f32 %v2129, %v2317
        %v2334 = vadd.f32 %v2130, %v2318
        %v2335 = vadd.f32 %v2131, %v2319
        %v2336 = vadd.f32 %v2132, %v2320
        %v2337 = vadd.f32 %v2133, %v2321
        %v2338 = vadd.f32 %v2134, %v2322
        %v2339 = vadd.f32 %v2135, %v2323
        %v2340 = vadd.f32 %v2136, %v2324
        %v2341 = vadd.f32 %v2137, %v2325
        %v2342 = vadd.f32 %v2138, %v2326
        %v2343 = vadd.f32 %v2139, %v2327
        %v2344 = vadd.f32 %v2140, %v2328
        %v2345 = vadd.f32 %v2141, %v2329
      $region173: #{moco_forward.1} parent=167 // loop_footer
        %s2125 = sadd.s32 1, %s2121
      $region174: #{moco_forward.1} parent=167 // loop_footer_branch
        %2120 = sbr.rel target = $region170
      $region175: #{moco_forward.1} parent=167 // loop_exit
        _
      %v2347 = vlaneseq
      %v2348 = vshrl.u32 %v2347, 7
      %v2349 = vsub.s32 0, %v2348
      %v2350 = vrot.slane %v2074, %v2349
      %v2352 = vadd.f32 %v2126, %v2350
      %v2353 = vadd.f32 %v2127, %v2350
      %v2354 = vadd.f32 %v2128, %v2350
      %v2355 = vadd.f32 %v2129, %v2350
      %v2356 = vadd.f32 %v2130, %v2350
      %v2357 = vadd.f32 %v2131, %v2350
      %v2358 = vadd.f32 %v2132, %v2350
      %v2359 = vadd.f32 %v2133, %v2350
      %v2360 = vadd.f32 %v2134, %v2350
      %v2361 = vadd.f32 %v2135, %v2350
      %v2362 = vadd.f32 %v2136, %v2350
      %v2363 = vadd.f32 %v2137, %v2350
      %v2364 = vadd.f32 %v2138, %v2350
      %v2365 = vadd.f32 %v2139, %v2350
      %v2366 = vadd.f32 %v2140, %v2350
      %v2367 = vadd.f32 %v2141, %v2350
      %2368 = vadd.xlane.f32.xlu0 %v2352
      %v2369 = vpop.xlane.xlu0 %2368
      %2370 = vadd.xlane.f32.xlu0 %v2353
      %v2371 = vpop.xlane.xlu0 %2370
      %2372 = vadd.xlane.f32.xlu0 %v2354
      %v2373 = vpop.xlane.xlu0 %2372
      %2374 = vadd.xlane.f32.xlu0 %v2355
      %v2375 = vpop.xlane.xlu0 %2374
      %2376 = vadd.xlane.f32.xlu0 %v2356
      %v2377 = vpop.xlane.xlu0 %2376
      %2378 = vadd.xlane.f32.xlu0 %v2357
      %v2379 = vpop.xlane.xlu0 %2378
      %2380 = vadd.xlane.f32.xlu0 %v2358
      %v2381 = vpop.xlane.xlu0 %2380
      %2382 = vadd.xlane.f32.xlu0 %v2359
      %v2383 = vpop.xlane.xlu0 %2382
      %2384 = vadd.xlane.f32.xlu0 %v2360
      %v2385 = vpop.xlane.xlu0 %2384
      %2386 = vadd.xlane.f32.xlu0 %v2361
      %v2387 = vpop.xlane.xlu0 %2386
      %2388 = vadd.xlane.f32.xlu0 %v2362
      %v2389 = vpop.xlane.xlu0 %2388
      %2390 = vadd.xlane.f32.xlu0 %v2363
      %v2391 = vpop.xlane.xlu0 %2390
      %2392 = vadd.xlane.f32.xlu0 %v2364
      %v2393 = vpop.xlane.xlu0 %2392
      %2394 = vadd.xlane.f32.xlu0 %v2365
      %v2395 = vpop.xlane.xlu0 %2394
      %2396 = vadd.xlane.f32.xlu0 %v2366
      %v2397 = vpop.xlane.xlu0 %2396
      %2398 = vadd.xlane.f32.xlu0 %v2367
      %v2399 = vpop.xlane.xlu0 %2398
      %v2400 = vmul.f32 %v2369, 0.0625
      %v2401 = vmul.f32 %v2371, 0.0625
      %v2402 = vmul.f32 %v2373, 0.0625
      %v2403 = vmul.f32 %v2375, 0.0625
      %v2404 = vmul.f32 %v2377, 0.0625
      %v2405 = vmul.f32 %v2379, 0.0625
      %v2406 = vmul.f32 %v2381, 0.0625
      %v2407 = vmul.f32 %v2383, 0.0625
      %v2408 = vmul.f32 %v2385, 0.0625
      %v2409 = vmul.f32 %v2387, 0.0625
      %v2410 = vmul.f32 %v2389, 0.0625
      %v2411 = vmul.f32 %v2391, 0.0625
      %v2412 = vmul.f32 %v2393, 0.0625
      %v2413 = vmul.f32 %v2395, 0.0625
      %v2414 = vmul.f32 %v2397, 0.0625
      %v2415 = vmul.f32 %v2399, 0.0625
      %v2416 = vmul.f32 %v2352, %v2352
      %v2417 = vmul.f32 %v2353, %v2353
      %v2418 = vmul.f32 %v2354, %v2354
      %v2419 = vmul.f32 %v2355, %v2355
      %v2420 = vmul.f32 %v2356, %v2356
      %v2421 = vmul.f32 %v2357, %v2357
      %v2422 = vmul.f32 %v2358, %v2358
      %v2423 = vmul.f32 %v2359, %v2359
      %v2424 = vmul.f32 %v2360, %v2360
      %v2425 = vmul.f32 %v2361, %v2361
      %v2426 = vmul.f32 %v2362, %v2362
      %v2427 = vmul.f32 %v2363, %v2363
      %v2428 = vmul.f32 %v2364, %v2364
      %v2429 = vmul.f32 %v2365, %v2365
      %v2430 = vmul.f32 %v2366, %v2366
      %v2431 = vmul.f32 %v2367, %v2367
      %2432 = vadd.xlane.f32.xlu0 %v2416
      %v2433 = vpop.xlane.xlu0 %2432
      %2434 = vadd.xlane.f32.xlu0 %v2417
      %v2435 = vpop.xlane.xlu0 %2434
      %2436 = vadd.xlane.f32.xlu0 %v2418
      %v2437 = vpop.xlane.xlu0 %2436
      %2438 = vadd.xlane.f32.xlu0 %v2419
      %v2439 = vpop.xlane.xlu0 %2438
      %2440 = vadd.xlane.f32.xlu0 %v2420
      %v2441 = vpop.xlane.xlu0 %2440
      %2442 = vadd.xlane.f32.xlu0 %v2421
      %v2443 = vpop.xlane.xlu0 %2442
      %2444 = vadd.xlane.f32.xlu0 %v2422
      %v2445 = vpop.xlane.xlu0 %2444
      %2446 = vadd.xlane.f32.xlu0 %v2423
      %v2447 = vpop.xlane.xlu0 %2446
      %2448 = vadd.xlane.f32.xlu0 %v2424
      %v2449 = vpop.xlane.xlu0 %2448
      %2450 = vadd.xlane.f32.xlu0 %v2425
      %v2451 = vpop.xlane.xlu0 %2450
      %2452 = vadd.xlane.f32.xlu0 %v2426
      %v2453 = vpop.xlane.xlu0 %2452
      %2454 = vadd.xlane.f32.xlu0 %v2427
      %v2455 = vpop.xlane.xlu0 %2454
      %2456 = vadd.xlane.f32.xlu0 %v2428
      %v2457 = vpop.xlane.xlu0 %2456
      %2458 = vadd.xlane.f32.xlu0 %v2429
      %v2459 = vpop.xlane.xlu0 %2458
      %2460 = vadd.xlane.f32.xlu0 %v2430
      %v2461 = vpop.xlane.xlu0 %2460
      %2462 = vadd.xlane.f32.xlu0 %v2431
      %v2463 = vpop.xlane.xlu0 %2462
      %v2464 = vmul.f32 %v2433, 0.0625
      %v2465 = vmul.f32 %v2435, 0.0625
      %v2466 = vmul.f32 %v2437, 0.0625
      %v2467 = vmul.f32 %v2439, 0.0625
      %v2468 = vmul.f32 %v2441, 0.0625
      %v2469 = vmul.f32 %v2443, 0.0625
      %v2470 = vmul.f32 %v2445, 0.0625
      %v2471 = vmul.f32 %v2447, 0.0625
      %v2472 = vmul.f32 %v2449, 0.0625
      %v2473 = vmul.f32 %v2451, 0.0625
      %v2474 = vmul.f32 %v2453, 0.0625
      %v2475 = vmul.f32 %v2455, 0.0625
      %v2476 = vmul.f32 %v2457, 0.0625
      %v2477 = vmul.f32 %v2459, 0.0625
      %v2478 = vmul.f32 %v2461, 0.0625
      %v2479 = vmul.f32 %v2463, 0.0625
      %v2480 = vmul.f32 %v2400, %v2400
      %v2481 = vmul.f32 %v2401, %v2401
      %v2482 = vmul.f32 %v2402, %v2402
      %v2483 = vmul.f32 %v2403, %v2403
      %v2484 = vmul.f32 %v2404, %v2404
      %v2485 = vmul.f32 %v2405, %v2405
      %v2486 = vmul.f32 %v2406, %v2406
      %v2487 = vmul.f32 %v2407, %v2407
      %v2488 = vmul.f32 %v2408, %v2408
      %v2489 = vmul.f32 %v2409, %v2409
      %v2490 = vmul.f32 %v2410, %v2410
      %v2491 = vmul.f32 %v2411, %v2411
      %v2492 = vmul.f32 %v2412, %v2412
      %v2493 = vmul.f32 %v2413, %v2413
      %v2494 = vmul.f32 %v2414, %v2414
      %v2495 = vmul.f32 %v2415, %v2415
      %v2496 = vsub.f32 %v2464, %v2480
      %v2497 = vsub.f32 %v2465, %v2481
      %v2498 = vsub.f32 %v2466, %v2482
      %v2499 = vsub.f32 %v2467, %v2483
      %v2500 = vsub.f32 %v2468, %v2484
      %v2501 = vsub.f32 %v2469, %v2485
      %v2502 = vsub.f32 %v2470, %v2486
      %v2503 = vsub.f32 %v2471, %v2487
      %v2504 = vsub.f32 %v2472, %v2488
      %v2505 = vsub.f32 %v2473, %v2489
      %v2506 = vsub.f32 %v2474, %v2490
      %v2507 = vsub.f32 %v2475, %v2491
      %v2508 = vsub.f32 %v2476, %v2492
      %v2509 = vsub.f32 %v2477, %v2493
      %v2510 = vsub.f32 %v2478, %v2494
      %v2511 = vsub.f32 %v2479, %v2495
      %v2512 = vsub.f32 %v2352, %v2400
      %v2513 = vsub.f32 %v2353, %v2401
      %v2514 = vsub.f32 %v2354, %v2402
      %v2515 = vsub.f32 %v2355, %v2403
      %v2516 = vsub.f32 %v2356, %v2404
      %v2517 = vsub.f32 %v2357, %v2405
      %v2518 = vsub.f32 %v2358, %v2406
      %v2519 = vsub.f32 %v2359, %v2407
      %v2520 = vsub.f32 %v2360, %v2408
      %v2521 = vsub.f32 %v2361, %v2409
      %v2522 = vsub.f32 %v2362, %v2410
      %v2523 = vsub.f32 %v2363, %v2411
      %v2524 = vsub.f32 %v2364, %v2412
      %v2525 = vsub.f32 %v2365, %v2413
      %v2526 = vsub.f32 %v2366, %v2414
      %v2527 = vsub.f32 %v2367, %v2415
      %v2528 = vadd.f32 %v2496, 1e-06
      %v2529 = vadd.f32 %v2497, 1e-06
      %v2530 = vadd.f32 %v2498, 1e-06
      %v2531 = vadd.f32 %v2499, 1e-06
      %v2532 = vadd.f32 %v2500, 1e-06
      %v2533 = vadd.f32 %v2501, 1e-06
      %v2534 = vadd.f32 %v2502, 1e-06
      %v2535 = vadd.f32 %v2503, 1e-06
      %v2536 = vadd.f32 %v2504, 1e-06
      %v2537 = vadd.f32 %v2505, 1e-06
      %v2538 = vadd.f32 %v2506, 1e-06
      %v2539 = vadd.f32 %v2507, 1e-06
      %v2540 = vadd.f32 %v2508, 1e-06
      %v2541 = vadd.f32 %v2509, 1e-06
      %v2542 = vadd.f32 %v2510, 1e-06
      %v2543 = vadd.f32 %v2511, 1e-06
      %v2544 = vrsqrt.pop %v2528
      %v2545 = vrsqrt.pop %v2529
      %v2546 = vrsqrt.pop %v2530
      %v2547 = vrsqrt.pop %v2531
      %v2548 = vrsqrt.pop %v2532
      %v2549 = vrsqrt.pop %v2533
      %v2550 = vrsqrt.pop %v2534
      %v2551 = vrsqrt.pop %v2535
      %v2552 = vrsqrt.pop %v2536
      %v2553 = vrsqrt.pop %v2537
      %v2554 = vrsqrt.pop %v2538
      %v2555 = vrsqrt.pop %v2539
      %v2556 = vrsqrt.pop %v2540
      %v2557 = vrsqrt.pop %v2541
      %v2558 = vrsqrt.pop %v2542
      %v2559 = vrsqrt.pop %v2543
      %v2560 = vmul.f32 %v2512, %v2544
      %v2561 = vmul.f32 %v2513, %v2545
      %v2562 = vmul.f32 %v2514, %v2546
      %v2563 = vmul.f32 %v2515, %v2547
      %v2564 = vmul.f32 %v2516, %v2548
      %v2565 = vmul.f32 %v2517, %v2549
      %v2566 = vmul.f32 %v2518, %v2550
      %v2567 = vmul.f32 %v2519, %v2551
      %v2568 = vmul.f32 %v2520, %v2552
      %v2569 = vmul.f32 %v2521, %v2553
      %v2570 = vmul.f32 %v2522, %v2554
      %v2571 = vmul.f32 %v2523, %v2555
      %v2572 = vmul.f32 %v2524, %v2556
      %v2573 = vmul.f32 %v2525, %v2557
      %v2574 = vmul.f32 %v2526, %v2558
      %v2575 = vmul.f32 %v2527, %v2559
      %v2577 = vlaneseq
      %v2578 = vshrl.u32 %v2577, 7
      %v2579 = vsub.s32 0, %v2578
      %v2580 = vrot.slane %v2075, %v2579
      %v2582 = vmul.f32 %v2560, %v2580
      %v2583 = vmul.f32 %v2561, %v2580
      %v2584 = vmul.f32 %v2562, %v2580
      %v2585 = vmul.f32 %v2563, %v2580
      %v2586 = vmul.f32 %v2564, %v2580
      %v2587 = vmul.f32 %v2565, %v2580
      %v2588 = vmul.f32 %v2566, %v2580
      %v2589 = vmul.f32 %v2567, %v2580
      %v2590 = vmul.f32 %v2568, %v2580
      %v2591 = vmul.f32 %v2569, %v2580
      %v2592 = vmul.f32 %v2570, %v2580
      %v2593 = vmul.f32 %v2571, %v2580
      %v2594 = vmul.f32 %v2572, %v2580
      %v2595 = vmul.f32 %v2573, %v2580
      %v2596 = vmul.f32 %v2574, %v2580
      %v2597 = vmul.f32 %v2575, %v2580
      %v2599 = vlaneseq
      %v2600 = vshrl.u32 %v2599, 7
      %v2601 = vsub.s32 0, %v2600
      %v2602 = vrot.slane %v2076, %v2601
      %v2604 = vadd.f32 %v2582, %v2602
      %v2605 = vadd.f32 %v2583, %v2602
      %v2606 = vadd.f32 %v2584, %v2602
      %v2607 = vadd.f32 %v2585, %v2602
      %v2608 = vadd.f32 %v2586, %v2602
      %v2609 = vadd.f32 %v2587, %v2602
      %v2610 = vadd.f32 %v2588, %v2602
      %v2611 = vadd.f32 %v2589, %v2602
      %v2612 = vadd.f32 %v2590, %v2602
      %v2613 = vadd.f32 %v2591, %v2602
      %v2614 = vadd.f32 %v2592, %v2602
      %v2615 = vadd.f32 %v2593, %v2602
      %v2616 = vadd.f32 %v2594, %v2602
      %v2617 = vadd.f32 %v2595, %v2602
      %v2618 = vadd.f32 %v2596, %v2602
      %v2619 = vadd.f32 %v2597, %v2602
      %v2620 = vpack.c.bf16 %v2605, %v2604
      %v2621 = vpack.c.bf16 %v2607, %v2606
      %v2622 = vpack.c.bf16 %v2609, %v2608
      %v2623 = vpack.c.bf16 %v2611, %v2610
      %v2624 = vpack.c.bf16 %v2613, %v2612
      %v2625 = vpack.c.bf16 %v2615, %v2614
      %v2626 = vpack.c.bf16 %v2617, %v2616
      %v2627 = vpack.c.bf16 %v2619, %v2618
      %v2629 = vlaneseq
      %v2630 = vshrl.u32 %v2629, 7
      %v2631 = vsub.s32 0, %v2630
      %v2632 = vrot.slane %v2093, %v2631
      %v2650 = vunpack.c.l.b16 %v2077
      %v2651 = vunpack.c.l.b16 %v2078
      %v2652 = vunpack.c.l.b16 %v2079
      %v2653 = vunpack.c.l.b16 %v2080
      %v2654 = vunpack.c.l.b16 %v2081
      %v2655 = vunpack.c.l.b16 %v2082
      %v2656 = vunpack.c.l.b16 %v2083
      %v2657 = vunpack.c.l.b16 %v2084
      %v2658 = vunpack.c.l.b16 %v2085
      %v2659 = vunpack.c.l.b16 %v2086
      %v2660 = vunpack.c.l.b16 %v2087
      %v2661 = vunpack.c.l.b16 %v2088
      %v2662 = vunpack.c.l.b16 %v2089
      %v2663 = vunpack.c.l.b16 %v2090
      %v2664 = vunpack.c.l.b16 %v2091
      %v2665 = vunpack.c.l.b16 %v2092
      %v2666 = vpack.c.b16 %v2651, %v2650
      %v2667 = vpack.c.b16 %v2653, %v2652
      %v2668 = vpack.c.b16 %v2655, %v2654
      %v2669 = vpack.c.b16 %v2657, %v2656
      %v2670 = vpack.c.b16 %v2659, %v2658
      %v2671 = vpack.c.b16 %v2661, %v2660
      %v2672 = vpack.c.b16 %v2663, %v2662
      %v2673 = vpack.c.b16 %v2665, %v2664
      %2682 = vmatprep.subr.bf16.mxu0 0
      %2683 = vmatpush1.bf16.msra.mxu0 %v2666
      %2684 = vmatprep.subr.bf16.mxu0 0
      %2685 = vmatpush1.bf16.msra.mxu0 %v2667
      %2686 = vmatprep.subr.bf16.mxu0 0
      %2687 = vmatpush1.bf16.msra.mxu0 %v2668
      %2688 = vmatprep.subr.bf16.mxu0 0
      %2689 = vmatpush1.bf16.msra.mxu0 %v2669
      %2690 = vmatprep.subr.bf16.mxu0 0
      %2691 = vmatpush1.bf16.msra.mxu0 %v2670
      %2692 = vmatprep.subr.bf16.mxu0 0
      %2693 = vmatpush1.bf16.msra.mxu0 %v2671
      %2694 = vmatprep.subr.bf16.mxu0 0
      %2695 = vmatpush1.bf16.msra.mxu0 %v2672
      %2696 = vmatprep.subr.bf16.mxu0 0
      %2697 = vmatpush1.bf16.msra.mxu0 %v2673
      %2698 = vmatprep.subr.bf16.mxu0 0
      %2699 = vmatpush1.bf16.msra.mxu0 0
      %2700 = vmatprep.subr.bf16.mxu0 0
      %2701 = vmatpush1.bf16.msra.mxu0 0
      %2702 = vmatprep.subr.bf16.mxu0 0
      %2703 = vmatpush1.bf16.msra.mxu0 0
      %2704 = vmatprep.subr.bf16.mxu0 0
      %2705 = vmatpush1.bf16.msra.mxu0 0
      %2706 = vmatprep.subr.bf16.mxu0 0
      %2707 = vmatpush1.bf16.msra.mxu0 0
      %2708 = vmatprep.subr.bf16.mxu0 0
      %2709 = vmatpush1.bf16.msra.mxu0 0
      %2710 = vmatprep.subr.bf16.mxu0 0
      %2711 = vmatpush1.bf16.msra.mxu0 0
      %2712 = vmatprep.subr.bf16.mxu0 0
      %2713 = vmatpush1.bf16.msra.mxu0 0
      %2714 = vmatprep.mubr.bf16.mxu0 0
      %2715 = vmatmul.mubr.bf16.gmra.mrb[0].mxu0 %v2620
      %v2716 = vpop.f32.mrb[0].mxu0
      %v2717 = vadd.f32 %v2632, %v2716
      %v2718 = vpop.f32.mrb[0].mxu0
      %v2719 = vpop.f32.mrb[0].mxu0
      %v2720 = vadd.f32 %v2632, %v2719
      %v2721 = vpop.f32.mrb[0].mxu0
      %2722 = vmatprep.mubr.bf16.mxu0 0
      %2723 = vmatmul.mubr.bf16.gmra.mrb[0].mxu0 %v2621
      %v2724 = vpop.f32.mrb[0].mxu0
      %v2725 = vadd.f32 %v2632, %v2724
      %v2726 = vpop.f32.mrb[0].mxu0
      %v2727 = vpop.f32.mrb[0].mxu0
      %v2728 = vadd.f32 %v2632, %v2727
      %v2729 = vpop.f32.mrb[0].mxu0
      %2730 = vmatprep.mubr.bf16.mxu0 0
      %2731 = vmatmul.mubr.bf16.gmra.mrb[0].mxu0 %v2622
      %v2732 = vpop.f32.mrb[0].mxu0
      %v2733 = vadd.f32 %v2632, %v2732
      %v2734 = vpop.f32.mrb[0].mxu0
      %v2735 = vpop.f32.mrb[0].mxu0
      %v2736 = vadd.f32 %v2632, %v2735
      %v2737 = vpop.f32.mrb[0].mxu0
      %2738 = vmatprep.mubr.bf16.mxu0 0
      %2739 = vmatmul.mubr.bf16.gmra.mrb[0].mxu0 %v2623
      %v2740 = vpop.f32.mrb[0].mxu0
      %v2741 = vadd.f32 %v2632, %v2740
      %v2742 = vpop.f32.mrb[0].mxu0
      %v2743 = vpop.f32.mrb[0].mxu0
      %v2744 = vadd.f32 %v2632, %v2743
      %v2745 = vpop.f32.mrb[0].mxu0
      %2746 = vmatprep.mubr.bf16.mxu0 0
      %2747 = vmatmul.mubr.bf16.gmra.mrb[0].mxu0 %v2624
      %v2748 = vpop.f32.mrb[0].mxu0
      %v2749 = vadd.f32 %v2632, %v2748
      %v2750 = vpop.f32.mrb[0].mxu0
      %v2751 = vpop.f32.mrb[0].mxu0
      %v2752 = vadd.f32 %v2632, %v2751
      %v2753 = vpop.f32.mrb[0].mxu0
      %2754 = vmatprep.mubr.bf16.mxu0 0
      %2755 = vmatmul.mubr.bf16.gmra.mrb[0].mxu0 %v2625
      %v2756 = vpop.f32.mrb[0].mxu0
      %v2757 = vadd.f32 %v2632, %v2756
      %v2758 = vpop.f32.mrb[0].mxu0
      %v2759 = vpop.f32.mrb[0].mxu0
      %v2760 = vadd.f32 %v2632, %v2759
      %v2761 = vpop.f32.mrb[0].mxu0
      %2762 = vmatprep.mubr.bf16.mxu0 0
      %2763 = vmatmul.mubr.bf16.gmra.mrb[0].mxu0 %v2626
      %v2764 = vpop.f32.mrb[0].mxu0
      %v2765 = vadd.f32 %v2632, %v2764
      %v2766 = vpop.f32.mrb[0].mxu0
      %v2767 = vpop.f32.mrb[0].mxu0
      %v2768 = vadd.f32 %v2632, %v2767
      %v2769 = vpop.f32.mrb[0].mxu0
      %2770 = vmatprep.mubr.bf16.mxu0 0
      %2771 = vmatmul.mubr.bf16.gmra.mrb[0].mxu0 %v2627
      %v2772 = vpop.f32.mrb[0].mxu0
      %v2773 = vadd.f32 %v2632, %v2772
      %v2774 = vpop.f32.mrb[0].mxu0
      %v2775 = vpop.f32.mrb[0].mxu0
      %v2776 = vadd.f32 %v2632, %v2775
      %v2777 = vpop.f32.mrb[0].mxu0
      %2778 = vdwg.mxu0
      %v2779 = vmul.f32 %v2717, 0.5
      %v2780 = vmul.f32 %v2720, 0.5
      %v2781 = vmul.f32 %v2725, 0.5
      %v2782 = vmul.f32 %v2728, 0.5
      %v2783 = vmul.f32 %v2733, 0.5
      %v2784 = vmul.f32 %v2736, 0.5
      %v2785 = vmul.f32 %v2741, 0.5
      %v2786 = vmul.f32 %v2744, 0.5
      %v2787 = vmul.f32 %v2749, 0.5
      %v2788 = vmul.f32 %v2752, 0.5
      %v2789 = vmul.f32 %v2757, 0.5
      %v2790 = vmul.f32 %v2760, 0.5
      %v2791 = vmul.f32 %v2765, 0.5
      %v2792 = vmul.f32 %v2768, 0.5
      %v2793 = vmul.f32 %v2773, 0.5
      %v2794 = vmul.f32 %v2776, 0.5
      %v2795 = vmul.f32 %v2717, 0.044715
      %v2796 = vmul.f32 %v2720, 0.044715
      %v2797 = vmul.f32 %v2725, 0.044715
      %v2798 = vmul.f32 %v2728, 0.044715
      %v2799 = vmul.f32 %v2733, 0.044715
      %v2800 = vmul.f32 %v2736, 0.044715
      %v2801 = vmul.f32 %v2741, 0.044715
      %v2802 = vmul.f32 %v2744, 0.044715
      %v2803 = vmul.f32 %v2749, 0.044715
      %v2804 = vmul.f32 %v2752, 0.044715
      %v2805 = vmul.f32 %v2757, 0.044715
      %v2806 = vmul.f32 %v2760, 0.044715
      %v2807 = vmul.f32 %v2765, 0.044715
      %v2808 = vmul.f32 %v2768, 0.044715
      %v2809 = vmul.f32 %v2773, 0.044715
      %v2810 = vmul.f32 %v2776, 0.044715
      %v2811 = vmul.f32 %v2795, %v2717
      %v2812 = vmul.f32 %v2796, %v2720
      %v2813 = vmul.f32 %v2797, %v2725
      %v2814 = vmul.f32 %v2798, %v2728
      %v2815 = vmul.f32 %v2799, %v2733
      %v2816 = vmul.f32 %v2800, %v2736
      %v2817 = vmul.f32 %v2801, %v2741
      %v2818 = vmul.f32 %v2802, %v2744
      %v2819 = vmul.f32 %v2803, %v2749
      %v2820 = vmul.f32 %v2804, %v2752
      %v2821 = vmul.f32 %v2805, %v2757
      %v2822 = vmul.f32 %v2806, %v2760
      %v2823 = vmul.f32 %v2807, %v2765
      %v2824 = vmul.f32 %v2808, %v2768
      %v2825 = vmul.f32 %v2809, %v2773
      %v2826 = vmul.f32 %v2810, %v2776
      %v2827 = vmul.f32 %v2811, %v2717
      %v2828 = vmul.f32 %v2812, %v2720
      %v2829 = vmul.f32 %v2813, %v2725
      %v2830 = vmul.f32 %v2814, %v2728
      %v2831 = vmul.f32 %v2815, %v2733
      %v2832 = vmul.f32 %v2816, %v2736
      %v2833 = vmul.f32 %v2817, %v2741
      %v2834 = vmul.f32 %v2818, %v2744
      %v2835 = vmul.f32 %v2819, %v2749
      %v2836 = vmul.f32 %v2820, %v2752
      %v2837 = vmul.f32 %v2821, %v2757
      %v2838 = vmul.f32 %v2822, %v2760
      %v2839 = vmul.f32 %v2823, %v2765
      %v2840 = vmul.f32 %v2824, %v2768
      %v2841 = vmul.f32 %v2825, %v2773
      %v2842 = vmul.f32 %v2826, %v2776
      %v2843 = vadd.f32 %v2717, %v2827
      %v2844 = vadd.f32 %v2720, %v2828
      %v2845 = vadd.f32 %v2725, %v2829
      %v2846 = vadd.f32 %v2728, %v2830
      %v2847 = vadd.f32 %v2733, %v2831
      %v2848 = vadd.f32 %v2736, %v2832
      %v2849 = vadd.f32 %v2741, %v2833
      %v2850 = vadd.f32 %v2744, %v2834
      %v2851 = vadd.f32 %v2749, %v2835
      %v2852 = vadd.f32 %v2752, %v2836
      %v2853 = vadd.f32 %v2757, %v2837
      %v2854 = vadd.f32 %v2760, %v2838
      %v2855 = vadd.f32 %v2765, %v2839
      %v2856 = vadd.f32 %v2768, %v2840
      %v2857 = vadd.f32 %v2773, %v2841
      %v2858 = vadd.f32 %v2776, %v2842
      %v2859 = vmul.f32 %v2843, 0.7978846
      %v2860 = vmul.f32 %v2844, 0.7978846
      %v2861 = vmul.f32 %v2845, 0.7978846
      %v2862 = vmul.f32 %v2846, 0.7978846
      %v2863 = vmul.f32 %v2847, 0.7978846
      %v2864 = vmul.f32 %v2848, 0.7978846
      %v2865 = vmul.f32 %v2849, 0.7978846
      %v2866 = vmul.f32 %v2850, 0.7978846
      %v2867 = vmul.f32 %v2851, 0.7978846
      %v2868 = vmul.f32 %v2852, 0.7978846
      %v2869 = vmul.f32 %v2853, 0.7978846
      %v2870 = vmul.f32 %v2854, 0.7978846
      %v2871 = vmul.f32 %v2855, 0.7978846
      %v2872 = vmul.f32 %v2856, 0.7978846
      %v2873 = vmul.f32 %v2857, 0.7978846
      %v2874 = vmul.f32 %v2858, 0.7978846
      %v2875 = vtanh.pop %v2859
      %v2876 = vtanh.pop %v2860
      %v2877 = vtanh.pop %v2861
      %v2878 = vtanh.pop %v2862
      %v2879 = vtanh.pop %v2863
      %v2880 = vtanh.pop %v2864
      %v2881 = vtanh.pop %v2865
      %v2882 = vtanh.pop %v2866
      %v2883 = vtanh.pop %v2867
      %v2884 = vtanh.pop %v2868
      %v2885 = vtanh.pop %v2869
      %v2886 = vtanh.pop %v2870
      %v2887 = vtanh.pop %v2871
      %v2888 = vtanh.pop %v2872
      %v2889 = vtanh.pop %v2873
      %v2890 = vtanh.pop %v2874
      %v2891 = vadd.f32 %v2875, 1.0
      %v2892 = vadd.f32 %v2876, 1.0
      %v2893 = vadd.f32 %v2877, 1.0
      %v2894 = vadd.f32 %v2878, 1.0
      %v2895 = vadd.f32 %v2879, 1.0
      %v2896 = vadd.f32 %v2880, 1.0
      %v2897 = vadd.f32 %v2881, 1.0
      %v2898 = vadd.f32 %v2882, 1.0
      %v2899 = vadd.f32 %v2883, 1.0
      %v2900 = vadd.f32 %v2884, 1.0
      %v2901 = vadd.f32 %v2885, 1.0
      %v2902 = vadd.f32 %v2886, 1.0
      %v2903 = vadd.f32 %v2887, 1.0
      %v2904 = vadd.f32 %v2888, 1.0
      %v2905 = vadd.f32 %v2889, 1.0
      %v2906 = vadd.f32 %v2890, 1.0
      %v2907 = vmul.f32 %v2779, %v2891
      %v2908 = vmul.f32 %v2780, %v2892
      %v2909 = vmul.f32 %v2781, %v2893
      %v2910 = vmul.f32 %v2782, %v2894
      %v2911 = vmul.f32 %v2783, %v2895
      %v2912 = vmul.f32 %v2784, %v2896
      %v2913 = vmul.f32 %v2785, %v2897
      %v2914 = vmul.f32 %v2786, %v2898
      %v2915 = vmul.f32 %v2787, %v2899
      %v2916 = vmul.f32 %v2788, %v2900
      %v2917 = vmul.f32 %v2789, %v2901
      %v2918 = vmul.f32 %v2790, %v2902
      %v2919 = vmul.f32 %v2791, %v2903
      %v2920 = vmul.f32 %v2792, %v2904
      %v2921 = vmul.f32 %v2793, %v2905
      %v2922 = vmul.f32 %v2794, %v2906
      %v2923 = vpack.c.bf16 %v2908, %v2907
      %v2924 = vpack.c.bf16 %v2910, %v2909
      %v2925 = vpack.c.bf16 %v2912, %v2911
      %v2926 = vpack.c.bf16 %v2914, %v2913
      %v2927 = vpack.c.bf16 %v2916, %v2915
      %v2928 = vpack.c.bf16 %v2918, %v2917
      %v2929 = vpack.c.bf16 %v2920, %v2919
      %v2930 = vpack.c.bf16 %v2922, %v2921
      %v2932 = vlaneseq
      %v2933 = vshrl.u32 %v2932, 7
      %v2934 = vsub.s32 0, %v2933
      %v2935 = vrot.slane %v2110, %v2934
      %v2953 = vunpack.c.l.b16 %v2094
      %v2954 = vunpack.c.l.b16 %v2095
      %v2955 = vunpack.c.l.b16 %v2096
      %v2956 = vunpack.c.l.b16 %v2097
      %v2957 = vunpack.c.l.b16 %v2098
      %v2958 = vunpack.c.l.b16 %v2099
      %v2959 = vunpack.c.l.b16 %v2100
      %v2960 = vunpack.c.l.b16 %v2101
      %v2961 = vunpack.c.l.b16 %v2102
      %v2962 = vunpack.c.l.b16 %v2103
      %v2963 = vunpack.c.l.b16 %v2104
      %v2964 = vunpack.c.l.b16 %v2105
      %v2965 = vunpack.c.l.b16 %v2106
      %v2966 = vunpack.c.l.b16 %v2107
      %v2967 = vunpack.c.l.b16 %v2108
      %v2968 = vunpack.c.l.b16 %v2109
      %v2969 = vpack.c.b16 %v2954, %v2953
      %v2970 = vpack.c.b16 %v2956, %v2955
      %v2971 = vpack.c.b16 %v2958, %v2957
      %v2972 = vpack.c.b16 %v2960, %v2959
      %v2973 = vpack.c.b16 %v2962, %v2961
      %v2974 = vpack.c.b16 %v2964, %v2963
      %v2975 = vpack.c.b16 %v2966, %v2965
      %v2976 = vpack.c.b16 %v2968, %v2967
      %2985 = vmatprep.subr.bf16.mxu0 0
      %2986 = vmatpush1.bf16.msra.mxu0 %v2969
      %2987 = vmatprep.subr.bf16.mxu0 0
      %2988 = vmatpush1.bf16.msra.mxu0 %v2970
      %2989 = vmatprep.subr.bf16.mxu0 0
      %2990 = vmatpush1.bf16.msra.mxu0 %v2971
      %2991 = vmatprep.subr.bf16.mxu0 0
      %2992 = vmatpush1.bf16.msra.mxu0 %v2972
      %2993 = vmatprep.subr.bf16.mxu0 0
      %2994 = vmatpush1.bf16.msra.mxu0 %v2973
      %2995 = vmatprep.subr.bf16.mxu0 0
      %2996 = vmatpush1.bf16.msra.mxu0 %v2974
      %2997 = vmatprep.subr.bf16.mxu0 0
      %2998 = vmatpush1.bf16.msra.mxu0 %v2975
      %2999 = vmatprep.subr.bf16.mxu0 0
      %3000 = vmatpush1.bf16.msra.mxu0 %v2976
      %3001 = vmatprep.subr.bf16.mxu0 0
      %3002 = vmatpush1.bf16.msra.mxu0 0
      %3003 = vmatprep.subr.bf16.mxu0 0
      %3004 = vmatpush1.bf16.msra.mxu0 0
      %3005 = vmatprep.subr.bf16.mxu0 0
      %3006 = vmatpush1.bf16.msra.mxu0 0
      %3007 = vmatprep.subr.bf16.mxu0 0
      %3008 = vmatpush1.bf16.msra.mxu0 0
      %3009 = vmatprep.subr.bf16.mxu0 0
      %3010 = vmatpush1.bf16.msra.mxu0 0
      %3011 = vmatprep.subr.bf16.mxu0 0
      %3012 = vmatpush1.bf16.msra.mxu0 0
      %3013 = vmatprep.subr.bf16.mxu0 0
      %3014 = vmatpush1.bf16.msra.mxu0 0
      %3015 = vmatprep.subr.bf16.mxu0 0
      %3016 = vmatpush1.bf16.msra.mxu0 0
      %3017 = vmatprep.mubr.bf16.mxu0 0
      %3018 = vmatmul.mubr.bf16.gmra.mrb[0].mxu0 %v2923
      %v3019 = vpop.f32.mrb[0].mxu0
      %v3020 = vadd.f32 %v2935, %v3019
      %v3021 = vpop.f32.mrb[0].mxu0
      %v3022 = vpop.f32.mrb[0].mxu0
      %v3023 = vadd.f32 %v2935, %v3022
      %v3024 = vpop.f32.mrb[0].mxu0
      %3025 = vmatprep.mubr.bf16.mxu0 0
      %3026 = vmatmul.mubr.bf16.gmra.mrb[0].mxu0 %v2924
      %v3027 = vpop.f32.mrb[0].mxu0
      %v3028 = vadd.f32 %v2935, %v3027
      %v3029 = vpop.f32.mrb[0].mxu0
      %v3030 = vpop.f32.mrb[0].mxu0
      %v3031 = vadd.f32 %v2935, %v3030
      %v3032 = vpop.f32.mrb[0].mxu0
      %3033 = vmatprep.mubr.bf16.mxu0 0
      %3034 = vmatmul.mubr.bf16.gmra.mrb[0].mxu0 %v2925
      %v3035 = vpop.f32.mrb[0].mxu0
      %v3036 = vadd.f32 %v2935, %v3035
      %v3037 = vpop.f32.mrb[0].mxu0
      %v3038 = vpop.f32.mrb[0].mxu0
      %v3039 = vadd.f32 %v2935, %v3038
      %v3040 = vpop.f32.mrb[0].mxu0
      %3041 = vmatprep.mubr.bf16.mxu0 0
      %3042 = vmatmul.mubr.bf16.gmra.mrb[0].mxu0 %v2926
      %v3043 = vpop.f32.mrb[0].mxu0
      %v3044 = vadd.f32 %v2935, %v3043
      %v3045 = vpop.f32.mrb[0].mxu0
      %v3046 = vpop.f32.mrb[0].mxu0
      %v3047 = vadd.f32 %v2935, %v3046
      %v3048 = vpop.f32.mrb[0].mxu0
      %3049 = vmatprep.mubr.bf16.mxu0 0
      %3050 = vmatmul.mubr.bf16.gmra.mrb[0].mxu0 %v2927
      %v3051 = vpop.f32.mrb[0].mxu0
      %v3052 = vadd.f32 %v2935, %v3051
      %v3053 = vpop.f32.mrb[0].mxu0
      %v3054 = vpop.f32.mrb[0].mxu0
      %v3055 = vadd.f32 %v2935, %v3054
      %v3056 = vpop.f32.mrb[0].mxu0
      %3057 = vmatprep.mubr.bf16.mxu0 0
      %3058 = vmatmul.mubr.bf16.gmra.mrb[0].mxu0 %v2928
      %v3059 = vpop.f32.mrb[0].mxu0
      %v3060 = vadd.f32 %v2935, %v3059
      %v3061 = vpop.f32.mrb[0].mxu0
      %v3062 = vpop.f32.mrb[0].mxu0
      %v3063 = vadd.f32 %v2935, %v3062
      %v3064 = vpop.f32.mrb[0].mxu0
      %3065 = vmatprep.mubr.bf16.mxu0 0
      %3066 = vmatmul.mubr.bf16.gmra.mrb[0].mxu0 %v2929
      %v3067 = vpop.f32.mrb[0].mxu0
      %v3068 = vadd.f32 %v2935, %v3067
      %v3069 = vpop.f32.mrb[0].mxu0
      %v3070 = vpop.f32.mrb[0].mxu0
      %v3071 = vadd.f32 %v2935, %v3070
      %v3072 = vpop.f32.mrb[0].mxu0
      %3073 = vmatprep.mubr.bf16.mxu0 0
      %3074 = vmatmul.mubr.bf16.gmra.mrb[0].mxu0 %v2930
      %v3075 = vpop.f32.mrb[0].mxu0
      %v3076 = vadd.f32 %v2935, %v3075
      %v3077 = vpop.f32.mrb[0].mxu0
      %v3078 = vpop.f32.mrb[0].mxu0
      %v3079 = vadd.f32 %v2935, %v3078
      %v3080 = vpop.f32.mrb[0].mxu0
      %3081 = vdwg.mxu0
      %v3083 = vlaneseq
      %v3084 = vshrl.u32 %v3083, 7
      %v3085 = vsub.s32 0, %v3084
      %v3086 = vrot.slane %v2111, %v3085
      %v3088 = vmul.f32 %v3086, %v3020
      %v3089 = vmul.f32 %v3086, %v3023
      %v3090 = vmul.f32 %v3086, %v3028
      %v3091 = vmul.f32 %v3086, %v3031
      %v3092 = vmul.f32 %v3086, %v3036
      %v3093 = vmul.f32 %v3086, %v3039
      %v3094 = vmul.f32 %v3086, %v3044
      %v3095 = vmul.f32 %v3086, %v3047
      %v3096 = vmul.f32 %v3086, %v3052
      %v3097 = vmul.f32 %v3086, %v3055
      %v3098 = vmul.f32 %v3086, %v3060
      %v3099 = vmul.f32 %v3086, %v3063
      %v3100 = vmul.f32 %v3086, %v3068
      %v3101 = vmul.f32 %v3086, %v3071
      %v3102 = vmul.f32 %v3086, %v3076
      %v3103 = vmul.f32 %v3086, %v3079
      %v3104 = vadd.f32 %v2058, %v3088
      %v3105 = vadd.f32 %v2059, %v3089
      %v3106 = vadd.f32 %v2060, %v3090
      %v3107 = vadd.f32 %v2061, %v3091
      %v3108 = vadd.f32 %v2062, %v3092
      %v3109 = vadd.f32 %v2063, %v3093
      %v3110 = vadd.f32 %v2064, %v3094
      %v3111 = vadd.f32 %v2065, %v3095
      %v3112 = vadd.f32 %v2066, %v3096
      %v3113 = vadd.f32 %v2067, %v3097
      %v3114 = vadd.f32 %v2068, %v3098
      %v3115 = vadd.f32 %v2069, %v3099
      %v3116 = vadd.f32 %v2070, %v3100
      %v3117 = vadd.f32 %v2071, %v3101
      %v3118 = vadd.f32 %v2072, %v3102
      %v3119 = vadd.f32 %v2073, %v3103
      %v3120 = vld [vmem:[%s1557] sm:$0x1]
      %v3121 = vld [vmem:[%s1560] sm:$0x1]
      %3122 = vadd.xlane.f32.xlu0 %v3104
      %v3123 = vpop.xlane.xlu0 %3122
      %3124 = vadd.xlane.f32.xlu0 %v3105
      %v3125 = vpop.xlane.xlu0 %3124
      %3126 = vadd.xlane.f32.xlu0 %v3106
      %v3127 = vpop.xlane.xlu0 %3126
      %3128 = vadd.xlane.f32.xlu0 %v3107
      %v3129 = vpop.xlane.xlu0 %3128
      %3130 = vadd.xlane.f32.xlu0 %v3108
      %v3131 = vpop.xlane.xlu0 %3130
      %3132 = vadd.xlane.f32.xlu0 %v3109
      %v3133 = vpop.xlane.xlu0 %3132
      %3134 = vadd.xlane.f32.xlu0 %v3110
      %v3135 = vpop.xlane.xlu0 %3134
      %3136 = vadd.xlane.f32.xlu0 %v3111
      %v3137 = vpop.xlane.xlu0 %3136
      %3138 = vadd.xlane.f32.xlu0 %v3112
      %v3139 = vpop.xlane.xlu0 %3138
      %3140 = vadd.xlane.f32.xlu0 %v3113
      %v3141 = vpop.xlane.xlu0 %3140
      %3142 = vadd.xlane.f32.xlu0 %v3114
      %v3143 = vpop.xlane.xlu0 %3142
      %3144 = vadd.xlane.f32.xlu0 %v3115
      %v3145 = vpop.xlane.xlu0 %3144
      %3146 = vadd.xlane.f32.xlu0 %v3116
      %v3147 = vpop.xlane.xlu0 %3146
      %3148 = vadd.xlane.f32.xlu0 %v3117
      %v3149 = vpop.xlane.xlu0 %3148
      %3150 = vadd.xlane.f32.xlu0 %v3118
      %v3151 = vpop.xlane.xlu0 %3150
      %3152 = vadd.xlane.f32.xlu0 %v3119
      %v3153 = vpop.xlane.xlu0 %3152
      %v3154 = vmul.f32 %v3123, 0.0625
      %v3155 = vmul.f32 %v3125, 0.0625
      %v3156 = vmul.f32 %v3127, 0.0625
      %v3157 = vmul.f32 %v3129, 0.0625
      %v3158 = vmul.f32 %v3131, 0.0625
      %v3159 = vmul.f32 %v3133, 0.0625
      %v3160 = vmul.f32 %v3135, 0.0625
      %v3161 = vmul.f32 %v3137, 0.0625
      %v3162 = vmul.f32 %v3139, 0.0625
      %v3163 = vmul.f32 %v3141, 0.0625
      %v3164 = vmul.f32 %v3143, 0.0625
      %v3165 = vmul.f32 %v3145, 0.0625
      %v3166 = vmul.f32 %v3147, 0.0625
      %v3167 = vmul.f32 %v3149, 0.0625
      %v3168 = vmul.f32 %v3151, 0.0625
      %v3169 = vmul.f32 %v3153, 0.0625
      %v3170 = vmul.f32 %v3104, %v3104
      %v3171 = vmul.f32 %v3105, %v3105
      %v3172 = vmul.f32 %v3106, %v3106
      %v3173 = vmul.f32 %v3107, %v3107
      %v3174 = vmul.f32 %v3108, %v3108
      %v3175 = vmul.f32 %v3109, %v3109
      %v3176 = vmul.f32 %v3110, %v3110
      %v3177 = vmul.f32 %v3111, %v3111
      %v3178 = vmul.f32 %v3112, %v3112
      %v3179 = vmul.f32 %v3113, %v3113
      %v3180 = vmul.f32 %v3114, %v3114
      %v3181 = vmul.f32 %v3115, %v3115
      %v3182 = vmul.f32 %v3116, %v3116
      %v3183 = vmul.f32 %v3117, %v3117
      %v3184 = vmul.f32 %v3118, %v3118
      %v3185 = vmul.f32 %v3119, %v3119
      %3186 = vadd.xlane.f32.xlu0 %v3170
      %v3187 = vpop.xlane.xlu0 %3186
      %3188 = vadd.xlane.f32.xlu0 %v3171
      %v3189 = vpop.xlane.xlu0 %3188
      %3190 = vadd.xlane.f32.xlu0 %v3172
      %v3191 = vpop.xlane.xlu0 %3190
      %3192 = vadd.xlane.f32.xlu0 %v3173
      %v3193 = vpop.xlane.xlu0 %3192
      %3194 = vadd.xlane.f32.xlu0 %v3174
      %v3195 = vpop.xlane.xlu0 %3194
      %3196 = vadd.xlane.f32.xlu0 %v3175
      %v3197 = vpop.xlane.xlu0 %3196
      %3198 = vadd.xlane.f32.xlu0 %v3176
      %v3199 = vpop.xlane.xlu0 %3198
      %3200 = vadd.xlane.f32.xlu0 %v3177
      %v3201 = vpop.xlane.xlu0 %3200
      %3202 = vadd.xlane.f32.xlu0 %v3178
      %v3203 = vpop.xlane.xlu0 %3202
      %3204 = vadd.xlane.f32.xlu0 %v3179
      %v3205 = vpop.xlane.xlu0 %3204
      %3206 = vadd.xlane.f32.xlu0 %v3180
      %v3207 = vpop.xlane.xlu0 %3206
      %3208 = vadd.xlane.f32.xlu0 %v3181
      %v3209 = vpop.xlane.xlu0 %3208
      %3210 = vadd.xlane.f32.xlu0 %v3182
      %v3211 = vpop.xlane.xlu0 %3210
      %3212 = vadd.xlane.f32.xlu0 %v3183
      %v3213 = vpop.xlane.xlu0 %3212
      %3214 = vadd.xlane.f32.xlu0 %v3184
      %v3215 = vpop.xlane.xlu0 %3214
      %3216 = vadd.xlane.f32.xlu0 %v3185
      %v3217 = vpop.xlane.xlu0 %3216
      %v3218 = vmul.f32 %v3187, 0.0625
      %v3219 = vmul.f32 %v3189, 0.0625
      %v3220 = vmul.f32 %v3191, 0.0625
      %v3221 = vmul.f32 %v3193, 0.0625
      %v3222 = vmul.f32 %v3195, 0.0625
      %v3223 = vmul.f32 %v3197, 0.0625
      %v3224 = vmul.f32 %v3199, 0.0625
      %v3225 = vmul.f32 %v3201, 0.0625
      %v3226 = vmul.f32 %v3203, 0.0625
      %v3227 = vmul.f32 %v3205, 0.0625
      %v3228 = vmul.f32 %v3207, 0.0625
      %v3229 = vmul.f32 %v3209, 0.0625
      %v3230 = vmul.f32 %v3211, 0.0625
      %v3231 = vmul.f32 %v3213, 0.0625
      %v3232 = vmul.f32 %v3215, 0.0625
      %v3233 = vmul.f32 %v3217, 0.0625
      %v3234 = vmul.f32 %v3154, %v3154
      %v3235 = vmul.f32 %v3155, %v3155
      %v3236 = vmul.f32 %v3156, %v3156
      %v3237 = vmul.f32 %v3157, %v3157
      %v3238 = vmul.f32 %v3158, %v3158
      %v3239 = vmul.f32 %v3159, %v3159
      %v3240 = vmul.f32 %v3160, %v3160
      %v3241 = vmul.f32 %v3161, %v3161
      %v3242 = vmul.f32 %v3162, %v3162
      %v3243 = vmul.f32 %v3163, %v3163
      %v3244 = vmul.f32 %v3164, %v3164
      %v3245 = vmul.f32 %v3165, %v3165
      %v3246 = vmul.f32 %v3166, %v3166
      %v3247 = vmul.f32 %v3167, %v3167
      %v3248 = vmul.f32 %v3168, %v3168
      %v3249 = vmul.f32 %v3169, %v3169
      %v3250 = vsub.f32 %v3218, %v3234
      %v3251 = vsub.f32 %v3219, %v3235
      %v3252 = vsub.f32 %v3220, %v3236
      %v3253 = vsub.f32 %v3221, %v3237
      %v3254 = vsub.f32 %v3222, %v3238
      %v3255 = vsub.f32 %v3223, %v3239
      %v3256 = vsub.f32 %v3224, %v3240
      %v3257 = vsub.f32 %v3225, %v3241
      %v3258 = vsub.f32 %v3226, %v3242
      %v3259 = vsub.f32 %v3227, %v3243
      %v3260 = vsub.f32 %v3228, %v3244
      %v3261 = vsub.f32 %v3229, %v3245
      %v3262 = vsub.f32 %v3230, %v3246
      %v3263 = vsub.f32 %v3231, %v3247
      %v3264 = vsub.f32 %v3232, %v3248
      %v3265 = vsub.f32 %v3233, %v3249
      %v3266 = vsub.f32 %v3104, %v3154
      %v3267 = vsub.f32 %v3105, %v3155
      %v3268 = vsub.f32 %v3106, %v3156
      %v3269 = vsub.f32 %v3107, %v3157
      %v3270 = vsub.f32 %v3108, %v3158
      %v3271 = vsub.f32 %v3109, %v3159
      %v3272 = vsub.f32 %v3110, %v3160
      %v3273 = vsub.f32 %v3111, %v3161
      %v3274 = vsub.f32 %v3112, %v3162
      %v3275 = vsub.f32 %v3113, %v3163
      %v3276 = vsub.f32 %v3114, %v3164
      %v3277 = vsub.f32 %v3115, %v3165
      %v3278 = vsub.f32 %v3116, %v3166
      %v3279 = vsub.f32 %v3117, %v3167
      %v3280 = vsub.f32 %v3118, %v3168
      %v3281 = vsub.f32 %v3119, %v3169
      %v3282 = vadd.f32 %v3250, 1e-06
      %v3283 = vadd.f32 %v3251, 1e-06
      %v3284 = vadd.f32 %v3252, 1e-06
      %v3285 = vadd.f32 %v3253, 1e-06
      %v3286 = vadd.f32 %v3254, 1e-06
      %v3287 = vadd.f32 %v3255, 1e-06
      %v3288 = vadd.f32 %v3256, 1e-06
      %v3289 = vadd.f32 %v3257, 1e-06
      %v3290 = vadd.f32 %v3258, 1e-06
      %v3291 = vadd.f32 %v3259, 1e-06
      %v3292 = vadd.f32 %v3260, 1e-06
      %v3293 = vadd.f32 %v3261, 1e-06
      %v3294 = vadd.f32 %v3262, 1e-06
      %v3295 = vadd.f32 %v3263, 1e-06
      %v3296 = vadd.f32 %v3264, 1e-06
      %v3297 = vadd.f32 %v3265, 1e-06
      %v3298 = vrsqrt.pop %v3282
      %v3299 = vrsqrt.pop %v3283
      %v3300 = vrsqrt.pop %v3284
      %v3301 = vrsqrt.pop %v3285
      %v3302 = vrsqrt.pop %v3286
      %v3303 = vrsqrt.pop %v3287
      %v3304 = vrsqrt.pop %v3288
      %v3305 = vrsqrt.pop %v3289
      %v3306 = vrsqrt.pop %v3290
      %v3307 = vrsqrt.pop %v3291
      %v3308 = vrsqrt.pop %v3292
      %v3309 = vrsqrt.pop %v3293
      %v3310 = vrsqrt.pop %v3294
      %v3311 = vrsqrt.pop %v3295
      %v3312 = vrsqrt.pop %v3296
      %v3313 = vrsqrt.pop %v3297
      %v3314 = vmul.f32 %v3266, %v3298
      %v3315 = vmul.f32 %v3267, %v3299
      %v3316 = vmul.f32 %v3268, %v3300
      %v3317 = vmul.f32 %v3269, %v3301
      %v3318 = vmul.f32 %v3270, %v3302
      %v3319 = vmul.f32 %v3271, %v3303
      %v3320 = vmul.f32 %v3272, %v3304
      %v3321 = vmul.f32 %v3273, %v3305
      %v3322 = vmul.f32 %v3274, %v3306
      %v3323 = vmul.f32 %v3275, %v3307
      %v3324 = vmul.f32 %v3276, %v3308
      %v3325 = vmul.f32 %v3277, %v3309
      %v3326 = vmul.f32 %v3278, %v3310
      %v3327 = vmul.f32 %v3279, %v3311
      %v3328 = vmul.f32 %v3280, %v3312
      %v3329 = vmul.f32 %v3281, %v3313
      %v3331 = vlaneseq
      %v3332 = vshrl.u32 %v3331, 7
      %v3333 = vsub.s32 0, %v3332
      %v3334 = vrot.slane %v3120, %v3333
      %v3336 = vmul.f32 %v3314, %v3334
      %v3337 = vmul.f32 %v3315, %v3334
      %v3338 = vmul.f32 %v3316, %v3334
      %v3339 = vmul.f32 %v3317, %v3334
      %v3340 = vmul.f32 %v3318, %v3334
      %v3341 = vmul.f32 %v3319, %v3334
      %v3342 = vmul.f32 %v3320, %v3334
      %v3343 = vmul.f32 %v3321, %v3334
      %v3344 = vmul.f32 %v3322, %v3334
      %v3345 = vmul.f32 %v3323, %v3334
      %v3346 = vmul.f32 %v3324, %v3334
      %v3347 = vmul.f32 %v3325, %v3334
      %v3348 = vmul.f32 %v3326, %v3334
      %v3349 = vmul.f32 %v3327, %v3334
      %v3350 = vmul.f32 %v3328, %v3334
      %v3351 = vmul.f32 %v3329, %v3334
      %v3353 = vlaneseq
      %v3354 = vshrl.u32 %v3353, 7
      %v3355 = vsub.s32 0, %v3354
      %v3356 = vrot.slane %v3121, %v3355
      %v3358 = vadd.f32 %v3336, %v3356
      %v3359 = vadd.f32 %v3337, %v3356
      %v3360 = vadd.f32 %v3338, %v3356
      %v3361 = vadd.f32 %v3339, %v3356
      %v3362 = vadd.f32 %v3340, %v3356
      %v3363 = vadd.f32 %v3341, %v3356
      %v3364 = vadd.f32 %v3342, %v3356
      %v3365 = vadd.f32 %v3343, %v3356
      %v3366 = vadd.f32 %v3344, %v3356
      %v3367 = vadd.f32 %v3345, %v3356
      %v3368 = vadd.f32 %v3346, %v3356
      %v3369 = vadd.f32 %v3347, %v3356
      %v3370 = vadd.f32 %v3348, %v3356
      %v3371 = vadd.f32 %v3349, %v3356
      %v3372 = vadd.f32 %v3350, %v3356
      %v3373 = vadd.f32 %v3351, %v3356
      %v3374 = vpack.c.bf16 %v3359, %v3358
      %v3375 = vpack.c.bf16 %v3361, %v3360
      %v3376 = vpack.c.bf16 %v3363, %v3362
      %v3377 = vpack.c.bf16 %v3365, %v3364
      %v3378 = vpack.c.bf16 %v3367, %v3366
      %v3379 = vpack.c.bf16 %v3369, %v3368
      %v3380 = vpack.c.bf16 %v3371, %v3370
      %v3381 = vpack.c.bf16 %v3373, %v3372
      %v3382 = vld [vmem:[%s5] sm:$0xf]
      %v3383 = vld [vmem:[%s5 + $0x4] sm:$0xf]
      %v3384 = vld [vmem:[%s5 + $0x8] sm:$0xf]
      %v3385 = vld [vmem:[%s5 + $0xc] sm:$0xf]
      %v3390 = vunpack.c.l.b16 %v3382
      %v3391 = vunpack.c.l.b16 %v3383
      %v3392 = vunpack.c.l.b16 %v3384
      %v3393 = vunpack.c.l.b16 %v3385
      %v3394 = vpack.c.b16 %v3391, %v3390
      %v3395 = vpack.c.b16 %v3393, %v3392
      %3398 = vmatprep.subr.bf16.mxu0 0
      %3399 = vmatpush1.bf16.msra.mxu0 %v3374
      %3400 = vmatprep.subr.bf16.mxu0 0
      %3401 = vmatpush1.bf16.msra.mxu0 %v3375
      %3402 = vmatprep.subr.bf16.mxu0 0
      %3403 = vmatpush1.bf16.msra.mxu0 %v3376
      %3404 = vmatprep.subr.bf16.mxu0 0
      %3405 = vmatpush1.bf16.msra.mxu0 %v3377
      %3406 = vmatprep.subr.bf16.mxu0 0
      %3407 = vmatpush1.bf16.msra.mxu0 %v3378
      %3408 = vmatprep.subr.bf16.mxu0 0
      %3409 = vmatpush1.bf16.msra.mxu0 %v3379
      %3410 = vmatprep.subr.bf16.mxu0 0
      %3411 = vmatpush1.bf16.msra.mxu0 %v3380
      %3412 = vmatprep.subr.bf16.mxu0 0
      %3413 = vmatpush1.bf16.msra.mxu0 %v3381
      %3414 = vmatprep.subr.bf16.mxu0 0
      %3415 = vmatpush1.bf16.msra.mxu0 0
      %3416 = vmatprep.subr.bf16.mxu0 0
      %3417 = vmatpush1.bf16.msra.mxu0 0
      %3418 = vmatprep.subr.bf16.mxu0 0
      %3419 = vmatpush1.bf16.msra.mxu0 0
      %3420 = vmatprep.subr.bf16.mxu0 0
      %3421 = vmatpush1.bf16.msra.mxu0 0
      %3422 = vmatprep.subr.bf16.mxu0 0
      %3423 = vmatpush1.bf16.msra.mxu0 0
      %3424 = vmatprep.subr.bf16.mxu0 0
      %3425 = vmatpush1.bf16.msra.mxu0 0
      %3426 = vmatprep.subr.bf16.mxu0 0
      %3427 = vmatpush1.bf16.msra.mxu0 0
      %3428 = vmatprep.subr.bf16.mxu0 0
      %3429 = vmatpush1.bf16.msra.mxu0 0
      %3430 = vmatprep.mubr.bf16.mxu0 0
      %3431 = vmatmul.mubr.bf16.gmra.mrb[0].mxu0 %v3394
      %v3432 = vpop.f32.mrb[0].mxu0
      %v3433 = vadd.f32 0.0, %v3432
      %v3434 = vpop.f32.mrb[0].mxu0
      %v3435 = vpop.f32.mrb[0].mxu0
      %v3436 = vadd.f32 0.0, %v3435
      %v3437 = vpop.f32.mrb[0].mxu0
      %3438 = vmatprep.mubr.bf16.mxu0 0
      %3439 = vmatmul.mubr.bf16.gmra.mrb[0].mxu0 %v3395
      %v3440 = vpop.f32.mrb[0].mxu0
      %v3441 = vadd.f32 0.0, %v3440
      %v3442 = vpop.f32.mrb[0].mxu0
      %v3443 = vpop.f32.mrb[0].mxu0
      %v3444 = vadd.f32 0.0, %v3443
      %v3445 = vpop.f32.mrb[0].mxu0
      %3446 = vdwg.mxu0
      %s3447 = scalar_lea.vmem %s5, 16
      %v3448 = vld [vmem:[%s3447] sm:$0xf]
      %v3449 = vld [vmem:[%s3447 + $0x4] sm:$0xf]
      %v3450 = vld [vmem:[%s3447 + $0x8] sm:$0xf]
      %v3451 = vld [vmem:[%s3447 + $0xc] sm:$0xf]
      %v3456 = vunpack.c.l.b16 %v3448
      %v3457 = vunpack.c.l.b16 %v3449
      %v3458 = vunpack.c.l.b16 %v3450
      %v3459 = vunpack.c.l.b16 %v3451
      %v3460 = vpack.c.b16 %v3457, %v3456
      %v3461 = vpack.c.b16 %v3459, %v3458
      %3464 = vmatprep.subr.bf16.mxu0 0
      %3465 = vmatpush1.bf16.msra.mxu0 %v3374
      %3466 = vmatprep.subr.bf16.mxu0 0
      %3467 = vmatpush1.bf16.msra.mxu0 %v3375
      %3468 = vmatprep.subr.bf16.mxu0 0
      %3469 = vmatpush1.bf16.msra.mxu0 %v3376
      %3470 = vmatprep.subr.bf16.mxu0 0
      %3471 = vmatpush1.bf16.msra.mxu0 %v3377
      %3472 = vmatprep.subr.bf16.mxu0 0
      %3473 = vmatpush1.bf16.msra.mxu0 %v3378
      %3474 = vmatprep.subr.bf16.mxu0 0
      %3475 = vmatpush1.bf16.msra.mxu0 %v3379
      %3476 = vmatprep.subr.bf16.mxu0 0
      %3477 = vmatpush1.bf16.msra.mxu0 %v3380
      %3478 = vmatprep.subr.bf16.mxu0 0
      %3479 = vmatpush1.bf16.msra.mxu0 %v3381
      %3480 = vmatprep.subr.bf16.mxu0 0
      %3481 = vmatpush1.bf16.msra.mxu0 0
      %3482 = vmatprep.subr.bf16.mxu0 0
      %3483 = vmatpush1.bf16.msra.mxu0 0
      %3484 = vmatprep.subr.bf16.mxu0 0
      %3485 = vmatpush1.bf16.msra.mxu0 0
      %3486 = vmatprep.subr.bf16.mxu0 0
      %3487 = vmatpush1.bf16.msra.mxu0 0
      %3488 = vmatprep.subr.bf16.mxu0 0
      %3489 = vmatpush1.bf16.msra.mxu0 0
      %3490 = vmatprep.subr.bf16.mxu0 0
      %3491 = vmatpush1.bf16.msra.mxu0 0
      %3492 = vmatprep.subr.bf16.mxu0 0
      %3493 = vmatpush1.bf16.msra.mxu0 0
      %3494 = vmatprep.subr.bf16.mxu0 0
      %3495 = vmatpush1.bf16.msra.mxu0 0
      %3496 = vmatprep.mubr.bf16.mxu0 0
      %3497 = vmatmul.mubr.bf16.gmra.mrb[0].mxu0 %v3460
      %v3498 = vpop.f32.mrb[0].mxu0
      %v3499 = vadd.f32 0.0, %v3498
      %v3500 = vpop.f32.mrb[0].mxu0
      %v3501 = vpop.f32.mrb[0].mxu0
      %v3502 = vadd.f32 0.0, %v3501
      %v3503 = vpop.f32.mrb[0].mxu0
      %3504 = vmatprep.mubr.bf16.mxu0 0
      %3505 = vmatmul.mubr.bf16.gmra.mrb[0].mxu0 %v3461
      %v3506 = vpop.f32.mrb[0].mxu0
      %v3507 = vadd.f32 0.0, %v3506
      %v3508 = vpop.f32.mrb[0].mxu0
      %v3509 = vpop.f32.mrb[0].mxu0
      %v3510 = vadd.f32 0.0, %v3509
      %v3511 = vpop.f32.mrb[0].mxu0
      %3512 = vdwg.mxu0
      %s3513 = scalar_lea.vmem %s5, 32
      %v3514 = vld [vmem:[%s3513] sm:$0xf]
      %v3515 = vld [vmem:[%s3513 + $0x4] sm:$0xf]
      %v3516 = vld [vmem:[%s3513 + $0x8] sm:$0xf]
      %v3517 = vld [vmem:[%s3513 + $0xc] sm:$0xf]
      %v3522 = vunpack.c.l.b16 %v3514
      %v3523 = vunpack.c.l.b16 %v3515
      %v3524 = vunpack.c.l.b16 %v3516
      %v3525 = vunpack.c.l.b16 %v3517
      %v3526 = vpack.c.b16 %v3523, %v3522
      %v3527 = vpack.c.b16 %v3525, %v3524
      %3530 = vmatprep.subr.bf16.mxu0 0
      %3531 = vmatpush1.bf16.msra.mxu0 %v3374
      %3532 = vmatprep.subr.bf16.mxu0 0
      %3533 = vmatpush1.bf16.msra.mxu0 %v3375
      %3534 = vmatprep.subr.bf16.mxu0 0
      %3535 = vmatpush1.bf16.msra.mxu0 %v3376
      %3536 = vmatprep.subr.bf16.mxu0 0
      %3537 = vmatpush1.bf16.msra.mxu0 %v3377
      %3538 = vmatprep.subr.bf16.mxu0 0
      %3539 = vmatpush1.bf16.msra.mxu0 %v3378
      %3540 = vmatprep.subr.bf16.mxu0 0
      %3541 = vmatpush1.bf16.msra.mxu0 %v3379
      %3542 = vmatprep.subr.bf16.mxu0 0
      %3543 = vmatpush1.bf16.msra.mxu0 %v3380
      %3544 = vmatprep.subr.bf16.mxu0 0
      %3545 = vmatpush1.bf16.msra.mxu0 %v3381
      %3546 = vmatprep.subr.bf16.mxu0 0
      %3547 = vmatpush1.bf16.msra.mxu0 0
      %3548 = vmatprep.subr.bf16.mxu0 0
      %3549 = vmatpush1.bf16.msra.mxu0 0
      %3550 = vmatprep.subr.bf16.mxu0 0
      %3551 = vmatpush1.bf16.msra.mxu0 0
      %3552 = vmatprep.subr.bf16.mxu0 0
      %3553 = vmatpush1.bf16.msra.mxu0 0
      %3554 = vmatprep.subr.bf16.mxu0 0
      %3555 = vmatpush1.bf16.msra.mxu0 0
      %3556 = vmatprep.subr.bf16.mxu0 0
      %3557 = vmatpush1.bf16.msra.mxu0 0
      %3558 = vmatprep.subr.bf16.mxu0 0
      %3559 = vmatpush1.bf16.msra.mxu0 0
      %3560 = vmatprep.subr.bf16.mxu0 0
      %3561 = vmatpush1.bf16.msra.mxu0 0
      %3562 = vmatprep.mubr.bf16.mxu0 0
      %3563 = vmatmul.mubr.bf16.gmra.mrb[0].mxu0 %v3526
      %v3564 = vpop.f32.mrb[0].mxu0
      %v3565 = vadd.f32 0.0, %v3564
      %v3566 = vpop.f32.mrb[0].mxu0
      %v3567 = vpop.f32.mrb[0].mxu0
      %v3568 = vadd.f32 0.0, %v3567
      %v3569 = vpop.f32.mrb[0].mxu0
      %3570 = vmatprep.mubr.bf16.mxu0 0
      %3571 = vmatmul.mubr.bf16.gmra.mrb[0].mxu0 %v3527
      %v3572 = vpop.f32.mrb[0].mxu0
      %v3573 = vadd.f32 0.0, %v3572
      %v3574 = vpop.f32.mrb[0].mxu0
      %v3575 = vpop.f32.mrb[0].mxu0
      %v3576 = vadd.f32 0.0, %v3575
      %v3577 = vpop.f32.mrb[0].mxu0
      %3578 = vdwg.mxu0
      %s3579 = scalar_lea.vmem %s5, 48
      %v3580 = vld [vmem:[%s3579] sm:$0xf]
      %v3581 = vld [vmem:[%s3579 + $0x4] sm:$0xf]
      %v3582 = vld [vmem:[%s3579 + $0x8] sm:$0xf]
      %v3583 = vld [vmem:[%s3579 + $0xc] sm:$0xf]
      %v3588 = vunpack.c.l.b16 %v3580
      %v3589 = vunpack.c.l.b16 %v3581
      %v3590 = vunpack.c.l.b16 %v3582
      %v3591 = vunpack.c.l.b16 %v3583
      %v3592 = vpack.c.b16 %v3589, %v3588
      %v3593 = vpack.c.b16 %v3591, %v3590
      %3596 = vmatprep.subr.bf16.mxu0 0
      %3597 = vmatpush1.bf16.msra.mxu0 %v3374
      %3598 = vmatprep.subr.bf16.mxu0 0
      %3599 = vmatpush1.bf16.msra.mxu0 %v3375
      %3600 = vmatprep.subr.bf16.mxu0 0
      %3601 = vmatpush1.bf16.msra.mxu0 %v3376
      %3602 = vmatprep.subr.bf16.mxu0 0
      %3603 = vmatpush1.bf16.msra.mxu0 %v3377
      %3604 = vmatprep.subr.bf16.mxu0 0
      %3605 = vmatpush1.bf16.msra.mxu0 %v3378
      %3606 = vmatprep.subr.bf16.mxu0 0
      %3607 = vmatpush1.bf16.msra.mxu0 %v3379
      %3608 = vmatprep.subr.bf16.mxu0 0
      %3609 = vmatpush1.bf16.msra.mxu0 %v3380
      %3610 = vmatprep.subr.bf16.mxu0 0
      %3611 = vmatpush1.bf16.msra.mxu0 %v3381
      %3612 = vmatprep.subr.bf16.mxu0 0
      %3613 = vmatpush1.bf16.msra.mxu0 0
      %3614 = vmatprep.subr.bf16.mxu0 0
      %3615 = vmatpush1.bf16.msra.mxu0 0
      %3616 = vmatprep.subr.bf16.mxu0 0
      %3617 = vmatpush1.bf16.msra.mxu0 0
      %3618 = vmatprep.subr.bf16.mxu0 0
      %3619 = vmatpush1.bf16.msra.mxu0 0
      %3620 = vmatprep.subr.bf16.mxu0 0
      %3621 = vmatpush1.bf16.msra.mxu0 0
      %3622 = vmatprep.subr.bf16.mxu0 0
      %3623 = vmatpush1.bf16.msra.mxu0 0
      %3624 = vmatprep.subr.bf16.mxu0 0
      %3625 = vmatpush1.bf16.msra.mxu0 0
      %3626 = vmatprep.subr.bf16.mxu0 0
      %3627 = vmatpush1.bf16.msra.mxu0 0
      %3628 = vmatprep.mubr.bf16.mxu0 0
      %3629 = vmatmul.mubr.bf16.gmra.mrb[0].mxu0 %v3592
      %v3630 = vpop.f32.mrb[0].mxu0
      %v3631 = vadd.f32 0.0, %v3630
      %v3632 = vpop.f32.mrb[0].mxu0
      %v3633 = vpop.f32.mrb[0].mxu0
      %v3634 = vadd.f32 0.0, %v3633
      %v3635 = vpop.f32.mrb[0].mxu0
      %3636 = vmatprep.mubr.bf16.mxu0 0
      %3637 = vmatmul.mubr.bf16.gmra.mrb[0].mxu0 %v3593
      %v3638 = vpop.f32.mrb[0].mxu0
      %v3639 = vadd.f32 0.0, %v3638
      %v3640 = vpop.f32.mrb[0].mxu0
      %v3641 = vpop.f32.mrb[0].mxu0
      %v3642 = vadd.f32 0.0, %v3641
      %v3643 = vpop.f32.mrb[0].mxu0
      %3644 = vdwg.mxu0
      %v3645 = vld [vmem:[%s1565] sm:$0xf]
      %v3646 = vld [vmem:[%s1565 + $0x4] sm:$0xf]
      %v3647 = vld [vmem:[%s1565 + $0x8] sm:$0xf]
      %v3648 = vld [vmem:[%s1565 + $0xc] sm:$0xf]
      %v3649 = vld [vmem:[%s1565 + $0x10] sm:$0xf]
      %v3650 = vld [vmem:[%s1565 + $0x14] sm:$0xf]
      %v3651 = vld [vmem:[%s1565 + $0x18] sm:$0xf]
      %v3652 = vld [vmem:[%s1565 + $0x1c] sm:$0xf]
      %v3653 = vld [vmem:[%s1565 + $0x20] sm:$0xf]
      %v3654 = vld [vmem:[%s1565 + $0x24] sm:$0xf]
      %v3655 = vld [vmem:[%s1565 + $0x28] sm:$0xf]
      %v3656 = vld [vmem:[%s1565 + $0x2c] sm:$0xf]
      %v3657 = vld [vmem:[%s1565 + $0x30] sm:$0xf]
      %v3658 = vld [vmem:[%s1565 + $0x34] sm:$0xf]
      %v3659 = vld [vmem:[%s1565 + $0x38] sm:$0xf]
      %v3660 = vld [vmem:[%s1565 + $0x3c] sm:$0xf]
      %v3661 = vld [vmem:[%s1565 + $0x40] sm:$0xf]
      %v3662 = vld [vmem:[%s1565 + $0x44] sm:$0xf]
      %v3663 = vld [vmem:[%s1565 + $0x48] sm:$0xf]
      %v3664 = vld [vmem:[%s1565 + $0x4c] sm:$0xf]
      %v3665 = vld [vmem:[%s1565 + $0x50] sm:$0xf]
      %v3666 = vld [vmem:[%s1565 + $0x54] sm:$0xf]
      %v3667 = vld [vmem:[%s1565 + $0x58] sm:$0xf]
      %v3668 = vld [vmem:[%s1565 + $0x5c] sm:$0xf]
      %v3669 = vld [vmem:[%s1565 + $0x60] sm:$0xf]
      %v3670 = vld [vmem:[%s1565 + $0x64] sm:$0xf]
      %v3671 = vld [vmem:[%s1565 + $0x68] sm:$0xf]
      %v3672 = vld [vmem:[%s1565 + $0x6c] sm:$0xf]
      %v3673 = vld [vmem:[%s1565 + $0x70] sm:$0xf]
      %v3674 = vld [vmem:[%s1565 + $0x74] sm:$0xf]
      %v3675 = vld [vmem:[%s1565 + $0x78] sm:$0xf]
      %v3676 = vld [vmem:[%s1565 + $0x7c] sm:$0xf]
      %v3677 = vld [vmem:[%s1565 + $0x80] sm:$0xf]
      %v3678 = vld [vmem:[%s1565 + $0x84] sm:$0xf]
      %v3679 = vld [vmem:[%s1565 + $0x88] sm:$0xf]
      %v3680 = vld [vmem:[%s1565 + $0x8c] sm:$0xf]
      %v3681 = vld [vmem:[%s1565 + $0x90] sm:$0xf]
      %v3682 = vld [vmem:[%s1565 + $0x94] sm:$0xf]
      %v3683 = vld [vmem:[%s1565 + $0x98] sm:$0xf]
      %v3684 = vld [vmem:[%s1565 + $0x9c] sm:$0xf]
      %v3685 = vld [vmem:[%s1565 + $0xa0] sm:$0xf]
      %v3686 = vld [vmem:[%s1565 + $0xa4] sm:$0xf]
      %v3687 = vld [vmem:[%s1565 + $0xa8] sm:$0xf]
      %v3688 = vld [vmem:[%s1565 + $0xac] sm:$0xf]
      %v3689 = vld [vmem:[%s1565 + $0xb0] sm:$0xf]
      %v3690 = vld [vmem:[%s1565 + $0xb4] sm:$0xf]
      %v3691 = vld [vmem:[%s1565 + $0xb8] sm:$0xf]
      %v3692 = vld [vmem:[%s1565 + $0xbc] sm:$0xf]
      %v3693 = vld [vmem:[%s1565 + $0xc0] sm:$0xf]
      %v3694 = vld [vmem:[%s1565 + $0xc4] sm:$0xf]
      %v3695 = vld [vmem:[%s1565 + $0xc8] sm:$0xf]
      %v3696 = vld [vmem:[%s1565 + $0xcc] sm:$0xf]
      %v3697 = vld [vmem:[%s1565 + $0xd0] sm:$0xf]
      %v3698 = vld [vmem:[%s1565 + $0xd4] sm:$0xf]
      %v3699 = vld [vmem:[%s1565 + $0xd8] sm:$0xf]
      %v3700 = vld [vmem:[%s1565 + $0xdc] sm:$0xf]
      %v3701 = vld [vmem:[%s1565 + $0xe0] sm:$0xf]
      %v3702 = vld [vmem:[%s1565 + $0xe4] sm:$0xf]
      %v3703 = vld [vmem:[%s1565 + $0xe8] sm:$0xf]
      %v3704 = vld [vmem:[%s1565 + $0xec] sm:$0xf]
      %v3705 = vld [vmem:[%s1565 + $0xf0] sm:$0xf]
      %v3706 = vld [vmem:[%s1565 + $0xf4] sm:$0xf]
      %v3707 = vld [vmem:[%s1565 + $0xf8] sm:$0xf]
      %v3708 = vld [vmem:[%s1565 + $0xfc] sm:$0xf]
      %v3709 = vpack.c.bf16 %v3436, %v3433
      %v3710 = vpack.c.bf16 %v3502, %v3499
      %v3711 = vpack.c.bf16 %v3568, %v3565
      %v3712 = vpack.c.bf16 %v3634, %v3631
      %v3713 = vpack.c.bf16 %v3444, %v3441
      %v3714 = vpack.c.bf16 %v3510, %v3507
      %v3715 = vpack.c.bf16 %v3576, %v3573
      %v3716 = vpack.c.bf16 %v3642, %v3639
      %v3717 = vld [vmem:[%s1568] sm:$0x1]
      %v3719 = vlaneseq
      %v3720 = vshrl.u32 %v3719, 7
      %v3721 = vsub.s32 0, %v3720
      %v3722 = vrot.slane %v3717, %v3721
      %v3788 = vunpack.c.l.b16 %v3645
      %v3789 = vunpack.c.l.b16 %v3646
      %v3790 = vunpack.c.l.b16 %v3647
      %v3791 = vunpack.c.l.b16 %v3648
      %v3792 = vunpack.c.l.b16 %v3649
      %v3793 = vunpack.c.l.b16 %v3650
      %v3794 = vunpack.c.l.b16 %v3651
      %v3795 = vunpack.c.l.b16 %v3652
      %v3796 = vunpack.c.l.b16 %v3653
      %v3797 = vunpack.c.l.b16 %v3654
      %v3798 = vunpack.c.l.b16 %v3655
      %v3799 = vunpack.c.l.b16 %v3656
      %v3800 = vunpack.c.l.b16 %v3657
      %v3801 = vunpack.c.l.b16 %v3658
      %v3802 = vunpack.c.l.b16 %v3659
      %v3803 = vunpack.c.l.b16 %v3660
      %v3804 = vunpack.c.l.b16 %v3661
      %v3805 = vunpack.c.l.b16 %v3662
      %v3806 = vunpack.c.l.b16 %v3663
      %v3807 = vunpack.c.l.b16 %v3664
      %v3808 = vunpack.c.l.b16 %v3665
      %v3809 = vunpack.c.l.b16 %v3666
      %v3810 = vunpack.c.l.b16 %v3667
      %v3811 = vunpack.c.l.b16 %v3668
      %v3812 = vunpack.c.l.b16 %v3669
      %v3813 = vunpack.c.l.b16 %v3670
      %v3814 = vunpack.c.l.b16 %v3671
      %v3815 = vunpack.c.l.b16 %v3672
      %v3816 = vunpack.c.l.b16 %v3673
      %v3817 = vunpack.c.l.b16 %v3674
      %v3818 = vunpack.c.l.b16 %v3675
      %v3819 = vunpack.c.l.b16 %v3676
      %v3820 = vunpack.c.l.b16 %v3677
      %v3821 = vunpack.c.l.b16 %v3678
      %v3822 = vunpack.c.l.b16 %v3679
      %v3823 = vunpack.c.l.b16 %v3680
      %v3824 = vunpack.c.l.b16 %v3681
      %v3825 = vunpack.c.l.b16 %v3682
      %v3826 = vunpack.c.l.b16 %v3683
      %v3827 = vunpack.c.l.b16 %v3684
      %v3828 = vunpack.c.l.b16 %v3685
      %v3829 = vunpack.c.l.b16 %v3686
      %v3830 = vunpack.c.l.b16 %v3687
      %v3831 = vunpack.c.l.b16 %v3688
      %v3832 = vunpack.c.l.b16 %v3689
      %v3833 = vunpack.c.l.b16 %v3690
      %v3834 = vunpack.c.l.b16 %v3691
      %v3835 = vunpack.c.l.b16 %v3692
      %v3836 = vunpack.c.l.b16 %v3693
      %v3837 = vunpack.c.l.b16 %v3694
      %v3838 = vunpack.c.l.b16 %v3695
      %v3839 = vunpack.c.l.b16 %v3696
      %v3840 = vunpack.c.l.b16 %v3697
      %v3841 = vunpack.c.l.b16 %v3698
      %v3842 = vunpack.c.l.b16 %v3699
      %v3843 = vunpack.c.l.b16 %v3700
      %v3844 = vunpack.c.l.b16 %v3701
      %v3845 = vunpack.c.l.b16 %v3702
      %v3846 = vunpack.c.l.b16 %v3703
      %v3847 = vunpack.c.l.b16 %v3704
      %v3848 = vunpack.c.l.b16 %v3705
      %v3849 = vunpack.c.l.b16 %v3706
      %v3850 = vunpack.c.l.b16 %v3707
      %v3851 = vunpack.c.l.b16 %v3708
      %v3852 = vpack.c.b16 %v3789, %v3788
      %v3853 = vpack.c.b16 %v3791, %v3790
      %v3854 = vpack.c.b16 %v3793, %v3792
      %v3855 = vpack.c.b16 %v3795, %v3794
      %v3856 = vpack.c.b16 %v3797, %v3796
      %v3857 = vpack.c.b16 %v3799, %v3798
      %v3858 = vpack.c.b16 %v3801, %v3800
      %v3859 = vpack.c.b16 %v3803, %v3802
      %v3860 = vpack.c.b16 %v3805, %v3804
      %v3861 = vpack.c.b16 %v3807, %v3806
      %v3862 = vpack.c.b16 %v3809, %v3808
      %v3863 = vpack.c.b16 %v3811, %v3810
      %v3864 = vpack.c.b16 %v3813, %v3812
      %v3865 = vpack.c.b16 %v3815, %v3814
      %v3866 = vpack.c.b16 %v3817, %v3816
      %v3867 = vpack.c.b16 %v3819, %v3818
      %v3868 = vpack.c.b16 %v3821, %v3820
      %v3869 = vpack.c.b16 %v3823, %v3822
      %v3870 = vpack.c.b16 %v3825, %v3824
      %v3871 = vpack.c.b16 %v3827, %v3826
      %v3872 = vpack.c.b16 %v3829, %v3828
      %v3873 = vpack.c.b16 %v3831, %v3830
      %v3874 = vpack.c.b16 %v3833, %v3832
      %v3875 = vpack.c.b16 %v3835, %v3834
      %v3876 = vpack.c.b16 %v3837, %v3836
      %v3877 = vpack.c.b16 %v3839, %v3838
      %v3878 = vpack.c.b16 %v3841, %v3840
      %v3879 = vpack.c.b16 %v3843, %v3842
      %v3880 = vpack.c.b16 %v3845, %v3844
      %v3881 = vpack.c.b16 %v3847, %v3846
      %v3882 = vpack.c.b16 %v3849, %v3848
      %v3883 = vpack.c.b16 %v3851, %v3850
      %3916 = vmatprep.subr.bf16.mxu0 0
      %3917 = vmatpush1.bf16.msra.mxu0 %v3852
      %3918 = vmatprep.subr.bf16.mxu0 0
      %3919 = vmatpush1.bf16.msra.mxu0 %v3853
      %3920 = vmatprep.subr.bf16.mxu0 0
      %3921 = vmatpush1.bf16.msra.mxu0 %v3854
      %3922 = vmatprep.subr.bf16.mxu0 0
      %3923 = vmatpush1.bf16.msra.mxu0 %v3855
      %3924 = vmatprep.subr.bf16.mxu0 0
      %3925 = vmatpush1.bf16.msra.mxu0 %v3856
      %3926 = vmatprep.subr.bf16.mxu0 0
      %3927 = vmatpush1.bf16.msra.mxu0 %v3857
      %3928 = vmatprep.subr.bf16.mxu0 0
      %3929 = vmatpush1.bf16.msra.mxu0 %v3858
      %3930 = vmatprep.subr.bf16.mxu0 0
      %3931 = vmatpush1.bf16.msra.mxu0 %v3859
      %3932 = vmatprep.subr.bf16.mxu0 0
      %3933 = vmatpush1.bf16.msra.mxu0 %v3860
      %3934 = vmatprep.subr.bf16.mxu0 0
      %3935 = vmatpush1.bf16.msra.mxu0 %v3861
      %3936 = vmatprep.subr.bf16.mxu0 0
      %3937 = vmatpush1.bf16.msra.mxu0 %v3862
      %3938 = vmatprep.subr.bf16.mxu0 0
      %3939 = vmatpush1.bf16.msra.mxu0 %v3863
      %3940 = vmatprep.subr.bf16.mxu0 0
      %3941 = vmatpush1.bf16.msra.mxu0 %v3864
      %3942 = vmatprep.subr.bf16.mxu0 0
      %3943 = vmatpush1.bf16.msra.mxu0 %v3865
      %3944 = vmatprep.subr.bf16.mxu0 0
      %3945 = vmatpush1.bf16.msra.mxu0 %v3866
      %3946 = vmatprep.subr.bf16.mxu0 0
      %3947 = vmatpush1.bf16.msra.mxu0 %v3867
      %3948 = vmatprep.mubr.bf16.mxu0 %v3710
      %3949 = vmatmul.mubr.bf16.gmra.mrb[0].mxu0 %v3709
      %v3950 = vpop.f32.mrb[0].mxu0
      %v3951 = vadd.f32 %v3722, %v3950
      %v3952 = vpop.f32.mrb[0].mxu0
      %v3953 = vpop.f32.mrb[0].mxu0
      %v3954 = vadd.f32 %v3722, %v3953
      %v3955 = vpop.f32.mrb[0].mxu0
      %3956 = vmatprep.mubr.bf16.mxu0 %v3714
      %3957 = vmatmul.mubr.bf16.gmra.mrb[0].mxu0 %v3713
      %v3958 = vpop.f32.mrb[0].mxu0
      %v3959 = vadd.f32 %v3722, %v3958
      %v3960 = vpop.f32.mrb[0].mxu0
      %v3961 = vpop.f32.mrb[0].mxu0
      %v3962 = vadd.f32 %v3722, %v3961
      %v3963 = vpop.f32.mrb[0].mxu0
      %3964 = vdwg.mxu0
      %3965 = vmatprep.subr.bf16.mxu0 0
      %3966 = vmatpush1.bf16.msra.mxu0 %v3868
      %3967 = vmatprep.subr.bf16.mxu0 0
      %3968 = vmatpush1.bf16.msra.mxu0 %v3869
      %3969 = vmatprep.subr.bf16.mxu0 0
      %3970 = vmatpush1.bf16.msra.mxu0 %v3870
      %3971 = vmatprep.subr.bf16.mxu0 0
      %3972 = vmatpush1.bf16.msra.mxu0 %v3871
      %3973 = vmatprep.subr.bf16.mxu0 0
      %3974 = vmatpush1.bf16.msra.mxu0 %v3872
      %3975 = vmatprep.subr.bf16.mxu0 0
      %3976 = vmatpush1.bf16.msra.mxu0 %v3873
      %3977 = vmatprep.subr.bf16.mxu0 0
      %3978 = vmatpush1.bf16.msra.mxu0 %v3874
      %3979 = vmatprep.subr.bf16.mxu0 0
      %3980 = vmatpush1.bf16.msra.mxu0 %v3875
      %3981 = vmatprep.subr.bf16.mxu0 0
      %3982 = vmatpush1.bf16.msra.mxu0 %v3876
      %3983 = vmatprep.subr.bf16.mxu0 0
      %3984 = vmatpush1.bf16.msra.mxu0 %v3877
      %3985 = vmatprep.subr.bf16.mxu0 0
      %3986 = vmatpush1.bf16.msra.mxu0 %v3878
      %3987 = vmatprep.subr.bf16.mxu0 0
      %3988 = vmatpush1.bf16.msra.mxu0 %v3879
      %3989 = vmatprep.subr.bf16.mxu0 0
      %3990 = vmatpush1.bf16.msra.mxu0 %v3880
      %3991 = vmatprep.subr.bf16.mxu0 0
      %3992 = vmatpush1.bf16.msra.mxu0 %v3881
      %3993 = vmatprep.subr.bf16.mxu0 0
      %3994 = vmatpush1.bf16.msra.mxu0 %v3882
      %3995 = vmatprep.subr.bf16.mxu0 0
      %3996 = vmatpush1.bf16.msra.mxu0 %v3883
      %3997 = vmatprep.mubr.bf16.mxu0 %v3712
      %3998 = vmatmul.mubr.bf16.gmra.mrb[0].mxu0 %v3711
      %v3999 = vpop.f32.mrb[0].mxu0
      %v4000 = vadd.f32 %v3951, %v3999
      %v4001 = vpop.f32.mrb[0].mxu0
      %v4002 = vpop.f32.mrb[0].mxu0
      %v4003 = vadd.f32 %v3954, %v4002
      %v4004 = vpop.f32.mrb[0].mxu0
      %4005 = vmatprep.mubr.bf16.mxu0 %v3716
      %4006 = vmatmul.mubr.bf16.gmra.mrb[0].mxu0 %v3715
      %v4007 = vpop.f32.mrb[0].mxu0
      %v4008 = vadd.f32 %v3959, %v4007
      %v4009 = vpop.f32.mrb[0].mxu0
      %v4010 = vpop.f32.mrb[0].mxu0
      %v4011 = vadd.f32 %v3962, %v4010
      %v4012 = vpop.f32.mrb[0].mxu0
      %4013 = vdwg.mxu0
      %v4014 = vld [vmem:[%s1575] sm:$0x1]
      %v4015 = vld [vmem:[%s1578] sm:$0x1]
      %v4016 = vld [vmem:[%s1581] sm:$0x1]
      %v4017 = vld [vmem:[%s1586] sm:$0xf]
      %v4018 = vld [vmem:[%s1586 + $0x4] sm:$0xf]
      %v4019 = vld [vmem:[%s1586 + $0x8] sm:$0xf]
      %v4020 = vld [vmem:[%s1586 + $0xc] sm:$0xf]
      %v4021 = vld [vmem:[%s1586 + $0x10] sm:$0xf]
      %v4022 = vld [vmem:[%s1586 + $0x14] sm:$0xf]
      %v4023 = vld [vmem:[%s1586 + $0x18] sm:$0xf]
      %v4024 = vld [vmem:[%s1586 + $0x1c] sm:$0xf]
      %v4025 = vld [vmem:[%s1586 + $0x20] sm:$0xf]
      %v4026 = vld [vmem:[%s1586 + $0x24] sm:$0xf]
      %v4027 = vld [vmem:[%s1586 + $0x28] sm:$0xf]
      %v4028 = vld [vmem:[%s1586 + $0x2c] sm:$0xf]
      %v4029 = vld [vmem:[%s1586 + $0x30] sm:$0xf]
      %v4030 = vld [vmem:[%s1586 + $0x34] sm:$0xf]
      %v4031 = vld [vmem:[%s1586 + $0x38] sm:$0xf]
      %v4032 = vld [vmem:[%s1586 + $0x3c] sm:$0xf]
      %v4033 = vld [vmem:[%s1589] sm:$0x1]
      %v4034 = vld [vmem:[%s1594] sm:$0xf]
      %v4035 = vld [vmem:[%s1594 + $0x4] sm:$0xf]
      %v4036 = vld [vmem:[%s1594 + $0x8] sm:$0xf]
      %v4037 = vld [vmem:[%s1594 + $0xc] sm:$0xf]
      %v4038 = vld [vmem:[%s1594 + $0x10] sm:$0xf]
      %v4039 = vld [vmem:[%s1594 + $0x14] sm:$0xf]
      %v4040 = vld [vmem:[%s1594 + $0x18] sm:$0xf]
      %v4041 = vld [vmem:[%s1594 + $0x1c] sm:$0xf]
      %v4042 = vld [vmem:[%s1594 + $0x20] sm:$0xf]
      %v4043 = vld [vmem:[%s1594 + $0x24] sm:$0xf]
      %v4044 = vld [vmem:[%s1594 + $0x28] sm:$0xf]
      %v4045 = vld [vmem:[%s1594 + $0x2c] sm:$0xf]
      %v4046 = vld [vmem:[%s1594 + $0x30] sm:$0xf]
      %v4047 = vld [vmem:[%s1594 + $0x34] sm:$0xf]
      %v4048 = vld [vmem:[%s1594 + $0x38] sm:$0xf]
      %v4049 = vld [vmem:[%s1594 + $0x3c] sm:$0xf]
      %v4050 = vld [vmem:[%s1597] sm:$0x1]
      %v4051 = vld [vmem:[%s1600] sm:$0x1]
      %v4052 = vpack.c.bf16 %v4003, %v4000
      %v4053 = vpack.c.bf16 %v4011, %v4008
      loop: start=0, step=1, limit=49
      $region176: #{moco_forward.1} parent=167 // loop_pre_header
        _
      $region177: #{moco_forward.1} parent=167 // loop_header
        %s4055 = sphi 0, %s4059
        %p4056 = scmp.ge.s32.totalorder %s4055, 49
        %v4060 = vphi 0.0, %v4149
        %v4061 = vphi 0.0, %v4150
        %v4062 = vphi 0.0, %v4151
        %v4063 = vphi 0.0, %v4152
      $region178: #{moco_forward.1} parent=167 // loop_header_branch
        %4058 = sbr.rel (%p4056) target = $region182
      $region179: #{moco_forward.1} parent=167 // loop_body
        %s4064 = smul.u32 %s4055, 4
        %s4065 = smul.addr %s4064, 4
        %s4066 = scalar_lea.vmem %s3, %s4065
        %v4067 = vld [vmem:[%s4066] sm:$0xf]
        %v4068 = vld [vmem:[%s4066 + $0x4] sm:$0xf]
        %v4069 = vld [vmem:[%s4066 + $0x8] sm:$0xf]
        %v4070 = vld [vmem:[%s4066 + $0xc] sm:$0xf]
        %v4075 = vunpack.c.l.b16 %v4067
        %v4076 = vunpack.c.l.b16 %v4068
        %v4077 = vunpack.c.l.b16 %v4069
        %v4078 = vunpack.c.l.b16 %v4070
        %v4079 = vpack.c.b16 %v4076, %v4075
        %v4080 = vpack.c.b16 %v4078, %v4077
        %vm4081 = vcmask 261120
        %v4083 = vsel %vm4081, %v4079, 0
        %v4086 = vsel %vm4081, %v4080, 0
        %4088 = vmatprep.subr.bf16.mxu0 0
        %4089 = vmatpush1.bf16.msra.mxu0 %v4052
        %4090 = vmatprep.subr.bf16.mxu0 0
        %4091 = vmatpush1.bf16.msra.mxu0 %v4053
        %4092 = vmatprep.subr.bf16.mxu0 0
        %4093 = vmatpush1.bf16.msra.mxu0 0
        %4094 = vmatprep.subr.bf16.mxu0 0
        %4095 = vmatpush1.bf16.msra.mxu0 0
        %4096 = vmatprep.subr.bf16.mxu0 0
        %4097 = vmatpush1.bf16.msra.mxu0 0
        %4098 = vmatprep.subr.bf16.mxu0 0
        %4099 = vmatpush1.bf16.msra.mxu0 0
        %4100 = vmatprep.subr.bf16.mxu0 0
        %4101 = vmatpush1.bf16.msra.mxu0 0
        %4102 = vmatprep.subr.bf16.mxu0 0
        %4103 = vmatpush1.bf16.msra.mxu0 0
        %4104 = vmatprep.subr.bf16.mxu0 0
        %4105 = vmatpush1.bf16.msra.mxu0 0
        %4106 = vmatprep.subr.bf16.mxu0 0
        %4107 = vmatpush1.bf16.msra.mxu0 0
        %4108 = vmatprep.subr.bf16.mxu0 0
        %4109 = vmatpush1.bf16.msra.mxu0 0
        %4110 = vmatprep.subr.bf16.mxu0 0
        %4111 = vmatpush1.bf16.msra.mxu0 0
        %4112 = vmatprep.subr.bf16.mxu0 0
        %4113 = vmatpush1.bf16.msra.mxu0 0
        %4114 = vmatprep.subr.bf16.mxu0 0
        %4115 = vmatpush1.bf16.msra.mxu0 0
        %4116 = vmatprep.subr.bf16.mxu0 0
        %4117 = vmatpush1.bf16.msra.mxu0 0
        %4118 = vmatprep.subr.bf16.mxu0 0
        %4119 = vmatpush1.bf16.msra.mxu0 0
        %4120 = vmatprep.mubr.bf16.mxu0 0
        %4121 = vmatmul.mubr.bf16.gmra.mrb[0].mxu0 %v4083
        %v4122 = vpop.f32.mrb[0].mxu0
        %v4123 = vadd.f32 0.0, %v4122
        %v4124 = vpop.f32.mrb[0].mxu0
        %v4125 = vpop.f32.mrb[0].mxu0
        %v4126 = vadd.f32 0.0, %v4125
        %v4127 = vpop.f32.mrb[0].mxu0
        %4128 = vmatprep.mubr.bf16.mxu0 0
        %4129 = vmatmul.mubr.bf16.gmra.mrb[0].mxu0 %v4086
        %v4130 = vpop.f32.mrb[0].mxu0
        %v4131 = vadd.f32 0.0, %v4130
        %v4132 = vpop.f32.mrb[0].mxu0
        %v4133 = vpop.f32.mrb[0].mxu0
        %v4134 = vadd.f32 0.0, %v4133
        %v4135 = vpop.f32.mrb[0].mxu0
        %4136 = vdwg.mxu0
        %s4137 = scalar_lea.vmem %s1572, %s4055
        %v4138 = vld [vmem:[%s4137] sm:$0x1]
        %v4140 = vlaneseq
        %v4141 = vshrl.u32 %v4140, 7
        %v4142 = vsub.s32 0, %v4141
        %v4143 = vrot.slane %v4138, %v4142
        %v4145 = vmul.f32 %v4123, %v4143
        %v4146 = vmul.f32 %v4126, %v4143
        %v4147 = vmul.f32 %v4131, %v4143
        %v4148 = vmul.f32 %v4134, %v4143
        %v4149 = vadd.f32 %v4060, %v4145
        %v4150 = vadd.f32 %v4061, %v4146
        %v4151 = vadd.f32 %v4062, %v4147
        %v4152 = vadd.f32 %v4063, %v4148
      $region180: #{moco_forward.1} parent=167 // loop_footer
        %s4059 = sadd.s32 1, %s4055
      $region181: #{moco_forward.1} parent=167 // loop_footer_branch
        %4054 = sbr.rel target = $region177
      $region182: #{moco_forward.1} parent=167 // loop_exit
        _
      %v4154 = vlaneseq
      %v4155 = vshrl.u32 %v4154, 7
      %v4156 = vsub.s32 0, %v4155
      %v4157 = vrot.slane %v4014, %v4156
      %v4159 = vadd.f32 %v4060, %v4157
      %v4160 = vadd.f32 %v4061, %v4157
      %v4161 = vadd.f32 %v4062, %v4157
      %v4162 = vadd.f32 %v4063, %v4157
      %4163 = vadd.xlane.f32.xlu0 %v4159
      %v4164 = vpop.xlane.xlu0 %4163
      %4165 = vadd.xlane.f32.xlu0 %v4160
      %v4166 = vpop.xlane.xlu0 %4165
      %4167 = vadd.xlane.f32.xlu0 %v4161
      %v4168 = vpop.xlane.xlu0 %4167
      %4169 = vadd.xlane.f32.xlu0 %v4162
      %v4170 = vpop.xlane.xlu0 %4169
      %v4171 = vmul.f32 %v4164, 0.03125
      %v4172 = vmul.f32 %v4166, 0.03125
      %v4173 = vmul.f32 %v4168, 0.03125
      %v4174 = vmul.f32 %v4170, 0.03125
      %v4175 = vmul.f32 %v4159, %v4159
      %v4176 = vmul.f32 %v4160, %v4160
      %v4177 = vmul.f32 %v4161, %v4161
      %v4178 = vmul.f32 %v4162, %v4162
      %4179 = vadd.xlane.f32.xlu0 %v4175
      %v4180 = vpop.xlane.xlu0 %4179
      %4181 = vadd.xlane.f32.xlu0 %v4176
      %v4182 = vpop.xlane.xlu0 %4181
      %4183 = vadd.xlane.f32.xlu0 %v4177
      %v4184 = vpop.xlane.xlu0 %4183
      %4185 = vadd.xlane.f32.xlu0 %v4178
      %v4186 = vpop.xlane.xlu0 %4185
      %v4187 = vmul.f32 %v4180, 0.03125
      %v4188 = vmul.f32 %v4182, 0.03125
      %v4189 = vmul.f32 %v4184, 0.03125
      %v4190 = vmul.f32 %v4186, 0.03125
      %v4191 = vmul.f32 %v4171, %v4171
      %v4192 = vmul.f32 %v4172, %v4172
      %v4193 = vmul.f32 %v4173, %v4173
      %v4194 = vmul.f32 %v4174, %v4174
      %v4195 = vsub.f32 %v4187, %v4191
      %v4196 = vsub.f32 %v4188, %v4192
      %v4197 = vsub.f32 %v4189, %v4193
      %v4198 = vsub.f32 %v4190, %v4194
      %v4199 = vsub.f32 %v4159, %v4171
      %v4200 = vsub.f32 %v4160, %v4172
      %v4201 = vsub.f32 %v4161, %v4173
      %v4202 = vsub.f32 %v4162, %v4174
      %v4203 = vadd.f32 %v4195, 1e-06
      %v4204 = vadd.f32 %v4196, 1e-06
      %v4205 = vadd.f32 %v4197, 1e-06
      %v4206 = vadd.f32 %v4198, 1e-06
      %v4207 = vrsqrt.pop %v4203
      %v4208 = vrsqrt.pop %v4204
      %v4209 = vrsqrt.pop %v4205
      %v4210 = vrsqrt.pop %v4206
      %v4211 = vmul.f32 %v4199, %v4207
      %v4212 = vmul.f32 %v4200, %v4208
      %v4213 = vmul.f32 %v4201, %v4209
      %v4214 = vmul.f32 %v4202, %v4210
      %v4216 = vlaneseq
      %v4217 = vshrl.u32 %v4216, 7
      %v4218 = vsub.s32 0, %v4217
      %v4219 = vrot.slane %v4015, %v4218
      %v4221 = vmul.f32 %v4211, %v4219
      %v4222 = vmul.f32 %v4212, %v4219
      %v4223 = vmul.f32 %v4213, %v4219
      %v4224 = vmul.f32 %v4214, %v4219
      %v4226 = vlaneseq
      %v4227 = vshrl.u32 %v4226, 7
      %v4228 = vsub.s32 0, %v4227
      %v4229 = vrot.slane %v4016, %v4228
      %v4231 = vadd.f32 %v4221, %v4229
      %v4232 = vadd.f32 %v4222, %v4229
      %v4233 = vadd.f32 %v4223, %v4229
      %v4234 = vadd.f32 %v4224, %v4229
      %v4235 = vpack.c.bf16 %v4232, %v4231
      %v4236 = vpack.c.bf16 %v4234, %v4233
      %v4238 = vlaneseq
      %v4239 = vshrl.u32 %v4238, 7
      %v4240 = vsub.s32 0, %v4239
      %v4241 = vrot.slane %v4033, %v4240
      %v4259 = vunpack.c.l.b16 %v4017
      %v4260 = vunpack.c.l.b16 %v4018
      %v4261 = vunpack.c.l.b16 %v4019
      %v4262 = vunpack.c.l.b16 %v4020
      %v4263 = vunpack.c.l.b16 %v4021
      %v4264 = vunpack.c.l.b16 %v4022
      %v4265 = vunpack.c.l.b16 %v4023
      %v4266 = vunpack.c.l.b16 %v4024
      %v4267 = vunpack.c.l.b16 %v4025
      %v4268 = vunpack.c.l.b16 %v4026
      %v4269 = vunpack.c.l.b16 %v4027
      %v4270 = vunpack.c.l.b16 %v4028
      %v4271 = vunpack.c.l.b16 %v4029
      %v4272 = vunpack.c.l.b16 %v4030
      %v4273 = vunpack.c.l.b16 %v4031
      %v4274 = vunpack.c.l.b16 %v4032
      %v4275 = vpack.c.b16 %v4260, %v4259
      %v4276 = vpack.c.b16 %v4262, %v4261
      %v4277 = vpack.c.b16 %v4264, %v4263
      %v4278 = vpack.c.b16 %v4266, %v4265
      %v4279 = vpack.c.b16 %v4268, %v4267
      %v4280 = vpack.c.b16 %v4270, %v4269
      %v4281 = vpack.c.b16 %v4272, %v4271
      %v4282 = vpack.c.b16 %v4274, %v4273
      %4291 = vmatprep.subr.bf16.mxu0 0
      %4292 = vmatpush1.bf16.msra.mxu0 %v4275
      %4293 = vmatprep.subr.bf16.mxu0 0
      %4294 = vmatpush1.bf16.msra.mxu0 %v4276
      %4295 = vmatprep.subr.bf16.mxu0 0
      %4296 = vmatpush1.bf16.msra.mxu0 %v4277
      %4297 = vmatprep.subr.bf16.mxu0 0
      %4298 = vmatpush1.bf16.msra.mxu0 %v4278
      %4299 = vmatprep.subr.bf16.mxu0 0
      %4300 = vmatpush1.bf16.msra.mxu0 %v4279
      %4301 = vmatprep.subr.bf16.mxu0 0
      %4302 = vmatpush1.bf16.msra.mxu0 %v4280
      %4303 = vmatprep.subr.bf16.mxu0 0
      %4304 = vmatpush1.bf16.msra.mxu0 %v4281
      %4305 = vmatprep.subr.bf16.mxu0 0
      %4306 = vmatpush1.bf16.msra.mxu0 %v4282
      %4307 = vmatprep.subr.bf16.mxu0 0
      %4308 = vmatpush1.bf16.msra.mxu0 0
      %4309 = vmatprep.subr.bf16.mxu0 0
      %4310 = vmatpush1.bf16.msra.mxu0 0
      %4311 = vmatprep.subr.bf16.mxu0 0
      %4312 = vmatpush1.bf16.msra.mxu0 0
      %4313 = vmatprep.subr.bf16.mxu0 0
      %4314 = vmatpush1.bf16.msra.mxu0 0
      %4315 = vmatprep.subr.bf16.mxu0 0
      %4316 = vmatpush1.bf16.msra.mxu0 0
      %4317 = vmatprep.subr.bf16.mxu0 0
      %4318 = vmatpush1.bf16.msra.mxu0 0
      %4319 = vmatprep.subr.bf16.mxu0 0
      %4320 = vmatpush1.bf16.msra.mxu0 0
      %4321 = vmatprep.subr.bf16.mxu0 0
      %4322 = vmatpush1.bf16.msra.mxu0 0
      %4323 = vmatprep.mubr.bf16.mxu0 0
      %4324 = vmatmul.mubr.bf16.gmra.mrb[0].mxu0 %v4235
      %v4325 = vpop.f32.mrb[0].mxu0
      %v4326 = vadd.f32 %v4241, %v4325
      %v4327 = vpop.f32.mrb[0].mxu0
      %v4328 = vpop.f32.mrb[0].mxu0
      %v4329 = vadd.f32 %v4241, %v4328
      %v4330 = vpop.f32.mrb[0].mxu0
      %4331 = vmatprep.mubr.bf16.mxu0 0
      %4332 = vmatmul.mubr.bf16.gmra.mrb[0].mxu0 %v4236
      %v4333 = vpop.f32.mrb[0].mxu0
      %v4334 = vadd.f32 %v4241, %v4333
      %v4335 = vpop.f32.mrb[0].mxu0
      %v4336 = vpop.f32.mrb[0].mxu0
      %v4337 = vadd.f32 %v4241, %v4336
      %v4338 = vpop.f32.mrb[0].mxu0
      %4339 = vdwg.mxu0
      %v4340 = vmul.f32 %v4326, 0.5
      %v4341 = vmul.f32 %v4329, 0.5
      %v4342 = vmul.f32 %v4334, 0.5
      %v4343 = vmul.f32 %v4337, 0.5
      %v4344 = vmul.f32 %v4326, 0.044715
      %v4345 = vmul.f32 %v4329, 0.044715
      %v4346 = vmul.f32 %v4334, 0.044715
      %v4347 = vmul.f32 %v4337, 0.044715
      %v4348 = vmul.f32 %v4344, %v4326
      %v4349 = vmul.f32 %v4345, %v4329
      %v4350 = vmul.f32 %v4346, %v4334
      %v4351 = vmul.f32 %v4347, %v4337
      %v4352 = vmul.f32 %v4348, %v4326
      %v4353 = vmul.f32 %v4349, %v4329
      %v4354 = vmul.f32 %v4350, %v4334
      %v4355 = vmul.f32 %v4351, %v4337
      %v4356 = vadd.f32 %v4326, %v4352
      %v4357 = vadd.f32 %v4329, %v4353
      %v4358 = vadd.f32 %v4334, %v4354
      %v4359 = vadd.f32 %v4337, %v4355
      %v4360 = vmul.f32 %v4356, 0.7978846
      %v4361 = vmul.f32 %v4357, 0.7978846
      %v4362 = vmul.f32 %v4358, 0.7978846
      %v4363 = vmul.f32 %v4359, 0.7978846
      %v4364 = vtanh.pop %v4360
      %v4365 = vtanh.pop %v4361
      %v4366 = vtanh.pop %v4362
      %v4367 = vtanh.pop %v4363
      %v4368 = vadd.f32 %v4364, 1.0
      %v4369 = vadd.f32 %v4365, 1.0
      %v4370 = vadd.f32 %v4366, 1.0
      %v4371 = vadd.f32 %v4367, 1.0
      %v4372 = vmul.f32 %v4340, %v4368
      %v4373 = vmul.f32 %v4341, %v4369
      %v4374 = vmul.f32 %v4342, %v4370
      %v4375 = vmul.f32 %v4343, %v4371
      %v4376 = vpack.c.bf16 %v4373, %v4372
      %v4377 = vpack.c.bf16 %v4375, %v4374
      %v4379 = vlaneseq
      %v4380 = vshrl.u32 %v4379, 7
      %v4381 = vsub.s32 0, %v4380
      %v4382 = vrot.slane %v4050, %v4381
      %v4400 = vunpack.c.l.b16 %v4034
      %v4401 = vunpack.c.l.b16 %v4035
      %v4402 = vunpack.c.l.b16 %v4036
      %v4403 = vunpack.c.l.b16 %v4037
      %v4404 = vunpack.c.l.b16 %v4038
      %v4405 = vunpack.c.l.b16 %v4039
      %v4406 = vunpack.c.l.b16 %v4040
      %v4407 = vunpack.c.l.b16 %v4041
      %v4408 = vunpack.c.l.b16 %v4042
      %v4409 = vunpack.c.l.b16 %v4043
      %v4410 = vunpack.c.l.b16 %v4044
      %v4411 = vunpack.c.l.b16 %v4045
      %v4412 = vunpack.c.l.b16 %v4046
      %v4413 = vunpack.c.l.b16 %v4047
      %v4414 = vunpack.c.l.b16 %v4048
      %v4415 = vunpack.c.l.b16 %v4049
      %v4416 = vpack.c.b16 %v4401, %v4400
      %v4417 = vpack.c.b16 %v4403, %v4402
      %v4418 = vpack.c.b16 %v4405, %v4404
      %v4419 = vpack.c.b16 %v4407, %v4406
      %v4420 = vpack.c.b16 %v4409, %v4408
      %v4421 = vpack.c.b16 %v4411, %v4410
      %v4422 = vpack.c.b16 %v4413, %v4412
      %v4423 = vpack.c.b16 %v4415, %v4414
      %4432 = vmatprep.subr.bf16.mxu0 0
      %4433 = vmatpush1.bf16.msra.mxu0 %v4416
      %4434 = vmatprep.subr.bf16.mxu0 0
      %4435 = vmatpush1.bf16.msra.mxu0 %v4417
      %4436 = vmatprep.subr.bf16.mxu0 0
      %4437 = vmatpush1.bf16.msra.mxu0 %v4418
      %4438 = vmatprep.subr.bf16.mxu0 0
      %4439 = vmatpush1.bf16.msra.mxu0 %v4419
      %4440 = vmatprep.subr.bf16.mxu0 0
      %4441 = vmatpush1.bf16.msra.mxu0 %v4420
      %4442 = vmatprep.subr.bf16.mxu0 0
      %4443 = vmatpush1.bf16.msra.mxu0 %v4421
      %4444 = vmatprep.subr.bf16.mxu0 0
      %4445 = vmatpush1.bf16.msra.mxu0 %v4422
      %4446 = vmatprep.subr.bf16.mxu0 0
      %4447 = vmatpush1.bf16.msra.mxu0 %v4423
      %4448 = vmatprep.subr.bf16.mxu0 0
      %4449 = vmatpush1.bf16.msra.mxu0 0
      %4450 = vmatprep.subr.bf16.mxu0 0
      %4451 = vmatpush1.bf16.msra.mxu0 0
      %4452 = vmatprep.subr.bf16.mxu0 0
      %4453 = vmatpush1.bf16.msra.mxu0 0
      %4454 = vmatprep.subr.bf16.mxu0 0
      %4455 = vmatpush1.bf16.msra.mxu0 0
      %4456 = vmatprep.subr.bf16.mxu0 0
      %4457 = vmatpush1.bf16.msra.mxu0 0
      %4458 = vmatprep.subr.bf16.mxu0 0
      %4459 = vmatpush1.bf16.msra.mxu0 0
      %4460 = vmatprep.subr.bf16.mxu0 0
      %4461 = vmatpush1.bf16.msra.mxu0 0
      %4462 = vmatprep.subr.bf16.mxu0 0
      %4463 = vmatpush1.bf16.msra.mxu0 0
      %4464 = vmatprep.mubr.bf16.mxu0 0
      %4465 = vmatmul.mubr.bf16.gmra.mrb[0].mxu0 %v4376
      %v4466 = vpop.f32.mrb[0].mxu0
      %v4467 = vadd.f32 %v4382, %v4466
      %v4468 = vpop.f32.mrb[0].mxu0
      %v4469 = vpop.f32.mrb[0].mxu0
      %v4470 = vadd.f32 %v4382, %v4469
      %v4471 = vpop.f32.mrb[0].mxu0
      %4472 = vmatprep.mubr.bf16.mxu0 0
      %4473 = vmatmul.mubr.bf16.gmra.mrb[0].mxu0 %v4377
      %v4474 = vpop.f32.mrb[0].mxu0
      %v4475 = vadd.f32 %v4382, %v4474
      %v4476 = vpop.f32.mrb[0].mxu0
      %v4477 = vpop.f32.mrb[0].mxu0
      %v4478 = vadd.f32 %v4382, %v4477
      %v4479 = vpop.f32.mrb[0].mxu0
      %4480 = vdwg.mxu0
      %v4482 = vlaneseq
      %v4483 = vshrl.u32 %v4482, 7
      %v4484 = vsub.s32 0, %v4483
      %v4485 = vrot.slane %v4051, %v4484
      %v4487 = vmul.f32 %v4485, %v4467
      %v4488 = vmul.f32 %v4485, %v4470
      %v4489 = vmul.f32 %v4485, %v4475
      %v4490 = vmul.f32 %v4485, %v4478
      %v4491 = vadd.f32 %v4000, %v4487
      %v4492 = vadd.f32 %v4003, %v4488
      %v4493 = vadd.f32 %v4008, %v4489
      %v4494 = vadd.f32 %v4011, %v4490
      %v4495 = vld [vmem:[%s7] sm:$0x1]
      %v4496 = vpack.c.bf16 %v4492, %v4491
      %v4497 = vpack.c.bf16 %v4494, %v4493
      %vm4498 = vcmask 261120
      %v4500 = vsel %vm4498, %v4495, 0
      %4502 = vmatprep.subr.bf16.mxu0 0
      %4503 = vmatpush1.bf16.msra.mxu0 %v4496
      %4504 = vmatprep.subr.bf16.mxu0 0
      %4505 = vmatpush1.bf16.msra.mxu0 %v4497
      %4506 = vmatprep.subr.bf16.mxu0 0
      %4507 = vmatpush1.bf16.msra.mxu0 0
      %4508 = vmatprep.subr.bf16.mxu0 0
      %4509 = vmatpush1.bf16.msra.mxu0 0
      %4510 = vmatprep.subr.bf16.mxu0 0
      %4511 = vmatpush1.bf16.msra.mxu0 0
      %4512 = vmatprep.subr.bf16.mxu0 0
      %4513 = vmatpush1.bf16.msra.mxu0 0
      %4514 = vmatprep.subr.bf16.mxu0 0
      %4515 = vmatpush1.bf16.msra.mxu0 0
      %4516 = vmatprep.subr.bf16.mxu0 0
      %4517 = vmatpush1.bf16.msra.mxu0 0
      %4518 = vmatprep.subr.bf16.mxu0 0
      %4519 = vmatpush1.bf16.msra.mxu0 0
      %4520 = vmatprep.subr.bf16.mxu0 0
      %4521 = vmatpush1.bf16.msra.mxu0 0
      %4522 = vmatprep.subr.bf16.mxu0 0
      %4523 = vmatpush1.bf16.msra.mxu0 0
      %4524 = vmatprep.subr.bf16.mxu0 0
      %4525 = vmatpush1.bf16.msra.mxu0 0
      %4526 = vmatprep.subr.bf16.mxu0 0
      %4527 = vmatpush1.bf16.msra.mxu0 0
      %4528 = vmatprep.subr.bf16.mxu0 0
      %4529 = vmatpush1.bf16.msra.mxu0 0
      %4530 = vmatprep.subr.bf16.mxu0 0
      %4531 = vmatpush1.bf16.msra.mxu0 0
      %4532 = vmatprep.subr.bf16.mxu0 0
      %4533 = vmatpush1.bf16.msra.mxu0 0
      %4534 = vmatprep.mubr.bf16.mxu0 0
      %4535 = vmatmul.mubr.bf16.gmra.mrb[0].mxu0 %v4500
      %v4536 = vpop.f32.mrb[0].mxu0
      %v4537 = vadd.f32 0.0, %v4536
      %v4538 = vpop.f32.mrb[0].mxu0
      %v4539 = vpop.f32.mrb[0].mxu0
      %v4540 = vpop.f32.mrb[0].mxu0
      %4541 = vdwg.mxu0
      %v4542 = vld [vmem:[%s1603] sm:$0x1]
      %v4543 = vld [vmem:[%s1606] sm:$0x1]
      %vm4544 = vcmask 1041408
      %v4545 = vsel %vm4544, %v4537, 0.0
      %4546 = vadd.xlane.f32.xlu0 %v4545
      %v4547 = vpop.xlane.xlu0 %4546
      %v4548 = vmul.f32 %v4547, 0.03125
      %v4549 = vmul.f32 %v4537, %v4537
      %v4550 = vsel %vm4544, %v4549, 0.0
      %4551 = vadd.xlane.f32.xlu0 %v4550
      %v4552 = vpop.xlane.xlu0 %4551
      %v4553 = vmul.f32 %v4552, 0.03125
      %v4554 = vmul.f32 %v4548, %v4548
      %v4555 = vsub.f32 %v4553, %v4554
      %v4556 = vsub.f32 %v4537, %v4548
      %v4557 = vadd.f32 %v4555, 1e-06
      %v4558 = vrsqrt.pop %v4557
      %v4559 = vmul.f32 %v4556, %v4558
      %v4561 = vlaneseq
      %v4562 = vshrl.u32 %v4561, 7
      %v4563 = vsub.s32 0, %v4562
      %v4564 = vrot.slane %v4542, %v4563
      %v4566 = vmul.f32 %v4559, %v4564
      %v4568 = vlaneseq
      %v4569 = vshrl.u32 %v4568, 7
      %v4570 = vsub.s32 0, %v4569
      %v4571 = vrot.slane %v4543, %v4570
      %v4573 = vadd.f32 %v4566, %v4571
      %v4574 = vld [vmem:[%s1611] sm:$0xf]
      %v4575 = vld [vmem:[%s1611 + $0x4] sm:$0xf]
      %v4576 = vld [vmem:[%s1611 + $0x8] sm:$0xf]
      %v4577 = vld [vmem:[%s1611 + $0xc] sm:$0xf]
      %v4578 = vld [vmem:[%s1611 + $0x10] sm:$0xf]
      %v4579 = vld [vmem:[%s1611 + $0x14] sm:$0xf]
      %v4580 = vld [vmem:[%s1611 + $0x18] sm:$0xf]
      %v4581 = vld [vmem:[%s1611 + $0x1c] sm:$0xf]
      %v4582 = vld [vmem:[%s1611 + $0x20] sm:$0xf]
      %v4583 = vld [vmem:[%s1611 + $0x24] sm:$0xf]
      %v4584 = vld [vmem:[%s1611 + $0x28] sm:$0xf]
      %v4585 = vld [vmem:[%s1611 + $0x2c] sm:$0xf]
      %v4586 = vld [vmem:[%s1611 + $0x30] sm:$0xf]
      %v4587 = vld [vmem:[%s1611 + $0x34] sm:$0xf]
      %v4588 = vld [vmem:[%s1611 + $0x38] sm:$0xf]
      %v4589 = vld [vmem:[%s1611 + $0x3c] sm:$0xf]
      %v4590 = vpack.c.bf16 %v4573, %v4573
      %v4591 = vld [vmem:[%s1614] sm:$0x1]
      %v4593 = vlaneseq
      %v4594 = vshrl.u32 %v4593, 7
      %v4595 = vsub.s32 0, %v4594
      %v4596 = vrot.slane %v4591, %v4595
      %v4614 = vunpack.c.l.b16 %v4574
      %v4615 = vunpack.c.l.b16 %v4575
      %v4616 = vunpack.c.l.b16 %v4576
      %v4617 = vunpack.c.l.b16 %v4577
      %v4618 = vunpack.c.l.b16 %v4578
      %v4619 = vunpack.c.l.b16 %v4579
      %v4620 = vunpack.c.l.b16 %v4580
      %v4621 = vunpack.c.l.b16 %v4581
      %v4622 = vunpack.c.l.b16 %v4582
      %v4623 = vunpack.c.l.b16 %v4583
      %v4624 = vunpack.c.l.b16 %v4584
      %v4625 = vunpack.c.l.b16 %v4585
      %v4626 = vunpack.c.l.b16 %v4586
      %v4627 = vunpack.c.l.b16 %v4587
      %v4628 = vunpack.c.l.b16 %v4588
      %v4629 = vunpack.c.l.b16 %v4589
      %v4630 = vpack.c.b16 %v4615, %v4614
      %v4631 = vpack.c.b16 %v4617, %v4616
      %v4632 = vpack.c.b16 %v4619, %v4618
      %v4633 = vpack.c.b16 %v4621, %v4620
      %v4634 = vpack.c.b16 %v4623, %v4622
      %v4635 = vpack.c.b16 %v4625, %v4624
      %v4636 = vpack.c.b16 %v4627, %v4626
      %v4637 = vpack.c.b16 %v4629, %v4628
      %4646 = vmatprep.subr.bf16.mxu0 0
      %4647 = vmatpush1.bf16.msra.mxu0 %v4630
      %4648 = vmatprep.subr.bf16.mxu0 0
      %4649 = vmatpush1.bf16.msra.mxu0 %v4631
      %4650 = vmatprep.subr.bf16.mxu0 0
      %4651 = vmatpush1.bf16.msra.mxu0 %v4632
      %4652 = vmatprep.subr.bf16.mxu0 0
      %4653 = vmatpush1.bf16.msra.mxu0 %v4633
      %4654 = vmatprep.subr.bf16.mxu0 0
      %4655 = vmatpush1.bf16.msra.mxu0 %v4634
      %4656 = vmatprep.subr.bf16.mxu0 0
      %4657 = vmatpush1.bf16.msra.mxu0 %v4635
      %4658 = vmatprep.subr.bf16.mxu0 0
      %4659 = vmatpush1.bf16.msra.mxu0 %v4636
      %4660 = vmatprep.subr.bf16.mxu0 0
      %4661 = vmatpush1.bf16.msra.mxu0 %v4637
      %4662 = vmatprep.subr.bf16.mxu0 0
      %4663 = vmatpush1.bf16.msra.mxu0 0
      %4664 = vmatprep.subr.bf16.mxu0 0
      %4665 = vmatpush1.bf16.msra.mxu0 0
      %4666 = vmatprep.subr.bf16.mxu0 0
      %4667 = vmatpush1.bf16.msra.mxu0 0
      %4668 = vmatprep.subr.bf16.mxu0 0
      %4669 = vmatpush1.bf16.msra.mxu0 0
      %4670 = vmatprep.subr.bf16.mxu0 0
      %4671 = vmatpush1.bf16.msra.mxu0 0
      %4672 = vmatprep.subr.bf16.mxu0 0
      %4673 = vmatpush1.bf16.msra.mxu0 0
      %4674 = vmatprep.subr.bf16.mxu0 0
      %4675 = vmatpush1.bf16.msra.mxu0 0
      %4676 = vmatprep.subr.bf16.mxu0 0
      %4677 = vmatpush1.bf16.msra.mxu0 0
      %4678 = vmatprep.mubr.bf16.mxu0 0
      %4679 = vmatmul.mubr.bf16.gmra.mrb[0].mxu0 %v4590
      %v4680 = vpop.f32.mrb[0].mxu0
      %v4681 = vadd.f32 %v4596, %v4680
      %v4682 = vpop.f32.mrb[0].mxu0
      %v4683 = vpop.f32.mrb[0].mxu0
      %v4684 = vpop.f32.mrb[0].mxu0
      %4685 = vdwg.mxu0
      %v4686 = vmax.f32 %v4681, 0.0
      %v4687 = vld [vmem:[%s1619] sm:$0xf]
      %v4688 = vld [vmem:[%s1619 + $0x4] sm:$0xf]
      %v4689 = vld [vmem:[%s1619 + $0x8] sm:$0xf]
      %v4690 = vld [vmem:[%s1619 + $0xc] sm:$0xf]
      %v4691 = vld [vmem:[%s1619 + $0x10] sm:$0xf]
      %v4692 = vld [vmem:[%s1619 + $0x14] sm:$0xf]
      %v4693 = vld [vmem:[%s1619 + $0x18] sm:$0xf]
      %v4694 = vld [vmem:[%s1619 + $0x1c] sm:$0xf]
      %v4695 = vld [vmem:[%s1619 + $0x20] sm:$0xf]
      %v4696 = vld [vmem:[%s1619 + $0x24] sm:$0xf]
      %v4697 = vld [vmem:[%s1619 + $0x28] sm:$0xf]
      %v4698 = vld [vmem:[%s1619 + $0x2c] sm:$0xf]
      %v4699 = vld [vmem:[%s1619 + $0x30] sm:$0xf]
      %v4700 = vld [vmem:[%s1619 + $0x34] sm:$0xf]
      %v4701 = vld [vmem:[%s1619 + $0x38] sm:$0xf]
      %v4702 = vld [vmem:[%s1619 + $0x3c] sm:$0xf]
      %v4703 = vpack.c.bf16 %v4686, %v4686
      %v4704 = vld [vmem:[%s1622] sm:$0x1]
      %v4706 = vlaneseq
      %v4707 = vshrl.u32 %v4706, 7
      %v4708 = vsub.s32 0, %v4707
      %v4709 = vrot.slane %v4704, %v4708
      %v4727 = vunpack.c.l.b16 %v4687
      %v4728 = vunpack.c.l.b16 %v4688
      %v4729 = vunpack.c.l.b16 %v4689
      %v4730 = vunpack.c.l.b16 %v4690
      %v4731 = vunpack.c.l.b16 %v4691
      %v4732 = vunpack.c.l.b16 %v4692
      %v4733 = vunpack.c.l.b16 %v4693
      %v4734 = vunpack.c.l.b16 %v4694
      %v4735 = vunpack.c.l.b16 %v4695
      %v4736 = vunpack.c.l.b16 %v4696
      %v4737 = vunpack.c.l.b16 %v4697
      %v4738 = vunpack.c.l.b16 %v4698
      %v4739 = vunpack.c.l.b16 %v4699
      %v4740 = vunpack.c.l.b16 %v4700
      %v4741 = vunpack.c.l.b16 %v4701
      %v4742 = vunpack.c.l.b16 %v4702
      %v4743 = vpack.c.b16 %v4728, %v4727
      %v4744 = vpack.c.b16 %v4730, %v4729
      %v4745 = vpack.c.b16 %v4732, %v4731
      %v4746 = vpack.c.b16 %v4734, %v4733
      %v4747 = vpack.c.b16 %v4736, %v4735
      %v4748 = vpack.c.b16 %v4738, %v4737
      %v4749 = vpack.c.b16 %v4740, %v4739
      %v4750 = vpack.c.b16 %v4742, %v4741
      %4759 = vmatprep.subr.bf16.mxu0 0
      %4760 = vmatpush1.bf16.msra.mxu0 %v4743
      %4761 = vmatprep.subr.bf16.mxu0 0
      %4762 = vmatpush1.bf16.msra.mxu0 %v4744
      %4763 = vmatprep.subr.bf16.mxu0 0
      %4764 = vmatpush1.bf16.msra.mxu0 %v4745
      %4765 = vmatprep.subr.bf16.mxu0 0
      %4766 = vmatpush1.bf16.msra.mxu0 %v4746
      %4767 = vmatprep.subr.bf16.mxu0 0
      %4768 = vmatpush1.bf16.msra.mxu0 %v4747
      %4769 = vmatprep.subr.bf16.mxu0 0
      %4770 = vmatpush1.bf16.msra.mxu0 %v4748
      %4771 = vmatprep.subr.bf16.mxu0 0
      %4772 = vmatpush1.bf16.msra.mxu0 %v4749
      %4773 = vmatprep.subr.bf16.mxu0 0
      %4774 = vmatpush1.bf16.msra.mxu0 %v4750
      %4775 = vmatprep.subr.bf16.mxu0 0
      %4776 = vmatpush1.bf16.msra.mxu0 0
      %4777 = vmatprep.subr.bf16.mxu0 0
      %4778 = vmatpush1.bf16.msra.mxu0 0
      %4779 = vmatprep.subr.bf16.mxu0 0
      %4780 = vmatpush1.bf16.msra.mxu0 0
      %4781 = vmatprep.subr.bf16.mxu0 0
      %4782 = vmatpush1.bf16.msra.mxu0 0
      %4783 = vmatprep.subr.bf16.mxu0 0
      %4784 = vmatpush1.bf16.msra.mxu0 0
      %4785 = vmatprep.subr.bf16.mxu0 0
      %4786 = vmatpush1.bf16.msra.mxu0 0
      %4787 = vmatprep.subr.bf16.mxu0 0
      %4788 = vmatpush1.bf16.msra.mxu0 0
      %4789 = vmatprep.subr.bf16.mxu0 0
      %4790 = vmatpush1.bf16.msra.mxu0 0
      %4791 = vmatprep.mubr.bf16.mxu0 0
      %4792 = vmatmul.mubr.bf16.gmra.mrb[0].mxu0 %v4703
      %v4793 = vpop.f32.mrb[0].mxu0
      %v4794 = vadd.f32 %v4709, %v4793
      %v4795 = vpop.f32.mrb[0].mxu0
      %v4796 = vpop.f32.mrb[0].mxu0
      %v4797 = vpop.f32.mrb[0].mxu0
      %4798 = vdwg.mxu0
      %v4799 = vmul.f32 %v4794, %v4794
      %v4800 = vsel %vm4544, %v4799, 0.0
      %4801 = vadd.xlane.f32.xlu0 %v4800
      %v4802 = vpop.xlane.xlu0 %4801
      %v4803 = vrsqrt.pop %v4802
      %v4804 = vmul.f32 %v4802, %v4803
      %vm4805 = vcmp.eq.f32.partialorder %v4802, inf
      %v4806 = vsel %vm4805, %v4802, %v4804
      %vm4807 = vcmp.eq.f32.partialorder %v4802, 0.0
      %v4808 = vand.u32 %v4802, 2147483648
      %v4809 = vsel %vm4807, %v4808, %v4806
      %v4810 = vmax.f32 %v4809, 1e-12
      %v4811 = vrcp.pop %v4810
      %v4812 = vmul.f32 %v4794, %v4811
      %4813 = vst [vmem:[%s1626] sm:$0x3] %v4812
      %p4814 = scmp.lt.s32.totalorder %s86, 1
      %s4815 = scalar_select %p4814, %s86, 1
      %s4816 = smul.addr %s4815, 2
      %s4817 = scalar_lea.vmem %s75, %s4816
      // Predicated region
      $region183: #{moco_forward.1} parent=167 // pred_check
        %p4818 = pneg %p1046
      $region184: #{moco_forward.1} parent=167 // pred_check_branch
        %4820 = sbr.rel (%p4818) target = $region186
      $region185: #{moco_forward.1} parent=167 // pred_region
        _
      $region186: #{moco_forward.1} parent=167 // pred_fallthru
        _
    $region168: #{moco_forward.1} parent=5 // pred_fallthru
      _
    %p4821 = scmp.le.s32.totalorder 2, %s81
    // Predicated region
    $region187: #{moco_forward.1} parent=5 // pred_check
      %p4822 = pneg %p4821
    $region188: #{moco_forward.1} parent=5 // pred_check_branch
      %4824 = sbr.rel (%p4822) target = $region190
    $region189: #{moco_forward.1} parent=5 // pred_region
      %s4825 = ssub.s32 %s81, 2
      // Predicated region
      $region191: #{moco_forward.1} parent=189 // pred_check
        %p4826 = pneg %p1052
      $region192: #{moco_forward.1} parent=189 // pred_check_branch
        %4828 = sbr.rel (%p4826) target = $region194
      $region193: #{moco_forward.1} parent=189 // pred_region
        %p4829 = scmp.lt.s32.totalorder %s87, 1
        %s4830 = scalar_select %p4829, %s87, 1
        %s4831 = smul.addr %s4830, 2
        %s4832 = scalar_lea.vmem %s75, %s4831
      $region194: #{moco_forward.1} parent=189 // pred_fallthru
        _
    $region190: #{moco_forward.1} parent=5 // pred_fallthru
      _
  $region6: #{moco_forward.1} parent=0 // loop_footer
    %s85 = sadd.s32 1, %s81
  $region7: #{moco_forward.1} parent=0 // loop_footer_branch
    %80 = sbr.rel target = $region3
  $region8: #{moco_forward.1} parent=0 // loop_exit
    _

</llo_original>
